<compile_context>
chip_gen: v7x
topology: tpu7x:2x2x1
jax: 0.10.0
libtpu: 0.0.40
codegen_flags: <defaults>
</compile_context>

<pallas_src>
import jax
import jax.numpy as jnp
from jax.experimental import pallas as pl
from jax.experimental.pallas import tpu as pltpu

FEAT_DIM = 2048      # resnet50 fc.in_features
HIDDEN_DIM = 512     # projection head hidden width
PROJ_DIM = 128       # projection_dim

_VMEM_LIMIT = 48 * 1024 * 1024   # fits v7x's 64 MiB VMEM with headroom


def _pick_hw_tile(hw, max_tile=512):
    """Largest HW tile <= max_tile that evenly divides HW (multiple of 8).

    max_tile=512 keeps the (THW, 2048) f32 activation tile at ~4 MiB, which
    double-buffers comfortably inside v7x's 64 MiB VMEM (and trivially on
    v5e/v6e's 128 MiB).
    """
    if hw <= max_tile:
        return hw
    for t in range(max_tile, 7, -1):
        if hw % t == 0 and t % 8 == 0:
            return t
    # TODO(synk): pad HW to an aligned multiple when no clean divisor exists.
    return hw


def _make_stem_pool_kernel(hw):
    inv_hw = 1.0 / float(hw)

    def kernel(x_ref, ws_ref, feats_ref, acc_ref):
        k = pl.program_id(1)

        @pl.when(k == 0)
        def _init():
            acc_ref[...] = jnp.zeros_like(acc_ref)

        # Backbone stand-in: per-pixel 1x1 "conv" (bf16 operands, f32 accum).
        # K == C is tiny so the MXU contraction depth is under-filled, but the
        # MXU is otherwise idle in this kernel (the projection head runs in a
        # separate call), so keeping it on the MXU costs nothing and leaves the
        # VPU/XLU slots free for the ReLU and the pooling reduction below.
        h = jnp.dot(x_ref[...], ws_ref[...], preferred_element_type=jnp.float32)
        h = jnp.maximum(h, 0.0)                               # [THW, F] f32

        # Global average pool: accumulate the per-image row sum in f32 scratch.
        acc_ref[...] += jnp.sum(h, axis=0, keepdims=True)     # [1, F] f32

        @pl.when(k == pl.num_programs(1) - 1)
        def _finalize():
            feats_ref[...] = acc_ref[...] * inv_hw

    return kernel


def _head_kernel(f_ref, w1_ref, b1_ref, w2_ref, b2_ref, o_ref):
    # Projection head, batched over all images: Linear(F,512) -> ReLU -> Linear(512,128).
    # bf16 matmul operands, f32 accumulation and f32 biases.
    z = jnp.dot(f_ref[...].astype(jnp.bfloat16), w1_ref[...],
                preferred_element_type=jnp.float32) + b1_ref[...]
    z = jnp.maximum(z, 0.0)
    p = jnp.dot(z.astype(jnp.bfloat16), w2_ref[...],
                preferred_element_type=jnp.float32) + b2_ref[...]
    o_ref[...] = p.astype(o_ref.dtype)


def simclr_forward(x_nchw, params):
    B, C, H, W = x_nchw.shape
    HW = H * W
    # NCHW -> NHWC -> [B, H*W, C] so channels sit on lanes, spatial on sublanes.
    # TODO(synk): at real scale, store activations NHWC upstream so this
    # transpose (an extra HBM round trip) disappears from the hot path.
    x = jnp.transpose(x_nchw, (0, 2, 3, 1)).reshape(B, HW, C).astype(jnp.bfloat16)

    w_stem = params["w_stem"].astype(jnp.bfloat16)
    w1 = params["w1"].astype(jnp.bfloat16)
    w2 = params["w2"].astype(jnp.bfloat16)

    thw = _pick_hw_tile(HW)
    nk = HW // thw

    stem_cost = pl.CostEstimate(
        flops=2 * B * HW * C * FEAT_DIM + 2 * B * HW * FEAT_DIM,
        transcendentals=0,
        bytes_accessed=B * HW * C * 2 + C * FEAT_DIM * 2 + B * FEAT_DIM * 4,
    )

    # ---- Kernel A: stem 1x1 conv + ReLU + global average pool -> feats [B,1,F] ----
    feats = pl.pallas_call(
        _make_stem_pool_kernel(HW),
        out_shape=jax.ShapeDtypeStruct((B, 1, FEAT_DIM), jnp.float32),
        grid_spec=pltpu.PrefetchScalarGridSpec(
            num_scalar_prefetch=0,
            grid=(B, nk),                                    # reduction axis last
            in_specs=[
                # pipelined per-image HW tile of the input
                pl.BlockSpec((None, thw, C), lambda b, k: (b, k, 0)),
                # resident stem weight (constant index_map -> DMA'd once)
                pl.BlockSpec((C, FEAT_DIM), lambda b, k: (0, 0)),
            ],
            out_specs=pl.BlockSpec((None, 1, FEAT_DIM), lambda b, k: (b, 0, 0)),
            scratch_shapes=[pltpu.VMEM((1, FEAT_DIM), jnp.float32)],
        ),
        compiler_params=pltpu.CompilerParams(
            dimension_semantics=("parallel", "arbitrary"),   # batch axis -> 2 TCs on v7x
            vmem_limit_bytes=_VMEM_LIMIT,
        ),
        cost_estimate=stem_cost,
    )(x, w_stem)

    feats2d = feats.reshape(B, FEAT_DIM)

    # ---- Kernel B: projection head over the whole batch at once ----
    vmem = pltpu.MemorySpace.VMEM
    out = pl.pallas_call(
        _head_kernel,
        out_shape=jax.ShapeDtypeStruct((B, PROJ_DIM), jnp.float32),
        in_specs=[pl.BlockSpec(memory_space=vmem)] * 5,
        out_specs=pl.BlockSpec(memory_space=vmem),
        compiler_params=pltpu.CompilerParams(vmem_limit_bytes=_VMEM_LIMIT),
        cost_estimate=pl.CostEstimate(
            flops=2 * B * (FEAT_DIM * HIDDEN_DIM + HIDDEN_DIM * PROJ_DIM),
            transcendentals=0,
            bytes_accessed=B * FEAT_DIM * 4 + FEAT_DIM * HIDDEN_DIM * 2
            + HIDDEN_DIM * PROJ_DIM * 2 + B * PROJ_DIM * 4,
        ),
    )(feats2d, w1, params["b1"], w2, params["b2"])
    return out


def init_params(key, in_channels):
    k = jax.random.split(key, 5)
    scale = lambda fan_in: 1.0 / jnp.sqrt(jnp.float32(fan_in))
    return {
        "w_stem": jax.random.normal(k[0], (in_channels, FEAT_DIM), jnp.float32)
                  * scale(in_channels),
        "w1": jax.random.normal(k[1], (FEAT_DIM, HIDDEN_DIM), jnp.float32) * scale(FEAT_DIM),
        "b1": jax.random.normal(k[2], (1, HIDDEN_DIM), jnp.float32) * 0.01,
        "w2": jax.random.normal(k[3], (HIDDEN_DIM, PROJ_DIM), jnp.float32) * scale(HIDDEN_DIM),
        "b2": jax.random.normal(k[4], (1, PROJ_DIM), jnp.float32) * 0.01,
    }


def reference_forward(x_nchw, params):
    """Pure-JAX f32 reference of the same computation (for a sanity check)."""
    B, C, H, W = x_nchw.shape
    x_flat = jnp.transpose(x_nchw, (0, 2, 3, 1)).reshape(B * H * W, C)
    h = jnp.maximum(x_flat @ params["w_stem"], 0.0)
    feats = h.reshape(B, H * W, FEAT_DIM).mean(axis=1)
    z = jnp.maximum(feats @ params["w1"] + params["b1"], 0.0)
    return z @ params["w2"] + params["b2"]


if __name__ == "__main__":
    key = jax.random.PRNGKey(0)
    kx, kp = jax.random.split(key)
    B, C, H, W = 2, 4, 16, 16
    x = jax.random.normal(kx, (B, C, H, W), jnp.float32)
    params = init_params(kp, C)

    out = jax.block_until_ready(simclr_forward(x, params))
    assert out.shape == (B, PROJ_DIM) and out.dtype == jnp.float32

    ref = reference_forward(x, params)
    # Kernel uses bf16 matmul operands with f32 accumulation; reference is pure f32.
    assert jnp.allclose(out, ref, rtol=2e-2, atol=2e-2), "mismatch vs JAX reference"
    print("KERNEL_OK")
</pallas_src>

<mosaic_0001>
module attributes {stable_mosaic.version = 11 : i64} {
  func.func @kernel(%arg0: i32, %arg1: i32, %arg2: memref<1x256x4xbf16, #tpu.memory_space<vmem>>, %arg3: memref<4x2048xbf16, #tpu.memory_space<vmem>>, %arg4: memref<1x1x2048xf32, #tpu.memory_space<vmem>>, %arg5: memref<1x2048xf32, #tpu.memory_space<vmem>>) attributes {dimension_semantics = [#tpu.dimension_semantics<parallel>, #tpu.dimension_semantics<arbitrary>], iteration_bounds = array<i64: 2, 1>, scalar_prefetch = 0 : i64, scratch_operands = 1 : i64, tpu.core_type = #tpu.core_type<tc>, window_params = [{transform_indices = @transform_0, window_bounds = array<i64: 1, 256, 4>}, {pipeline_mode = #tpu.pipeline_mode<synchronous>, transform_indices = @transform_1, window_bounds = array<i64: 4, 2048>}, {transform_indices = @transform_2, window_bounds = array<i64: 1, 1, 2048>}]} {
    %c0_i32 = arith.constant 0 : i32
    %0 = arith.cmpi eq, %arg1, %c0_i32 : i32
    %1 = arith.extui %0 : i1 to i32
    %c0_i32_0 = arith.constant 0 : i32
    %2 = arith.cmpi ne, %1, %c0_i32_0 : i32
    scf.if %2 {
      %cst_13 = arith.constant 0.000000e+00 : f32
      %17 = vector.broadcast %cst_13 : f32 to vector<1x2048xf32>
      %c0_14 = arith.constant 0 : index
      %c0_15 = arith.constant 0 : index
      %18 = vector.load %arg5[%c0_14, %c0_15] : memref<1x2048xf32, #tpu.memory_space<vmem>>, vector<1x2048xf32>
      tpu.vector_store %arg5[%c0_14, %c0_15], %17 {strides = array<i32>} : memref<1x2048xf32, #tpu.memory_space<vmem>>, vector<1x2048xf32>,
    } else {
    }
    %c0 = arith.constant 0 : index
    %c0_1 = arith.constant 0 : index
    %c0_2 = arith.constant 0 : index
    %3 = vector.load %arg2[%c0, %c0_1, %c0_2] : memref<1x256x4xbf16, #tpu.memory_space<vmem>>, vector<1x256x4xbf16>
    %4 = vector.shape_cast %3 : vector<1x256x4xbf16> to vector<256x4xbf16>
    %c0_3 = arith.constant 0 : index
    %c0_4 = arith.constant 0 : index
    %5 = vector.load %arg3[%c0_3, %c0_4] : memref<4x2048xbf16, #tpu.memory_space<vmem>>, vector<4x2048xbf16>
    %cst = arith.constant dense<0.000000e+00> : vector<256x2048xf32>
    %6 = tpu.matmul %4, %5, %cst {dimension_numbers = #tpu.dot_dimension_numbers<[1], [0], [0], [1], [0, 0, 1, 1], [], []>} : vector<256x4xbf16>, vector<4x2048xbf16>, vector<256x2048xf32> -> vector<256x2048xf32>
    %cst_5 = arith.constant 0.000000e+00 : f32
    %7 = vector.broadcast %cst_5 : f32 to vector<256x2048xf32>
    %8 = arith.maximumf %6, %7 : vector<256x2048xf32>
    %c0_6 = arith.constant 0 : index
    %c0_7 = arith.constant 0 : index
    %9 = vector.load %arg5[%c0_6, %c0_7] : memref<1x2048xf32, #tpu.memory_space<vmem>>, vector<1x2048xf32>
    %cst_8 = arith.constant dense<0.000000e+00> : vector<2048xf32>
    %10 = vector.multi_reduction <add>, %8, %cst_8 [0] : vector<256x2048xf32> to vector<2048xf32>
    %11 = vector.shape_cast %10 : vector<2048xf32> to vector<1x2048xf32>
    %12 = arith.addf %9, %11 : vector<1x2048xf32>
    %c0_9 = arith.constant 0 : index
    %c0_10 = arith.constant 0 : index
    %13 = vector.load %arg5[%c0_9, %c0_10] : memref<1x2048xf32, #tpu.memory_space<vmem>>, vector<1x2048xf32>
    tpu.vector_store %arg5[%c0_9, %c0_10], %12 {strides = array<i32>} : memref<1x2048xf32, #tpu.memory_space<vmem>>, vector<1x2048xf32>,
    %c0_i32_11 = arith.constant 0 : i32
    %14 = arith.cmpi eq, %arg1, %c0_i32_11 : i32
    %15 = arith.extui %14 : i1 to i32
    %c0_i32_12 = arith.constant 0 : i32
    %16 = arith.cmpi ne, %15, %c0_i32_12 : i32
    scf.if %16 {
      %c0_13 = arith.constant 0 : index
      %c0_14 = arith.constant 0 : index
      %17 = vector.load %arg5[%c0_13, %c0_14] : memref<1x2048xf32, #tpu.memory_space<vmem>>, vector<1x2048xf32>
      %cst_15 = arith.constant 3.906250e-03 : f32
      %18 = vector.broadcast %cst_15 : f32 to vector<1x2048xf32>
      %19 = arith.mulf %17, %18 : vector<1x2048xf32>
      %c0_16 = arith.constant 0 : index
      %c0_17 = arith.constant 0 : index
      %c0_18 = arith.constant 0 : index
      %20 = vector.load %arg4[%c0_16, %c0_17, %c0_18] : memref<1x1x2048xf32, #tpu.memory_space<vmem>>, vector<1x1x2048xf32>
      %21 = vector.shape_cast %20 : vector<1x1x2048xf32> to vector<1x2048xf32>
      %22 = vector.shape_cast %19 : vector<1x2048xf32> to vector<1x1x2048xf32>
      tpu.vector_store %arg4[%c0_16, %c0_17, %c0_18], %22 {strides = array<i32>} : memref<1x1x2048xf32, #tpu.memory_space<vmem>>, vector<1x1x2048xf32>,
    } else {
    }
    return
  }
  func.func @transform_0(%arg0: i32, %arg1: i32) -> (i32, i32, i32) {
    %c0_i32 = arith.constant 0 : i32
    %c0_i32_0 = arith.constant 0 : i32
    return %arg0, %arg1, %c0_i32 : i32, i32, i32
  }
  func.func @transform_1(%arg0: i32, %arg1: i32) -> (i32, i32) {
    %c0_i32 = arith.constant 0 : i32
    %c0_i32_0 = arith.constant 0 : i32
    %c0_i32_1 = arith.constant 0 : i32
    return %c0_i32, %c0_i32_0 : i32, i32
  }
  func.func @transform_2(%arg0: i32, %arg1: i32) -> (i32, i32, i32) {
    %c0_i32 = arith.constant 0 : i32
    %c0_i32_0 = arith.constant 0 : i32
    %c0_i32_1 = arith.constant 0 : i32
    return %arg0, %c0_i32, %c0_i32_0 : i32, i32, i32
  }
}

</mosaic_0001>

<llo_original>
// kernel: tpu_custom_call.1
$region0: #{tpu_custom_call.1}
  #allocation0 [shape = 'u32[]', space=smem, size = 0x4, offset = 0x4, fixed_abs, tag = 'smem constant byte address 0x4 - core index']
  #allocation1 [shape = 'u32[144,128]{1,0:T(1,128)}', space=vmem, size = 0x12000, scoped, tag = 'internal scratch']
  #allocation2 [shape = 'f32[1,2048]{1,0:T(1,128)}', space=vmem, size = 0x2000, scoped, tag = 'scratch operand']
  %s0 = inlined_call_operand.vmem [shape: bf16[2,256,4], index: 0, kind: input, shape index: {}]
  %s1 = inlined_call_operand.vmem [shape: bf16[4,2048], index: 1, kind: input, shape index: {}]
  %s2 = inlined_call_operand.hbm [shape: f32[2,1,2048], index: 2, kind: output, shape index: {}]
  %s3 = sld [smem:[#allocation0]]
  $region49: #{tpu_custom_call.1} parent=0
    _
  %s5 = ssub.s32 1, %s3
  %s6 = scalar_select 0, %s5, %s3
  $region1: #{tpu_custom_call.1} parent=0
    #allocation3 [shape = 'u8[16384]{0}', space=vmem, size = 0x4000, scoped, tag = 'output window, operand 0']
    #allocation4 [shape = 's32[2]{0}', space=sflag, size = 0x8, scoped, tag = 'scoped memory for tpu_custom_call.1']
    %7 = vsyncpa [#allocation4], 0
    %s8 = scalar_lea.sflag [#allocation4], 1
    %9 = vsyncpa %s8, 0
    loop: start=0, step=1, limit=4
    $region2: #{tpu_custom_call.1} parent=1 // loop_pre_header
      _
    $region3: #{tpu_custom_call.1} parent=1 // loop_header
      %s11 = sphi 0, %s15
      %p12 = scmp.ge.s32.totalorder %s11, 4
      %s18 = sphi 0, %s30
      %s19 = sphi 0, %s26
      %s20 = sphi 0, %s18
      %s21 = sphi 0, %s19
      %s22 = sphi 0, %s20
      %s23 = sphi 0, %s21
      %s35 = sphi 0, %s37
      %s38 = sphi 0, %s35
      %s39 = sphi 0, %s38
      %s55 = sphi 0, %s39
      %s59 = sphi 0, %s59
      %s61 = sphi 0, %s59
      %s62 = sphi 0, %s61
      %s76 = sphi 0, %s62
      %s82 = sphi 0, %s84
      %s85 = sphi 0, %s82
      %s86 = sphi 0, %s85
      %s102 = sphi 0, %s86
    $region4: #{tpu_custom_call.1} parent=1 // loop_header_branch
      %14 = sbr.rel (%p12) target = $region8
    $region5: #{tpu_custom_call.1} parent=1 // loop_body
      %s16 = ssub.s32 %s11, 1
      %s17 = ssub.s32 %s11, 2
      %s24 = sadd.s32 1, %s19
      %p25 = scmp.ge.s32.totalorder %s24, 1
      %s26 = scalar_select %p25, 0, %s24
      %s27 = sadd.s32 1, %s18
      %s28 = scalar_select %p25, %s27, %s18
      %p29 = scmp.ge.s32.totalorder %s28, 2
      %s30 = scalar_select %p29, 0, %s28
      %s31 = ssub.s32 %s18, %s30
      %s32 = ssub.s32 %s19, %s26
      %s33 = sor.u32 %s31, %s32
      %p34 = scmp.eq.s32.totalorder %s33, 0
      %s36 = sadd.s32 %s35, 1
      %s37 = scalar_select %p34, %s35, %s36
      %p40 = pneg %p34
      %p41 = scmp.eq.s32.totalorder %s11, 1
      %p42 = por %p40, %p41
      %p43 = scmp.ne.s32.totalorder %s35, %s38
      %p44 = scmp.eq.s32.totalorder %s11, 0
      %p45 = por %p43, %p44
      %p46 = scmp.ne.s32.totalorder %s35, %s38
      %p47 = scmp.eq.s32.totalorder %s16, 1
      %p48 = por %p46, %p47
      %p49 = scmp.ne.s32.totalorder %s38, %s39
      %p50 = scmp.eq.s32.totalorder %s16, 0
      %p51 = por %p49, %p50
      %p52 = scmp.ne.s32.totalorder %s38, %s39
      %p53 = scmp.eq.s32.totalorder %s17, 1
      %p54 = por %p52, %p53
      %p56 = scmp.ne.s32.totalorder %s39, %s55
      %p57 = scmp.eq.s32.totalorder %s17, 0
      %p58 = por %p56, %p57
      %s60 = sadd.s32 %s59, 1
      %p63 = scmp.eq.s32.totalorder %s11, 1
      %p64 = scmp.ne.s32.totalorder %s59, %s61
      %p65 = scmp.eq.s32.totalorder %s11, 0
      %p66 = por %p64, %p65
      %p67 = scmp.ne.s32.totalorder %s59, %s61
      %p68 = scmp.eq.s32.totalorder %s16, 1
      %p69 = por %p67, %p68
      %p70 = scmp.ne.s32.totalorder %s61, %s62
      %p71 = scmp.eq.s32.totalorder %s16, 0
      %p72 = por %p70, %p71
      %p73 = scmp.ne.s32.totalorder %s61, %s62
      %p74 = scmp.eq.s32.totalorder %s17, 1
      %p75 = por %p73, %p74
      %p77 = scmp.ne.s32.totalorder %s62, %s76
      %p78 = scmp.eq.s32.totalorder %s17, 0
      %p79 = por %p77, %p78
      %s80 = ssub.s32 %s18, %s30
      %p81 = scmp.eq.s32.totalorder %s80, 0
      %s83 = sadd.s32 %s82, 1
      %s84 = scalar_select %p81, %s82, %s83
      %p87 = pneg %p81
      %p88 = scmp.eq.s32.totalorder %s11, 1
      %p89 = por %p87, %p88
      %p90 = scmp.ne.s32.totalorder %s82, %s85
      %p91 = scmp.eq.s32.totalorder %s11, 0
      %p92 = por %p90, %p91
      %p93 = scmp.ne.s32.totalorder %s82, %s85
      %p94 = scmp.eq.s32.totalorder %s16, 1
      %p95 = por %p93, %p94
      %p96 = scmp.ne.s32.totalorder %s85, %s86
      %p97 = scmp.eq.s32.totalorder %s16, 0
      %p98 = por %p96, %p97
      %p99 = scmp.ne.s32.totalorder %s85, %s86
      %p100 = scmp.eq.s32.totalorder %s17, 1
      %p101 = por %p99, %p100
      %p103 = scmp.ne.s32.totalorder %s86, %s102
      %p104 = scmp.eq.s32.totalorder %s17, 0
      %p105 = por %p103, %p104
      %p106 = scmp.le.s32.totalorder 1, %s11
      %p107 = scmp.lt.s32.totalorder %s11, 3
      %p108 = pnand %p106, %p107
      %p109 = pneg %p108
      // Predicated region
      $region9: #{tpu_custom_call.1} parent=5 // pred_check
        _
      $region10: #{tpu_custom_call.1} parent=5 // pred_check_branch
        %111 = sbr.rel (%p108) target = $region12
      $region11: #{tpu_custom_call.1} parent=5 // pred_region
        %s112 = ssub.s32 %s11, 1
        // Predicated region
        $region13: #{tpu_custom_call.1} parent=11 // pred_check
          %p113 = pneg %p72
        $region14: #{tpu_custom_call.1} parent=11 // pred_check_branch
          %115 = sbr.rel (%p113) target = $region16
        $region15: #{tpu_custom_call.1} parent=11 // pred_region
          _
        $region16: #{tpu_custom_call.1} parent=11 // pred_fallthru
          _
      $region12: #{tpu_custom_call.1} parent=5 // pred_fallthru
        _
      %p116 = scmp.lt.s32.totalorder %s11, 2
      // Predicated region
      $region17: #{tpu_custom_call.1} parent=5 // pred_check
        %p117 = pneg %p116
      $region18: #{tpu_custom_call.1} parent=5 // pred_check_branch
        %119 = sbr.rel (%p117) target = $region20
      $region19: #{tpu_custom_call.1} parent=5 // pred_region
        // Predicated region
        $region21: #{tpu_custom_call.1} parent=19 // pred_check
          %p120 = pneg %p45
        $region22: #{tpu_custom_call.1} parent=19 // pred_check_branch
          %122 = sbr.rel (%p120) target = $region24
        $region23: #{tpu_custom_call.1} parent=19 // pred_region
          %s123 = smul.u32 32, %s19
          %p124 = scmp.lt.s32.totalorder %s18, 1
          %s125 = scalar_select %p124, %s18, 1
          %p126 = scmp.lt.s32.totalorder %s123, 31
          %s127 = scalar_select %p126, %s123, 31
          %s128 = smul.addr %s125, 32
          %s129 = sadd.s32 %s127, %s128
          %s130 = smul.addr %s129, 4
          %s131 = scalar_lea.vmem %s0, %s130
          %s132 = smul.u32 32, %s19
        $region24: #{tpu_custom_call.1} parent=19 // pred_fallthru
          _
      $region20: #{tpu_custom_call.1} parent=5 // pred_fallthru
        _
      %p133 = scmp.le.s32.totalorder 1, %s11
      %p134 = scmp.lt.s32.totalorder %s11, 3
      %p135 = pnand %p133, %p134
      %p136 = pneg %p135
      // Predicated region
      $region25: #{tpu_custom_call.1} parent=5 // pred_check
        _
      $region26: #{tpu_custom_call.1} parent=5 // pred_check_branch
        %138 = sbr.rel (%p135) target = $region28
      $region27: #{tpu_custom_call.1} parent=5 // pred_region
        %s139 = ssub.s32 %s11, 1
        %s140 = smul.u32 32, %s21
        %p141 = scmp.lt.s32.totalorder %s20, 1
        %s142 = scalar_select %p141, %s20, 1
        %p143 = scmp.lt.s32.totalorder %s140, 31
        %s144 = scalar_select %p143, %s140, 31
        %s145 = smul.addr %s142, 32
        %s146 = sadd.s32 %s144, %s145
        %s147 = smul.addr %s146, 4
        %s148 = scalar_lea.vmem %s0, %s147
        %p149 = pneg %p51
        %p150 = pneg %p48
        %p151 = pneg %p72
        %p152 = pneg %p69
        %p153 = pneg %p98
        %p154 = pneg %p95
        %s155 = sand.u32 %s85, 1
        %s156 = scalar_lea.sflag [#allocation4], %s155
        %s157 = sand.u32 %s85, 1
        %s158 = smul.addr %s157, 16
        %s159 = scalar_lea.vmem [#allocation3], %s158
        %s160 = smul.u32 32, %s21
        %p161 = scmp.lt.s32.totalorder %s20, 1
        %s162 = scalar_select %p161, %s20, 1
        %p163 = scmp.lt.s32.totalorder %s160, 31
        %s164 = scalar_select %p163, %s160, 31
        %s165 = smul.addr %s162, 32
        %s166 = sadd.s32 %s164, %s165
        %s167 = smul.addr %s166, 4
        %s168 = scalar_lea.vmem %s0, %s167
        %s169 = smul.u32 32, %s21
        %p171 = scmp.eq.s32.totalorder %s21, 0
        // Predicated region
        $region29: #{tpu_custom_call.1} parent=27 // pred_check
          %p172 = pneg %p171
        $region30: #{tpu_custom_call.1} parent=27 // pred_check_branch
          %174 = sbr.rel (%p172) target = $region32
        $region31: #{tpu_custom_call.1} parent=27 // pred_region
          %175 = vst [vmem:[#allocation2] sm:$0xff] 0.0
          %176 = vst [vmem:[#allocation2 + $0x8] sm:$0xff] 0.0
        $region32: #{tpu_custom_call.1} parent=27 // pred_fallthru
          _
        %v177 = vld [vmem:[%s168] sm:$0xf]
        %v178 = vld [vmem:[%s168 + $0x4] sm:$0xf]
        %v179 = vld [vmem:[%s168 + $0x8] sm:$0xf]
        %v180 = vld [vmem:[%s168 + $0xc] sm:$0xf]
        %v181 = vld [vmem:[%s168 + $0x10] sm:$0xf]
        %v182 = vld [vmem:[%s168 + $0x14] sm:$0xf]
        %v183 = vld [vmem:[%s168 + $0x18] sm:$0xf]
        %v184 = vld [vmem:[%s168 + $0x1c] sm:$0xf]
        %v185 = vld [vmem:[%s168 + $0x20] sm:$0xf]
        %v186 = vld [vmem:[%s168 + $0x24] sm:$0xf]
        %v187 = vld [vmem:[%s168 + $0x28] sm:$0xf]
        %v188 = vld [vmem:[%s168 + $0x2c] sm:$0xf]
        %v189 = vld [vmem:[%s168 + $0x30] sm:$0xf]
        %v190 = vld [vmem:[%s168 + $0x34] sm:$0xf]
        %v191 = vld [vmem:[%s168 + $0x38] sm:$0xf]
        %v192 = vld [vmem:[%s168 + $0x3c] sm:$0xf]
        %v193 = vld [vmem:[%s168 + $0x40] sm:$0xf]
        %v194 = vld [vmem:[%s168 + $0x44] sm:$0xf]
        %v195 = vld [vmem:[%s168 + $0x48] sm:$0xf]
        %v196 = vld [vmem:[%s168 + $0x4c] sm:$0xf]
        %v197 = vld [vmem:[%s168 + $0x50] sm:$0xf]
        %v198 = vld [vmem:[%s168 + $0x54] sm:$0xf]
        %v199 = vld [vmem:[%s168 + $0x58] sm:$0xf]
        %v200 = vld [vmem:[%s168 + $0x5c] sm:$0xf]
        %v201 = vld [vmem:[%s168 + $0x60] sm:$0xf]
        %v202 = vld [vmem:[%s168 + $0x64] sm:$0xf]
        %v203 = vld [vmem:[%s168 + $0x68] sm:$0xf]
        %v204 = vld [vmem:[%s168 + $0x6c] sm:$0xf]
        %v205 = vld [vmem:[%s168 + $0x70] sm:$0xf]
        %v206 = vld [vmem:[%s168 + $0x74] sm:$0xf]
        %v207 = vld [vmem:[%s168 + $0x78] sm:$0xf]
        %v208 = vld [vmem:[%s168 + $0x7c] sm:$0xf]
        %v209 = vld [vmem:[%s1] sm:$0xff]
        %v210 = vld [vmem:[%s1 + $0x8] sm:$0xff]
        %v211 = vld [vmem:[%s1 + $0x10] sm:$0xff]
        %v212 = vld [vmem:[%s1 + $0x18] sm:$0xff]
        %v245 = vunpack.c.l.b16 %v177
        %v246 = vunpack.c.l.b16 %v178
        %v247 = vunpack.c.l.b16 %v179
        %v248 = vunpack.c.l.b16 %v180
        %v249 = vunpack.c.l.b16 %v181
        %v250 = vunpack.c.l.b16 %v182
        %v251 = vunpack.c.l.b16 %v183
        %v252 = vunpack.c.l.b16 %v184
        %v253 = vunpack.c.l.b16 %v185
        %v254 = vunpack.c.l.b16 %v186
        %v255 = vunpack.c.l.b16 %v187
        %v256 = vunpack.c.l.b16 %v188
        %v257 = vunpack.c.l.b16 %v189
        %v258 = vunpack.c.l.b16 %v190
        %v259 = vunpack.c.l.b16 %v191
        %v260 = vunpack.c.l.b16 %v192
        %v261 = vunpack.c.l.b16 %v193
        %v262 = vunpack.c.l.b16 %v194
        %v263 = vunpack.c.l.b16 %v195
        %v264 = vunpack.c.l.b16 %v196
        %v265 = vunpack.c.l.b16 %v197
        %v266 = vunpack.c.l.b16 %v198
        %v267 = vunpack.c.l.b16 %v199
        %v268 = vunpack.c.l.b16 %v200
        %v269 = vunpack.c.l.b16 %v201
        %v270 = vunpack.c.l.b16 %v202
        %v271 = vunpack.c.l.b16 %v203
        %v272 = vunpack.c.l.b16 %v204
        %v273 = vunpack.c.l.b16 %v205
        %v274 = vunpack.c.l.b16 %v206
        %v275 = vunpack.c.l.b16 %v207
        %v276 = vunpack.c.l.b16 %v208
        %v277 = vpack.c.b16 %v246, %v245
        %v278 = vpack.c.b16 %v248, %v247
        %v279 = vpack.c.b16 %v250, %v249
        %v280 = vpack.c.b16 %v252, %v251
        %v281 = vpack.c.b16 %v254, %v253
        %v282 = vpack.c.b16 %v256, %v255
        %v283 = vpack.c.b16 %v258, %v257
        %v284 = vpack.c.b16 %v260, %v259
        %v285 = vpack.c.b16 %v262, %v261
        %v286 = vpack.c.b16 %v264, %v263
        %v287 = vpack.c.b16 %v266, %v265
        %v288 = vpack.c.b16 %v268, %v267
        %v289 = vpack.c.b16 %v270, %v269
        %v290 = vpack.c.b16 %v272, %v271
        %v291 = vpack.c.b16 %v274, %v273
        %v292 = vpack.c.b16 %v276, %v275
        %v297 = vcombine.high %v209, %v209
        %v299 = vunpack.c.l.s4 1983009808
        %v300 = vunpack.c.0.s8 %v299
        %v301 = vlaneseq
        %v302 = vshrl.u32 %v301, 7
        %v303 = vsub.s32 %v300, %v302
        %v304 = vrot.slane %v209, %v303
        %v306 = vunpack.c.l.s4 1983009808
        %v307 = vunpack.c.0.s8 %v306
        %v308 = vlaneseq
        %v309 = vshrl.u32 %v308, 7
        %v310 = vsub.s32 %v307, %v309
        %v311 = vrot.slane %v297, %v310
        %v312 = vcombine.high %v304, %v304
        %v313 = vcombine.high %v311, %v311
        %v314 = vcombine.high %v210, %v210
        %v316 = vunpack.c.l.s4 1983009808
        %v317 = vunpack.c.0.s8 %v316
        %v318 = vlaneseq
        %v319 = vshrl.u32 %v318, 7
        %v320 = vsub.s32 %v317, %v319
        %v321 = vrot.slane %v210, %v320
        %v323 = vunpack.c.l.s4 1983009808
        %v324 = vunpack.c.0.s8 %v323
        %v325 = vlaneseq
        %v326 = vshrl.u32 %v325, 7
        %v327 = vsub.s32 %v324, %v326
        %v328 = vrot.slane %v314, %v327
        %v329 = vcombine.high %v321, %v321
        %v330 = vcombine.high %v328, %v328
        %v331 = vcombine.high %v211, %v211
        %v333 = vunpack.c.l.s4 1983009808
        %v334 = vunpack.c.0.s8 %v333
        %v335 = vlaneseq
        %v336 = vshrl.u32 %v335, 7
        %v337 = vsub.s32 %v334, %v336
        %v338 = vrot.slane %v211, %v337
        %v340 = vunpack.c.l.s4 1983009808
        %v341 = vunpack.c.0.s8 %v340
        %v342 = vlaneseq
        %v343 = vshrl.u32 %v342, 7
        %v344 = vsub.s32 %v341, %v343
        %v345 = vrot.slane %v331, %v344
        %v346 = vcombine.high %v338, %v338
        %v347 = vcombine.high %v345, %v345
        %v348 = vcombine.high %v212, %v212
        %v350 = vunpack.c.l.s4 1983009808
        %v351 = vunpack.c.0.s8 %v350
        %v352 = vlaneseq
        %v353 = vshrl.u32 %v352, 7
        %v354 = vsub.s32 %v351, %v353
        %v355 = vrot.slane %v212, %v354
        %v357 = vunpack.c.l.s4 1983009808
        %v358 = vunpack.c.0.s8 %v357
        %v359 = vlaneseq
        %v360 = vshrl.u32 %v359, 7
        %v361 = vsub.s32 %v358, %v360
        %v362 = vrot.slane %v348, %v361
        %v363 = vcombine.high %v355, %v355
        %v364 = vcombine.high %v362, %v362
        %vm365 = vcmask 31744
        %v367 = vsel %vm365, %v277, 0
        %v370 = vsel %vm365, %v278, 0
        %v373 = vsel %vm365, %v279, 0
        %v376 = vsel %vm365, %v280, 0
        %v379 = vsel %vm365, %v281, 0
        %v382 = vsel %vm365, %v282, 0
        %v385 = vsel %vm365, %v283, 0
        %v388 = vsel %vm365, %v284, 0
        %v391 = vsel %vm365, %v285, 0
        %v394 = vsel %vm365, %v286, 0
        %v397 = vsel %vm365, %v287, 0
        %v400 = vsel %vm365, %v288, 0
        %v403 = vsel %vm365, %v289, 0
        %v406 = vsel %vm365, %v290, 0
        %v409 = vsel %vm365, %v291, 0
        %v412 = vsel %vm365, %v292, 0
        %vm414 = vcmask 1041408
        %v416 = vsel %vm414, %v304, 0
        %v419 = vsel %vm414, %v312, 0
        %v422 = vsel %vm414, %v311, 0
        %v425 = vsel %vm414, %v313, 0
        %v428 = vsel %vm414, %v321, 0
        %v431 = vsel %vm414, %v329, 0
        %v434 = vsel %vm414, %v328, 0
        %v437 = vsel %vm414, %v330, 0
        %v440 = vsel %vm414, %v338, 0
        %v443 = vsel %vm414, %v346, 0
        %v446 = vsel %vm414, %v345, 0
        %v449 = vsel %vm414, %v347, 0
        %v452 = vsel %vm414, %v355, 0
        %v455 = vsel %vm414, %v363, 0
        %v458 = vsel %vm414, %v362, 0
        %v461 = vsel %vm414, %v364, 0
        %463 = vmatprep.subr.bf16.mxu0 %v419
        %464 = vmatpush1.bf16.msra.mxu0 %v416
        %465 = vmatprep.subr.bf16.mxu0 0
        %466 = vmatpush1.bf16.msra.mxu0 0
        %467 = vmatprep.subr.bf16.mxu0 0
        %468 = vmatpush1.bf16.msra.mxu0 0
        %469 = vmatprep.subr.bf16.mxu0 0
        %470 = vmatpush1.bf16.msra.mxu0 0
        %471 = vmatprep.subr.bf16.mxu0 0
        %472 = vmatpush1.bf16.msra.mxu0 0
        %473 = vmatprep.subr.bf16.mxu0 0
        %474 = vmatpush1.bf16.msra.mxu0 0
        %475 = vmatprep.subr.bf16.mxu0 0
        %476 = vmatpush1.bf16.msra.mxu0 0
        %477 = vmatprep.subr.bf16.mxu0 0
        %478 = vmatpush1.bf16.msra.mxu0 0
        %479 = vmatprep.subr.bf16.mxu0 0
        %480 = vmatpush1.bf16.msra.mxu0 0
        %481 = vmatprep.subr.bf16.mxu0 0
        %482 = vmatpush1.bf16.msra.mxu0 0
        %483 = vmatprep.subr.bf16.mxu0 0
        %484 = vmatpush1.bf16.msra.mxu0 0
        %485 = vmatprep.subr.bf16.mxu0 0
        %486 = vmatpush1.bf16.msra.mxu0 0
        %487 = vmatprep.subr.bf16.mxu0 0
        %488 = vmatpush1.bf16.msra.mxu0 0
        %489 = vmatprep.subr.bf16.mxu0 0
        %490 = vmatpush1.bf16.msra.mxu0 0
        %491 = vmatprep.subr.bf16.mxu0 0
        %492 = vmatpush1.bf16.msra.mxu0 0
        %493 = vmatprep.subr.bf16.mxu0 0
        %494 = vmatpush1.bf16.msra.mxu0 0
        %495 = vmatprep.mubr.bf16.mxu0 0
        %496 = vmatmul.mubr.bf16.gmra.mrb[0].mxu0 %v367
        %v497 = vpop.f32.mrb[0].mxu0
        %v498 = vadd.f32 0.0, %v497
        %v499 = vpop.f32.mrb[0].mxu0
        %v500 = vadd.f32 0.0, %v499
        %v501 = vpop.f32.mrb[0].mxu0
        %v502 = vadd.f32 0.0, %v501
        %v503 = vpop.f32.mrb[0].mxu0
        %v504 = vadd.f32 0.0, %v503
        %505 = vmatprep.mubr.bf16.mxu0 0
        %506 = vmatmul.mubr.bf16.gmra.mrb[0].mxu0 %v370
        %v507 = vpop.f32.mrb[0].mxu0
        %v508 = vadd.f32 0.0, %v507
        %v509 = vpop.f32.mrb[0].mxu0
        %v510 = vadd.f32 0.0, %v509
        %v511 = vpop.f32.mrb[0].mxu0
        %v512 = vadd.f32 0.0, %v511
        %v513 = vpop.f32.mrb[0].mxu0
        %v514 = vadd.f32 0.0, %v513
        %515 = vmatprep.mubr.bf16.mxu0 0
        %516 = vmatmul.mubr.bf16.gmra.mrb[0].mxu0 %v373
        %v517 = vpop.f32.mrb[0].mxu0
        %v518 = vadd.f32 0.0, %v517
        %v519 = vpop.f32.mrb[0].mxu0
        %v520 = vadd.f32 0.0, %v519
        %v521 = vpop.f32.mrb[0].mxu0
        %v522 = vadd.f32 0.0, %v521
        %v523 = vpop.f32.mrb[0].mxu0
        %v524 = vadd.f32 0.0, %v523
        %525 = vmatprep.mubr.bf16.mxu0 0
        %526 = vmatmul.mubr.bf16.gmra.mrb[0].mxu0 %v376
        %v527 = vpop.f32.mrb[0].mxu0
        %v528 = vadd.f32 0.0, %v527
        %v529 = vpop.f32.mrb[0].mxu0
        %v530 = vadd.f32 0.0, %v529
        %v531 = vpop.f32.mrb[0].mxu0
        %v532 = vadd.f32 0.0, %v531
        %v533 = vpop.f32.mrb[0].mxu0
        %v534 = vadd.f32 0.0, %v533
        %535 = vmatprep.mubr.bf16.mxu0 0
        %536 = vmatmul.mubr.bf16.gmra.mrb[0].mxu0 %v379
        %v537 = vpop.f32.mrb[0].mxu0
        %v538 = vadd.f32 0.0, %v537
        %v539 = vpop.f32.mrb[0].mxu0
        %v540 = vadd.f32 0.0, %v539
        %v541 = vpop.f32.mrb[0].mxu0
        %v542 = vadd.f32 0.0, %v541
        %v543 = vpop.f32.mrb[0].mxu0
        %v544 = vadd.f32 0.0, %v543
        %545 = vmatprep.mubr.bf16.mxu0 0
        %546 = vmatmul.mubr.bf16.gmra.mrb[0].mxu0 %v382
        %v547 = vpop.f32.mrb[0].mxu0
        %v548 = vadd.f32 0.0, %v547
        %v549 = vpop.f32.mrb[0].mxu0
        %v550 = vadd.f32 0.0, %v549
        %v551 = vpop.f32.mrb[0].mxu0
        %v552 = vadd.f32 0.0, %v551
        %v553 = vpop.f32.mrb[0].mxu0
        %v554 = vadd.f32 0.0, %v553
        %555 = vmatprep.mubr.bf16.mxu0 0
        %556 = vmatmul.mubr.bf16.gmra.mrb[0].mxu0 %v385
        %v557 = vpop.f32.mrb[0].mxu0
        %v558 = vadd.f32 0.0, %v557
        %v559 = vpop.f32.mrb[0].mxu0
        %v560 = vadd.f32 0.0, %v559
        %v561 = vpop.f32.mrb[0].mxu0
        %v562 = vadd.f32 0.0, %v561
        %v563 = vpop.f32.mrb[0].mxu0
        %v564 = vadd.f32 0.0, %v563
        %565 = vmatprep.mubr.bf16.mxu0 0
        %566 = vmatmul.mubr.bf16.gmra.mrb[0].mxu0 %v388
        %v567 = vpop.f32.mrb[0].mxu0
        %v568 = vadd.f32 0.0, %v567
        %v569 = vpop.f32.mrb[0].mxu0
        %v570 = vadd.f32 0.0, %v569
        %v571 = vpop.f32.mrb[0].mxu0
        %v572 = vadd.f32 0.0, %v571
        %v573 = vpop.f32.mrb[0].mxu0
        %v574 = vadd.f32 0.0, %v573
        %575 = vmatprep.mubr.bf16.mxu0 0
        %576 = vmatmul.mubr.bf16.gmra.mrb[0].mxu0 %v391
        %v577 = vpop.f32.mrb[0].mxu0
        %v578 = vadd.f32 0.0, %v577
        %v579 = vpop.f32.mrb[0].mxu0
        %v580 = vadd.f32 0.0, %v579
        %v581 = vpop.f32.mrb[0].mxu0
        %v582 = vadd.f32 0.0, %v581
        %v583 = vpop.f32.mrb[0].mxu0
        %v584 = vadd.f32 0.0, %v583
        %585 = vmatprep.mubr.bf16.mxu0 0
        %586 = vmatmul.mubr.bf16.gmra.mrb[0].mxu0 %v394
        %v587 = vpop.f32.mrb[0].mxu0
        %v588 = vadd.f32 0.0, %v587
        %v589 = vpop.f32.mrb[0].mxu0
        %v590 = vadd.f32 0.0, %v589
        %v591 = vpop.f32.mrb[0].mxu0
        %v592 = vadd.f32 0.0, %v591
        %v593 = vpop.f32.mrb[0].mxu0
        %v594 = vadd.f32 0.0, %v593
        %595 = vmatprep.mubr.bf16.mxu0 0
        %596 = vmatmul.mubr.bf16.gmra.mrb[0].mxu0 %v397
        %v597 = vpop.f32.mrb[0].mxu0
        %v598 = vadd.f32 0.0, %v597
        %v599 = vpop.f32.mrb[0].mxu0
        %v600 = vadd.f32 0.0, %v599
        %v601 = vpop.f32.mrb[0].mxu0
        %v602 = vadd.f32 0.0, %v601
        %v603 = vpop.f32.mrb[0].mxu0
        %v604 = vadd.f32 0.0, %v603
        %605 = vmatprep.mubr.bf16.mxu0 0
        %606 = vmatmul.mubr.bf16.gmra.mrb[0].mxu0 %v400
        %v607 = vpop.f32.mrb[0].mxu0
        %v608 = vadd.f32 0.0, %v607
        %v609 = vpop.f32.mrb[0].mxu0
        %v610 = vadd.f32 0.0, %v609
        %v611 = vpop.f32.mrb[0].mxu0
        %v612 = vadd.f32 0.0, %v611
        %v613 = vpop.f32.mrb[0].mxu0
        %v614 = vadd.f32 0.0, %v613
        %615 = vmatprep.mubr.bf16.mxu0 0
        %616 = vmatmul.mubr.bf16.gmra.mrb[0].mxu0 %v403
        %v617 = vpop.f32.mrb[0].mxu0
        %v618 = vadd.f32 0.0, %v617
        %v619 = vpop.f32.mrb[0].mxu0
        %v620 = vadd.f32 0.0, %v619
        %v621 = vpop.f32.mrb[0].mxu0
        %v622 = vadd.f32 0.0, %v621
        %v623 = vpop.f32.mrb[0].mxu0
        %v624 = vadd.f32 0.0, %v623
        %625 = vmatprep.mubr.bf16.mxu0 0
        %626 = vmatmul.mubr.bf16.gmra.mrb[0].mxu0 %v406
        %v627 = vpop.f32.mrb[0].mxu0
        %v628 = vadd.f32 0.0, %v627
        %v629 = vpop.f32.mrb[0].mxu0
        %v630 = vadd.f32 0.0, %v629
        %v631 = vpop.f32.mrb[0].mxu0
        %v632 = vadd.f32 0.0, %v631
        %v633 = vpop.f32.mrb[0].mxu0
        %v634 = vadd.f32 0.0, %v633
        %635 = vmatprep.mubr.bf16.mxu0 0
        %636 = vmatmul.mubr.bf16.gmra.mrb[0].mxu0 %v409
        %v637 = vpop.f32.mrb[0].mxu0
        %v638 = vadd.f32 0.0, %v637
        %v639 = vpop.f32.mrb[0].mxu0
        %v640 = vadd.f32 0.0, %v639
        %v641 = vpop.f32.mrb[0].mxu0
        %v642 = vadd.f32 0.0, %v641
        %v643 = vpop.f32.mrb[0].mxu0
        %v644 = vadd.f32 0.0, %v643
        %645 = vmatprep.mubr.bf16.mxu0 0
        %646 = vmatmul.mubr.bf16.gmra.mrb[0].mxu0 %v412
        %v647 = vpop.f32.mrb[0].mxu0
        %v648 = vadd.f32 0.0, %v647
        %v649 = vpop.f32.mrb[0].mxu0
        %v650 = vadd.f32 0.0, %v649
        %v651 = vpop.f32.mrb[0].mxu0
        %v652 = vadd.f32 0.0, %v651
        %v653 = vpop.f32.mrb[0].mxu0
        %v654 = vadd.f32 0.0, %v653
        %655 = vdwg.mxu0
        %656 = vmatprep.subr.bf16.mxu0 %v425
        %657 = vmatpush1.bf16.msra.mxu0 %v422
        %658 = vmatprep.subr.bf16.mxu0 0
        %659 = vmatpush1.bf16.msra.mxu0 0
        %660 = vmatprep.subr.bf16.mxu0 0
        %661 = vmatpush1.bf16.msra.mxu0 0
        %662 = vmatprep.subr.bf16.mxu0 0
        %663 = vmatpush1.bf16.msra.mxu0 0
        %664 = vmatprep.subr.bf16.mxu0 0
        %665 = vmatpush1.bf16.msra.mxu0 0
        %666 = vmatprep.subr.bf16.mxu0 0
        %667 = vmatpush1.bf16.msra.mxu0 0
        %668 = vmatprep.subr.bf16.mxu0 0
        %669 = vmatpush1.bf16.msra.mxu0 0
        %670 = vmatprep.subr.bf16.mxu0 0
        %671 = vmatpush1.bf16.msra.mxu0 0
        %672 = vmatprep.subr.bf16.mxu0 0
        %673 = vmatpush1.bf16.msra.mxu0 0
        %674 = vmatprep.subr.bf16.mxu0 0
        %675 = vmatpush1.bf16.msra.mxu0 0
        %676 = vmatprep.subr.bf16.mxu0 0
        %677 = vmatpush1.bf16.msra.mxu0 0
        %678 = vmatprep.subr.bf16.mxu0 0
        %679 = vmatpush1.bf16.msra.mxu0 0
        %680 = vmatprep.subr.bf16.mxu0 0
        %681 = vmatpush1.bf16.msra.mxu0 0
        %682 = vmatprep.subr.bf16.mxu0 0
        %683 = vmatpush1.bf16.msra.mxu0 0
        %684 = vmatprep.subr.bf16.mxu0 0
        %685 = vmatpush1.bf16.msra.mxu0 0
        %686 = vmatprep.subr.bf16.mxu0 0
        %687 = vmatpush1.bf16.msra.mxu0 0
        %688 = vmatprep.mubr.bf16.mxu0 0
        %689 = vmatmul.mubr.bf16.gmra.mrb[0].mxu0 %v367
        %v690 = vpop.f32.mrb[0].mxu0
        %v691 = vadd.f32 0.0, %v690
        %v692 = vpop.f32.mrb[0].mxu0
        %v693 = vadd.f32 0.0, %v692
        %v694 = vpop.f32.mrb[0].mxu0
        %v695 = vadd.f32 0.0, %v694
        %v696 = vpop.f32.mrb[0].mxu0
        %v697 = vadd.f32 0.0, %v696
        %698 = vmatprep.mubr.bf16.mxu0 0
        %699 = vmatmul.mubr.bf16.gmra.mrb[0].mxu0 %v370
        %v700 = vpop.f32.mrb[0].mxu0
        %v701 = vadd.f32 0.0, %v700
        %v702 = vpop.f32.mrb[0].mxu0
        %v703 = vadd.f32 0.0, %v702
        %v704 = vpop.f32.mrb[0].mxu0
        %v705 = vadd.f32 0.0, %v704
        %v706 = vpop.f32.mrb[0].mxu0
        %v707 = vadd.f32 0.0, %v706
        %708 = vmatprep.mubr.bf16.mxu0 0
        %709 = vmatmul.mubr.bf16.gmra.mrb[0].mxu0 %v373
        %v710 = vpop.f32.mrb[0].mxu0
        %v711 = vadd.f32 0.0, %v710
        %v712 = vpop.f32.mrb[0].mxu0
        %v713 = vadd.f32 0.0, %v712
        %v714 = vpop.f32.mrb[0].mxu0
        %v715 = vadd.f32 0.0, %v714
        %v716 = vpop.f32.mrb[0].mxu0
        %v717 = vadd.f32 0.0, %v716
        %718 = vmatprep.mubr.bf16.mxu0 0
        %719 = vmatmul.mubr.bf16.gmra.mrb[0].mxu0 %v376
        %v720 = vpop.f32.mrb[0].mxu0
        %v721 = vadd.f32 0.0, %v720
        %v722 = vpop.f32.mrb[0].mxu0
        %v723 = vadd.f32 0.0, %v722
        %v724 = vpop.f32.mrb[0].mxu0
        %v725 = vadd.f32 0.0, %v724
        %v726 = vpop.f32.mrb[0].mxu0
        %v727 = vadd.f32 0.0, %v726
        %728 = vmatprep.mubr.bf16.mxu0 0
        %729 = vmatmul.mubr.bf16.gmra.mrb[0].mxu0 %v379
        %v730 = vpop.f32.mrb[0].mxu0
        %v731 = vadd.f32 0.0, %v730
        %v732 = vpop.f32.mrb[0].mxu0
        %v733 = vadd.f32 0.0, %v732
        %v734 = vpop.f32.mrb[0].mxu0
        %v735 = vadd.f32 0.0, %v734
        %v736 = vpop.f32.mrb[0].mxu0
        %v737 = vadd.f32 0.0, %v736
        %738 = vmatprep.mubr.bf16.mxu0 0
        %739 = vmatmul.mubr.bf16.gmra.mrb[0].mxu0 %v382
        %v740 = vpop.f32.mrb[0].mxu0
        %v741 = vadd.f32 0.0, %v740
        %v742 = vpop.f32.mrb[0].mxu0
        %v743 = vadd.f32 0.0, %v742
        %v744 = vpop.f32.mrb[0].mxu0
        %v745 = vadd.f32 0.0, %v744
        %v746 = vpop.f32.mrb[0].mxu0
        %v747 = vadd.f32 0.0, %v746
        %748 = vmatprep.mubr.bf16.mxu0 0
        %749 = vmatmul.mubr.bf16.gmra.mrb[0].mxu0 %v385
        %v750 = vpop.f32.mrb[0].mxu0
        %v751 = vadd.f32 0.0, %v750
        %v752 = vpop.f32.mrb[0].mxu0
        %v753 = vadd.f32 0.0, %v752
        %v754 = vpop.f32.mrb[0].mxu0
        %v755 = vadd.f32 0.0, %v754
        %v756 = vpop.f32.mrb[0].mxu0
        %v757 = vadd.f32 0.0, %v756
        %758 = vmatprep.mubr.bf16.mxu0 0
        %759 = vmatmul.mubr.bf16.gmra.mrb[0].mxu0 %v388
        %v760 = vpop.f32.mrb[0].mxu0
        %v761 = vadd.f32 0.0, %v760
        %v762 = vpop.f32.mrb[0].mxu0
        %v763 = vadd.f32 0.0, %v762
        %v764 = vpop.f32.mrb[0].mxu0
        %v765 = vadd.f32 0.0, %v764
        %v766 = vpop.f32.mrb[0].mxu0
        %v767 = vadd.f32 0.0, %v766
        %768 = vmatprep.mubr.bf16.mxu0 0
        %769 = vmatmul.mubr.bf16.gmra.mrb[0].mxu0 %v391
        %v770 = vpop.f32.mrb[0].mxu0
        %v771 = vadd.f32 0.0, %v770
        %v772 = vpop.f32.mrb[0].mxu0
        %v773 = vadd.f32 0.0, %v772
        %v774 = vpop.f32.mrb[0].mxu0
        %v775 = vadd.f32 0.0, %v774
        %v776 = vpop.f32.mrb[0].mxu0
        %v777 = vadd.f32 0.0, %v776
        %778 = vmatprep.mubr.bf16.mxu0 0
        %779 = vmatmul.mubr.bf16.gmra.mrb[0].mxu0 %v394
        %v780 = vpop.f32.mrb[0].mxu0
        %v781 = vadd.f32 0.0, %v780
        %v782 = vpop.f32.mrb[0].mxu0
        %v783 = vadd.f32 0.0, %v782
        %v784 = vpop.f32.mrb[0].mxu0
        %v785 = vadd.f32 0.0, %v784
        %v786 = vpop.f32.mrb[0].mxu0
        %v787 = vadd.f32 0.0, %v786
        %788 = vmatprep.mubr.bf16.mxu0 0
        %789 = vmatmul.mubr.bf16.gmra.mrb[0].mxu0 %v397
        %v790 = vpop.f32.mrb[0].mxu0
        %v791 = vadd.f32 0.0, %v790
        %v792 = vpop.f32.mrb[0].mxu0
        %v793 = vadd.f32 0.0, %v792
        %v794 = vpop.f32.mrb[0].mxu0
        %v795 = vadd.f32 0.0, %v794
        %v796 = vpop.f32.mrb[0].mxu0
        %v797 = vadd.f32 0.0, %v796
        %798 = vmatprep.mubr.bf16.mxu0 0
        %799 = vmatmul.mubr.bf16.gmra.mrb[0].mxu0 %v400
        %v800 = vpop.f32.mrb[0].mxu0
        %v801 = vadd.f32 0.0, %v800
        %v802 = vpop.f32.mrb[0].mxu0
        %v803 = vadd.f32 0.0, %v802
        %v804 = vpop.f32.mrb[0].mxu0
        %v805 = vadd.f32 0.0, %v804
        %v806 = vpop.f32.mrb[0].mxu0
        %v807 = vadd.f32 0.0, %v806
        %808 = vmatprep.mubr.bf16.mxu0 0
        %809 = vmatmul.mubr.bf16.gmra.mrb[0].mxu0 %v403
        %v810 = vpop.f32.mrb[0].mxu0
        %v811 = vadd.f32 0.0, %v810
        %v812 = vpop.f32.mrb[0].mxu0
        %v813 = vadd.f32 0.0, %v812
        %v814 = vpop.f32.mrb[0].mxu0
        %v815 = vadd.f32 0.0, %v814
        %v816 = vpop.f32.mrb[0].mxu0
        %v817 = vadd.f32 0.0, %v816
        %818 = vmatprep.mubr.bf16.mxu0 0
        %819 = vmatmul.mubr.bf16.gmra.mrb[0].mxu0 %v406
        %v820 = vpop.f32.mrb[0].mxu0
        %v821 = vadd.f32 0.0, %v820
        %v822 = vpop.f32.mrb[0].mxu0
        %v823 = vadd.f32 0.0, %v822
        %v824 = vpop.f32.mrb[0].mxu0
        %v825 = vadd.f32 0.0, %v824
        %v826 = vpop.f32.mrb[0].mxu0
        %v827 = vadd.f32 0.0, %v826
        %828 = vmatprep.mubr.bf16.mxu0 0
        %829 = vmatmul.mubr.bf16.gmra.mrb[0].mxu0 %v409
        %v830 = vpop.f32.mrb[0].mxu0
        %v831 = vadd.f32 0.0, %v830
        %v832 = vpop.f32.mrb[0].mxu0
        %v833 = vadd.f32 0.0, %v832
        %v834 = vpop.f32.mrb[0].mxu0
        %v835 = vadd.f32 0.0, %v834
        %v836 = vpop.f32.mrb[0].mxu0
        %v837 = vadd.f32 0.0, %v836
        %838 = vmatprep.mubr.bf16.mxu0 0
        %839 = vmatmul.mubr.bf16.gmra.mrb[0].mxu0 %v412
        %v840 = vpop.f32.mrb[0].mxu0
        %v841 = vadd.f32 0.0, %v840
        %v842 = vpop.f32.mrb[0].mxu0
        %v843 = vadd.f32 0.0, %v842
        %v844 = vpop.f32.mrb[0].mxu0
        %v845 = vadd.f32 0.0, %v844
        %v846 = vpop.f32.mrb[0].mxu0
        %v847 = vadd.f32 0.0, %v846
        %848 = vdwg.mxu0
        %849 = vmatprep.subr.bf16.mxu0 %v431
        %850 = vmatpush1.bf16.msra.mxu0 %v428
        %851 = vmatprep.subr.bf16.mxu0 0
        %852 = vmatpush1.bf16.msra.mxu0 0
        %853 = vmatprep.subr.bf16.mxu0 0
        %854 = vmatpush1.bf16.msra.mxu0 0
        %855 = vmatprep.subr.bf16.mxu0 0
        %856 = vmatpush1.bf16.msra.mxu0 0
        %857 = vmatprep.subr.bf16.mxu0 0
        %858 = vmatpush1.bf16.msra.mxu0 0
        %859 = vmatprep.subr.bf16.mxu0 0
        %860 = vmatpush1.bf16.msra.mxu0 0
        %861 = vmatprep.subr.bf16.mxu0 0
        %862 = vmatpush1.bf16.msra.mxu0 0
        %863 = vmatprep.subr.bf16.mxu0 0
        %864 = vmatpush1.bf16.msra.mxu0 0
        %865 = vmatprep.subr.bf16.mxu0 0
        %866 = vmatpush1.bf16.msra.mxu0 0
        %867 = vmatprep.subr.bf16.mxu0 0
        %868 = vmatpush1.bf16.msra.mxu0 0
        %869 = vmatprep.subr.bf16.mxu0 0
        %870 = vmatpush1.bf16.msra.mxu0 0
        %871 = vmatprep.subr.bf16.mxu0 0
        %872 = vmatpush1.bf16.msra.mxu0 0
        %873 = vmatprep.subr.bf16.mxu0 0
        %874 = vmatpush1.bf16.msra.mxu0 0
        %875 = vmatprep.subr.bf16.mxu0 0
        %876 = vmatpush1.bf16.msra.mxu0 0
        %877 = vmatprep.subr.bf16.mxu0 0
        %878 = vmatpush1.bf16.msra.mxu0 0
        %879 = vmatprep.subr.bf16.mxu0 0
        %880 = vmatpush1.bf16.msra.mxu0 0
        %881 = vmatprep.mubr.bf16.mxu0 0
        %882 = vmatmul.mubr.bf16.gmra.mrb[0].mxu0 %v367
        %v883 = vpop.f32.mrb[0].mxu0
        %v884 = vadd.f32 0.0, %v883
        %v885 = vpop.f32.mrb[0].mxu0
        %v886 = vadd.f32 0.0, %v885
        %v887 = vpop.f32.mrb[0].mxu0
        %v888 = vadd.f32 0.0, %v887
        %v889 = vpop.f32.mrb[0].mxu0
        %v890 = vadd.f32 0.0, %v889
        %891 = vmatprep.mubr.bf16.mxu0 0
        %892 = vmatmul.mubr.bf16.gmra.mrb[0].mxu0 %v370
        %v893 = vpop.f32.mrb[0].mxu0
        %v894 = vadd.f32 0.0, %v893
        %v895 = vpop.f32.mrb[0].mxu0
        %v896 = vadd.f32 0.0, %v895
        %v897 = vpop.f32.mrb[0].mxu0
        %v898 = vadd.f32 0.0, %v897
        %v899 = vpop.f32.mrb[0].mxu0
        %v900 = vadd.f32 0.0, %v899
        %901 = vmatprep.mubr.bf16.mxu0 0
        %902 = vmatmul.mubr.bf16.gmra.mrb[0].mxu0 %v373
        %v903 = vpop.f32.mrb[0].mxu0
        %v904 = vadd.f32 0.0, %v903
        %v905 = vpop.f32.mrb[0].mxu0
        %v906 = vadd.f32 0.0, %v905
        %v907 = vpop.f32.mrb[0].mxu0
        %v908 = vadd.f32 0.0, %v907
        %v909 = vpop.f32.mrb[0].mxu0
        %v910 = vadd.f32 0.0, %v909
        %911 = vmatprep.mubr.bf16.mxu0 0
        %912 = vmatmul.mubr.bf16.gmra.mrb[0].mxu0 %v376
        %v913 = vpop.f32.mrb[0].mxu0
        %v914 = vadd.f32 0.0, %v913
        %v915 = vpop.f32.mrb[0].mxu0
        %v916 = vadd.f32 0.0, %v915
        %v917 = vpop.f32.mrb[0].mxu0
        %v918 = vadd.f32 0.0, %v917
        %v919 = vpop.f32.mrb[0].mxu0
        %v920 = vadd.f32 0.0, %v919
        %921 = vmatprep.mubr.bf16.mxu0 0
        %922 = vmatmul.mubr.bf16.gmra.mrb[0].mxu0 %v379
        %v923 = vpop.f32.mrb[0].mxu0
        %v924 = vadd.f32 0.0, %v923
        %v925 = vpop.f32.mrb[0].mxu0
        %v926 = vadd.f32 0.0, %v925
        %v927 = vpop.f32.mrb[0].mxu0
        %v928 = vadd.f32 0.0, %v927
        %v929 = vpop.f32.mrb[0].mxu0
        %v930 = vadd.f32 0.0, %v929
        %931 = vmatprep.mubr.bf16.mxu0 0
        %932 = vmatmul.mubr.bf16.gmra.mrb[0].mxu0 %v382
        %v933 = vpop.f32.mrb[0].mxu0
        %v934 = vadd.f32 0.0, %v933
        %v935 = vpop.f32.mrb[0].mxu0
        %v936 = vadd.f32 0.0, %v935
        %v937 = vpop.f32.mrb[0].mxu0
        %v938 = vadd.f32 0.0, %v937
        %v939 = vpop.f32.mrb[0].mxu0
        %v940 = vadd.f32 0.0, %v939
        %941 = vmatprep.mubr.bf16.mxu0 0
        %942 = vmatmul.mubr.bf16.gmra.mrb[0].mxu0 %v385
        %v943 = vpop.f32.mrb[0].mxu0
        %v944 = vadd.f32 0.0, %v943
        %v945 = vpop.f32.mrb[0].mxu0
        %v946 = vadd.f32 0.0, %v945
        %v947 = vpop.f32.mrb[0].mxu0
        %v948 = vadd.f32 0.0, %v947
        %v949 = vpop.f32.mrb[0].mxu0
        %v950 = vadd.f32 0.0, %v949
        %951 = vmatprep.mubr.bf16.mxu0 0
        %952 = vmatmul.mubr.bf16.gmra.mrb[0].mxu0 %v388
        %v953 = vpop.f32.mrb[0].mxu0
        %v954 = vadd.f32 0.0, %v953
        %v955 = vpop.f32.mrb[0].mxu0
        %v956 = vadd.f32 0.0, %v955
        %v957 = vpop.f32.mrb[0].mxu0
        %v958 = vadd.f32 0.0, %v957
        %v959 = vpop.f32.mrb[0].mxu0
        %v960 = vadd.f32 0.0, %v959
        %961 = vmatprep.mubr.bf16.mxu0 0
        %962 = vmatmul.mubr.bf16.gmra.mrb[0].mxu0 %v391
        %v963 = vpop.f32.mrb[0].mxu0
        %v964 = vadd.f32 0.0, %v963
        %v965 = vpop.f32.mrb[0].mxu0
        %v966 = vadd.f32 0.0, %v965
        %v967 = vpop.f32.mrb[0].mxu0
        %v968 = vadd.f32 0.0, %v967
        %v969 = vpop.f32.mrb[0].mxu0
        %v970 = vadd.f32 0.0, %v969
        %971 = vmatprep.mubr.bf16.mxu0 0
        %972 = vmatmul.mubr.bf16.gmra.mrb[0].mxu0 %v394
        %v973 = vpop.f32.mrb[0].mxu0
        %v974 = vadd.f32 0.0, %v973
        %v975 = vpop.f32.mrb[0].mxu0
        %v976 = vadd.f32 0.0, %v975
        %v977 = vpop.f32.mrb[0].mxu0
        %v978 = vadd.f32 0.0, %v977
        %v979 = vpop.f32.mrb[0].mxu0
        %v980 = vadd.f32 0.0, %v979
        %981 = vmatprep.mubr.bf16.mxu0 0
        %982 = vmatmul.mubr.bf16.gmra.mrb[0].mxu0 %v397
        %v983 = vpop.f32.mrb[0].mxu0
        %v984 = vadd.f32 0.0, %v983
        %v985 = vpop.f32.mrb[0].mxu0
        %v986 = vadd.f32 0.0, %v985
        %v987 = vpop.f32.mrb[0].mxu0
        %v988 = vadd.f32 0.0, %v987
        %v989 = vpop.f32.mrb[0].mxu0
        %v990 = vadd.f32 0.0, %v989
        %991 = vmatprep.mubr.bf16.mxu0 0
        %992 = vmatmul.mubr.bf16.gmra.mrb[0].mxu0 %v400
        %v993 = vpop.f32.mrb[0].mxu0
        %v994 = vadd.f32 0.0, %v993
        %v995 = vpop.f32.mrb[0].mxu0
        %v996 = vadd.f32 0.0, %v995
        %v997 = vpop.f32.mrb[0].mxu0
        %v998 = vadd.f32 0.0, %v997
        %v999 = vpop.f32.mrb[0].mxu0
        %v1000 = vadd.f32 0.0, %v999
        %1001 = vmatprep.mubr.bf16.mxu0 0
        %1002 = vmatmul.mubr.bf16.gmra.mrb[0].mxu0 %v403
        %v1003 = vpop.f32.mrb[0].mxu0
        %v1004 = vadd.f32 0.0, %v1003
        %v1005 = vpop.f32.mrb[0].mxu0
        %v1006 = vadd.f32 0.0, %v1005
        %v1007 = vpop.f32.mrb[0].mxu0
        %v1008 = vadd.f32 0.0, %v1007
        %v1009 = vpop.f32.mrb[0].mxu0
        %v1010 = vadd.f32 0.0, %v1009
        %1011 = vmatprep.mubr.bf16.mxu0 0
        %1012 = vmatmul.mubr.bf16.gmra.mrb[0].mxu0 %v406
        %v1013 = vpop.f32.mrb[0].mxu0
        %v1014 = vadd.f32 0.0, %v1013
        %v1015 = vpop.f32.mrb[0].mxu0
        %v1016 = vadd.f32 0.0, %v1015
        %v1017 = vpop.f32.mrb[0].mxu0
        %v1018 = vadd.f32 0.0, %v1017
        %v1019 = vpop.f32.mrb[0].mxu0
        %v1020 = vadd.f32 0.0, %v1019
        %1021 = vmatprep.mubr.bf16.mxu0 0
        %1022 = vmatmul.mubr.bf16.gmra.mrb[0].mxu0 %v409
        %v1023 = vpop.f32.mrb[0].mxu0
        %v1024 = vadd.f32 0.0, %v1023
        %v1025 = vpop.f32.mrb[0].mxu0
        %v1026 = vadd.f32 0.0, %v1025
        %v1027 = vpop.f32.mrb[0].mxu0
        %v1028 = vadd.f32 0.0, %v1027
        %v1029 = vpop.f32.mrb[0].mxu0
        %v1030 = vadd.f32 0.0, %v1029
        %1031 = vmatprep.mubr.bf16.mxu0 0
        %1032 = vmatmul.mubr.bf16.gmra.mrb[0].mxu0 %v412
        %v1033 = vpop.f32.mrb[0].mxu0
        %v1034 = vadd.f32 0.0, %v1033
        %v1035 = vpop.f32.mrb[0].mxu0
        %v1036 = vadd.f32 0.0, %v1035
        %v1037 = vpop.f32.mrb[0].mxu0
        %v1038 = vadd.f32 0.0, %v1037
        %v1039 = vpop.f32.mrb[0].mxu0
        %v1040 = vadd.f32 0.0, %v1039
        %1041 = vdwg.mxu0
        %1042 = vmatprep.subr.bf16.mxu0 %v437
        %1043 = vmatpush1.bf16.msra.mxu0 %v434
        %1044 = vmatprep.subr.bf16.mxu0 0
        %1045 = vmatpush1.bf16.msra.mxu0 0
        %1046 = vmatprep.subr.bf16.mxu0 0
        %1047 = vmatpush1.bf16.msra.mxu0 0
        %1048 = vmatprep.subr.bf16.mxu0 0
        %1049 = vmatpush1.bf16.msra.mxu0 0
        %1050 = vmatprep.subr.bf16.mxu0 0
        %1051 = vmatpush1.bf16.msra.mxu0 0
        %1052 = vmatprep.subr.bf16.mxu0 0
        %1053 = vmatpush1.bf16.msra.mxu0 0
        %1054 = vmatprep.subr.bf16.mxu0 0
        %1055 = vmatpush1.bf16.msra.mxu0 0
        %1056 = vmatprep.subr.bf16.mxu0 0
        %1057 = vmatpush1.bf16.msra.mxu0 0
        %1058 = vmatprep.subr.bf16.mxu0 0
        %1059 = vmatpush1.bf16.msra.mxu0 0
        %1060 = vmatprep.subr.bf16.mxu0 0
        %1061 = vmatpush1.bf16.msra.mxu0 0
        %1062 = vmatprep.subr.bf16.mxu0 0
        %1063 = vmatpush1.bf16.msra.mxu0 0
        %1064 = vmatprep.subr.bf16.mxu0 0
        %1065 = vmatpush1.bf16.msra.mxu0 0
        %1066 = vmatprep.subr.bf16.mxu0 0
        %1067 = vmatpush1.bf16.msra.mxu0 0
        %1068 = vmatprep.subr.bf16.mxu0 0
        %1069 = vmatpush1.bf16.msra.mxu0 0
        %1070 = vmatprep.subr.bf16.mxu0 0
        %1071 = vmatpush1.bf16.msra.mxu0 0
        %1072 = vmatprep.subr.bf16.mxu0 0
        %1073 = vmatpush1.bf16.msra.mxu0 0
        %1074 = vmatprep.mubr.bf16.mxu0 0
        %1075 = vmatmul.mubr.bf16.gmra.mrb[0].mxu0 %v367
        %v1076 = vpop.f32.mrb[0].mxu0
        %v1077 = vadd.f32 0.0, %v1076
        %v1078 = vpop.f32.mrb[0].mxu0
        %v1079 = vadd.f32 0.0, %v1078
        %v1080 = vpop.f32.mrb[0].mxu0
        %v1081 = vadd.f32 0.0, %v1080
        %v1082 = vpop.f32.mrb[0].mxu0
        %v1083 = vadd.f32 0.0, %v1082
        %1084 = vmatprep.mubr.bf16.mxu0 0
        %1085 = vmatmul.mubr.bf16.gmra.mrb[0].mxu0 %v370
        %v1086 = vpop.f32.mrb[0].mxu0
        %v1087 = vadd.f32 0.0, %v1086
        %v1088 = vpop.f32.mrb[0].mxu0
        %v1089 = vadd.f32 0.0, %v1088
        %v1090 = vpop.f32.mrb[0].mxu0
        %v1091 = vadd.f32 0.0, %v1090
        %v1092 = vpop.f32.mrb[0].mxu0
        %v1093 = vadd.f32 0.0, %v1092
        %1094 = vmatprep.mubr.bf16.mxu0 0
        %1095 = vmatmul.mubr.bf16.gmra.mrb[0].mxu0 %v373
        %v1096 = vpop.f32.mrb[0].mxu0
        %v1097 = vadd.f32 0.0, %v1096
        %v1098 = vpop.f32.mrb[0].mxu0
        %v1099 = vadd.f32 0.0, %v1098
        %v1100 = vpop.f32.mrb[0].mxu0
        %v1101 = vadd.f32 0.0, %v1100
        %v1102 = vpop.f32.mrb[0].mxu0
        %v1103 = vadd.f32 0.0, %v1102
        %1104 = vmatprep.mubr.bf16.mxu0 0
        %1105 = vmatmul.mubr.bf16.gmra.mrb[0].mxu0 %v376
        %v1106 = vpop.f32.mrb[0].mxu0
        %v1107 = vadd.f32 0.0, %v1106
        %v1108 = vpop.f32.mrb[0].mxu0
        %v1109 = vadd.f32 0.0, %v1108
        %v1110 = vpop.f32.mrb[0].mxu0
        %v1111 = vadd.f32 0.0, %v1110
        %v1112 = vpop.f32.mrb[0].mxu0
        %v1113 = vadd.f32 0.0, %v1112
        %1114 = vmatprep.mubr.bf16.mxu0 0
        %1115 = vmatmul.mubr.bf16.gmra.mrb[0].mxu0 %v379
        %v1116 = vpop.f32.mrb[0].mxu0
        %v1117 = vadd.f32 0.0, %v1116
        %v1118 = vpop.f32.mrb[0].mxu0
        %v1119 = vadd.f32 0.0, %v1118
        %v1120 = vpop.f32.mrb[0].mxu0
        %v1121 = vadd.f32 0.0, %v1120
        %v1122 = vpop.f32.mrb[0].mxu0
        %v1123 = vadd.f32 0.0, %v1122
        %1124 = vmatprep.mubr.bf16.mxu0 0
        %1125 = vmatmul.mubr.bf16.gmra.mrb[0].mxu0 %v382
        %v1126 = vpop.f32.mrb[0].mxu0
        %v1127 = vadd.f32 0.0, %v1126
        %v1128 = vpop.f32.mrb[0].mxu0
        %v1129 = vadd.f32 0.0, %v1128
        %v1130 = vpop.f32.mrb[0].mxu0
        %v1131 = vadd.f32 0.0, %v1130
        %v1132 = vpop.f32.mrb[0].mxu0
        %v1133 = vadd.f32 0.0, %v1132
        %1134 = vmatprep.mubr.bf16.mxu0 0
        %1135 = vmatmul.mubr.bf16.gmra.mrb[0].mxu0 %v385
        %v1136 = vpop.f32.mrb[0].mxu0
        %v1137 = vadd.f32 0.0, %v1136
        %v1138 = vpop.f32.mrb[0].mxu0
        %v1139 = vadd.f32 0.0, %v1138
        %v1140 = vpop.f32.mrb[0].mxu0
        %v1141 = vadd.f32 0.0, %v1140
        %v1142 = vpop.f32.mrb[0].mxu0
        %v1143 = vadd.f32 0.0, %v1142
        %1144 = vmatprep.mubr.bf16.mxu0 0
        %1145 = vmatmul.mubr.bf16.gmra.mrb[0].mxu0 %v388
        %v1146 = vpop.f32.mrb[0].mxu0
        %v1147 = vadd.f32 0.0, %v1146
        %v1148 = vpop.f32.mrb[0].mxu0
        %v1149 = vadd.f32 0.0, %v1148
        %v1150 = vpop.f32.mrb[0].mxu0
        %v1151 = vadd.f32 0.0, %v1150
        %v1152 = vpop.f32.mrb[0].mxu0
        %v1153 = vadd.f32 0.0, %v1152
        %1154 = vmatprep.mubr.bf16.mxu0 0
        %1155 = vmatmul.mubr.bf16.gmra.mrb[0].mxu0 %v391
        %v1156 = vpop.f32.mrb[0].mxu0
        %v1157 = vadd.f32 0.0, %v1156
        %v1158 = vpop.f32.mrb[0].mxu0
        %v1159 = vadd.f32 0.0, %v1158
        %v1160 = vpop.f32.mrb[0].mxu0
        %v1161 = vadd.f32 0.0, %v1160
        %v1162 = vpop.f32.mrb[0].mxu0
        %v1163 = vadd.f32 0.0, %v1162
        %1164 = vmatprep.mubr.bf16.mxu0 0
        %1165 = vmatmul.mubr.bf16.gmra.mrb[0].mxu0 %v394
        %v1166 = vpop.f32.mrb[0].mxu0
        %v1167 = vadd.f32 0.0, %v1166
        %v1168 = vpop.f32.mrb[0].mxu0
        %v1169 = vadd.f32 0.0, %v1168
        %v1170 = vpop.f32.mrb[0].mxu0
        %v1171 = vadd.f32 0.0, %v1170
        %v1172 = vpop.f32.mrb[0].mxu0
        %v1173 = vadd.f32 0.0, %v1172
        %1174 = vmatprep.mubr.bf16.mxu0 0
        %1175 = vmatmul.mubr.bf16.gmra.mrb[0].mxu0 %v397
        %v1176 = vpop.f32.mrb[0].mxu0
        %v1177 = vadd.f32 0.0, %v1176
        %v1178 = vpop.f32.mrb[0].mxu0
        %v1179 = vadd.f32 0.0, %v1178
        %v1180 = vpop.f32.mrb[0].mxu0
        %v1181 = vadd.f32 0.0, %v1180
        %v1182 = vpop.f32.mrb[0].mxu0
        %v1183 = vadd.f32 0.0, %v1182
        %1184 = vmatprep.mubr.bf16.mxu0 0
        %1185 = vmatmul.mubr.bf16.gmra.mrb[0].mxu0 %v400
        %v1186 = vpop.f32.mrb[0].mxu0
        %v1187 = vadd.f32 0.0, %v1186
        %v1188 = vpop.f32.mrb[0].mxu0
        %v1189 = vadd.f32 0.0, %v1188
        %v1190 = vpop.f32.mrb[0].mxu0
        %v1191 = vadd.f32 0.0, %v1190
        %v1192 = vpop.f32.mrb[0].mxu0
        %v1193 = vadd.f32 0.0, %v1192
        %1194 = vmatprep.mubr.bf16.mxu0 0
        %1195 = vmatmul.mubr.bf16.gmra.mrb[0].mxu0 %v403
        %v1196 = vpop.f32.mrb[0].mxu0
        %v1197 = vadd.f32 0.0, %v1196
        %v1198 = vpop.f32.mrb[0].mxu0
        %v1199 = vadd.f32 0.0, %v1198
        %v1200 = vpop.f32.mrb[0].mxu0
        %v1201 = vadd.f32 0.0, %v1200
        %v1202 = vpop.f32.mrb[0].mxu0
        %v1203 = vadd.f32 0.0, %v1202
        %1204 = vmatprep.mubr.bf16.mxu0 0
        %1205 = vmatmul.mubr.bf16.gmra.mrb[0].mxu0 %v406
        %v1206 = vpop.f32.mrb[0].mxu0
        %v1207 = vadd.f32 0.0, %v1206
        %v1208 = vpop.f32.mrb[0].mxu0
        %v1209 = vadd.f32 0.0, %v1208
        %v1210 = vpop.f32.mrb[0].mxu0
        %v1211 = vadd.f32 0.0, %v1210
        %v1212 = vpop.f32.mrb[0].mxu0
        %v1213 = vadd.f32 0.0, %v1212
        %1214 = vmatprep.mubr.bf16.mxu0 0
        %1215 = vmatmul.mubr.bf16.gmra.mrb[0].mxu0 %v409
        %v1216 = vpop.f32.mrb[0].mxu0
        %v1217 = vadd.f32 0.0, %v1216
        %v1218 = vpop.f32.mrb[0].mxu0
        %v1219 = vadd.f32 0.0, %v1218
        %v1220 = vpop.f32.mrb[0].mxu0
        %v1221 = vadd.f32 0.0, %v1220
        %v1222 = vpop.f32.mrb[0].mxu0
        %v1223 = vadd.f32 0.0, %v1222
        %1224 = vmatprep.mubr.bf16.mxu0 0
        %1225 = vmatmul.mubr.bf16.gmra.mrb[0].mxu0 %v412
        %v1226 = vpop.f32.mrb[0].mxu0
        %v1227 = vadd.f32 0.0, %v1226
        %v1228 = vpop.f32.mrb[0].mxu0
        %v1229 = vadd.f32 0.0, %v1228
        %v1230 = vpop.f32.mrb[0].mxu0
        %v1231 = vadd.f32 0.0, %v1230
        %v1232 = vpop.f32.mrb[0].mxu0
        %v1233 = vadd.f32 0.0, %v1232
        %1234 = vdwg.mxu0
        %1235 = vmatprep.subr.bf16.mxu0 %v443
        %1236 = vmatpush1.bf16.msra.mxu0 %v440
        %1237 = vmatprep.subr.bf16.mxu0 0
        %1238 = vmatpush1.bf16.msra.mxu0 0
        %1239 = vmatprep.subr.bf16.mxu0 0
        %1240 = vmatpush1.bf16.msra.mxu0 0
        %1241 = vmatprep.subr.bf16.mxu0 0
        %1242 = vmatpush1.bf16.msra.mxu0 0
        %1243 = vmatprep.subr.bf16.mxu0 0
        %1244 = vmatpush1.bf16.msra.mxu0 0
        %1245 = vmatprep.subr.bf16.mxu0 0
        %1246 = vmatpush1.bf16.msra.mxu0 0
        %1247 = vmatprep.subr.bf16.mxu0 0
        %1248 = vmatpush1.bf16.msra.mxu0 0
        %1249 = vmatprep.subr.bf16.mxu0 0
        %1250 = vmatpush1.bf16.msra.mxu0 0
        %1251 = vmatprep.subr.bf16.mxu0 0
        %1252 = vmatpush1.bf16.msra.mxu0 0
        %1253 = vmatprep.subr.bf16.mxu0 0
        %1254 = vmatpush1.bf16.msra.mxu0 0
        %1255 = vmatprep.subr.bf16.mxu0 0
        %1256 = vmatpush1.bf16.msra.mxu0 0
        %1257 = vmatprep.subr.bf16.mxu0 0
        %1258 = vmatpush1.bf16.msra.mxu0 0
        %1259 = vmatprep.subr.bf16.mxu0 0
        %1260 = vmatpush1.bf16.msra.mxu0 0
        %1261 = vmatprep.subr.bf16.mxu0 0
        %1262 = vmatpush1.bf16.msra.mxu0 0
        %1263 = vmatprep.subr.bf16.mxu0 0
        %1264 = vmatpush1.bf16.msra.mxu0 0
        %1265 = vmatprep.subr.bf16.mxu0 0
        %1266 = vmatpush1.bf16.msra.mxu0 0
        %1267 = vmatprep.mubr.bf16.mxu0 0
        %1268 = vmatmul.mubr.bf16.gmra.mrb[0].mxu0 %v367
        %v1269 = vpop.f32.mrb[0].mxu0
        %v1270 = vadd.f32 0.0, %v1269
        %v1271 = vpop.f32.mrb[0].mxu0
        %v1272 = vadd.f32 0.0, %v1271
        %v1273 = vpop.f32.mrb[0].mxu0
        %v1274 = vadd.f32 0.0, %v1273
        %v1275 = vpop.f32.mrb[0].mxu0
        %v1276 = vadd.f32 0.0, %v1275
        %1277 = vmatprep.mubr.bf16.mxu0 0
        %1278 = vmatmul.mubr.bf16.gmra.mrb[0].mxu0 %v370
        %v1279 = vpop.f32.mrb[0].mxu0
        %v1280 = vadd.f32 0.0, %v1279
        %v1281 = vpop.f32.mrb[0].mxu0
        %v1282 = vadd.f32 0.0, %v1281
        %v1283 = vpop.f32.mrb[0].mxu0
        %v1284 = vadd.f32 0.0, %v1283
        %v1285 = vpop.f32.mrb[0].mxu0
        %v1286 = vadd.f32 0.0, %v1285
        %1287 = vmatprep.mubr.bf16.mxu0 0
        %1288 = vmatmul.mubr.bf16.gmra.mrb[0].mxu0 %v373
        %v1289 = vpop.f32.mrb[0].mxu0
        %v1290 = vadd.f32 0.0, %v1289
        %v1291 = vpop.f32.mrb[0].mxu0
        %v1292 = vadd.f32 0.0, %v1291
        %v1293 = vpop.f32.mrb[0].mxu0
        %v1294 = vadd.f32 0.0, %v1293
        %v1295 = vpop.f32.mrb[0].mxu0
        %v1296 = vadd.f32 0.0, %v1295
        %1297 = vmatprep.mubr.bf16.mxu0 0
        %1298 = vmatmul.mubr.bf16.gmra.mrb[0].mxu0 %v376
        %v1299 = vpop.f32.mrb[0].mxu0
        %v1300 = vadd.f32 0.0, %v1299
        %v1301 = vpop.f32.mrb[0].mxu0
        %v1302 = vadd.f32 0.0, %v1301
        %v1303 = vpop.f32.mrb[0].mxu0
        %v1304 = vadd.f32 0.0, %v1303
        %v1305 = vpop.f32.mrb[0].mxu0
        %v1306 = vadd.f32 0.0, %v1305
        %1307 = vmatprep.mubr.bf16.mxu0 0
        %1308 = vmatmul.mubr.bf16.gmra.mrb[0].mxu0 %v379
        %v1309 = vpop.f32.mrb[0].mxu0
        %v1310 = vadd.f32 0.0, %v1309
        %v1311 = vpop.f32.mrb[0].mxu0
        %v1312 = vadd.f32 0.0, %v1311
        %v1313 = vpop.f32.mrb[0].mxu0
        %v1314 = vadd.f32 0.0, %v1313
        %v1315 = vpop.f32.mrb[0].mxu0
        %v1316 = vadd.f32 0.0, %v1315
        %1317 = vmatprep.mubr.bf16.mxu0 0
        %1318 = vmatmul.mubr.bf16.gmra.mrb[0].mxu0 %v382
        %v1319 = vpop.f32.mrb[0].mxu0
        %v1320 = vadd.f32 0.0, %v1319
        %v1321 = vpop.f32.mrb[0].mxu0
        %v1322 = vadd.f32 0.0, %v1321
        %v1323 = vpop.f32.mrb[0].mxu0
        %v1324 = vadd.f32 0.0, %v1323
        %v1325 = vpop.f32.mrb[0].mxu0
        %v1326 = vadd.f32 0.0, %v1325
        %1327 = vmatprep.mubr.bf16.mxu0 0
        %1328 = vmatmul.mubr.bf16.gmra.mrb[0].mxu0 %v385
        %v1329 = vpop.f32.mrb[0].mxu0
        %v1330 = vadd.f32 0.0, %v1329
        %v1331 = vpop.f32.mrb[0].mxu0
        %v1332 = vadd.f32 0.0, %v1331
        %v1333 = vpop.f32.mrb[0].mxu0
        %v1334 = vadd.f32 0.0, %v1333
        %v1335 = vpop.f32.mrb[0].mxu0
        %v1336 = vadd.f32 0.0, %v1335
        %1337 = vmatprep.mubr.bf16.mxu0 0
        %1338 = vmatmul.mubr.bf16.gmra.mrb[0].mxu0 %v388
        %v1339 = vpop.f32.mrb[0].mxu0
        %v1340 = vadd.f32 0.0, %v1339
        %v1341 = vpop.f32.mrb[0].mxu0
        %v1342 = vadd.f32 0.0, %v1341
        %v1343 = vpop.f32.mrb[0].mxu0
        %v1344 = vadd.f32 0.0, %v1343
        %v1345 = vpop.f32.mrb[0].mxu0
        %v1346 = vadd.f32 0.0, %v1345
        %1347 = vmatprep.mubr.bf16.mxu0 0
        %1348 = vmatmul.mubr.bf16.gmra.mrb[0].mxu0 %v391
        %v1349 = vpop.f32.mrb[0].mxu0
        %v1350 = vadd.f32 0.0, %v1349
        %v1351 = vpop.f32.mrb[0].mxu0
        %v1352 = vadd.f32 0.0, %v1351
        %v1353 = vpop.f32.mrb[0].mxu0
        %v1354 = vadd.f32 0.0, %v1353
        %v1355 = vpop.f32.mrb[0].mxu0
        %v1356 = vadd.f32 0.0, %v1355
        %1357 = vmatprep.mubr.bf16.mxu0 0
        %1358 = vmatmul.mubr.bf16.gmra.mrb[0].mxu0 %v394
        %v1359 = vpop.f32.mrb[0].mxu0
        %v1360 = vadd.f32 0.0, %v1359
        %v1361 = vpop.f32.mrb[0].mxu0
        %v1362 = vadd.f32 0.0, %v1361
        %v1363 = vpop.f32.mrb[0].mxu0
        %v1364 = vadd.f32 0.0, %v1363
        %v1365 = vpop.f32.mrb[0].mxu0
        %v1366 = vadd.f32 0.0, %v1365
        %1367 = vmatprep.mubr.bf16.mxu0 0
        %1368 = vmatmul.mubr.bf16.gmra.mrb[0].mxu0 %v397
        %v1369 = vpop.f32.mrb[0].mxu0
        %v1370 = vadd.f32 0.0, %v1369
        %v1371 = vpop.f32.mrb[0].mxu0
        %v1372 = vadd.f32 0.0, %v1371
        %v1373 = vpop.f32.mrb[0].mxu0
        %v1374 = vadd.f32 0.0, %v1373
        %v1375 = vpop.f32.mrb[0].mxu0
        %v1376 = vadd.f32 0.0, %v1375
        %1377 = vmatprep.mubr.bf16.mxu0 0
        %1378 = vmatmul.mubr.bf16.gmra.mrb[0].mxu0 %v400
        %v1379 = vpop.f32.mrb[0].mxu0
        %v1380 = vadd.f32 0.0, %v1379
        %v1381 = vpop.f32.mrb[0].mxu0
        %v1382 = vadd.f32 0.0, %v1381
        %v1383 = vpop.f32.mrb[0].mxu0
        %v1384 = vadd.f32 0.0, %v1383
        %v1385 = vpop.f32.mrb[0].mxu0
        %v1386 = vadd.f32 0.0, %v1385
        %1387 = vmatprep.mubr.bf16.mxu0 0
        %1388 = vmatmul.mubr.bf16.gmra.mrb[0].mxu0 %v403
        %v1389 = vpop.f32.mrb[0].mxu0
        %v1390 = vadd.f32 0.0, %v1389
        %v1391 = vpop.f32.mrb[0].mxu0
        %v1392 = vadd.f32 0.0, %v1391
        %v1393 = vpop.f32.mrb[0].mxu0
        %v1394 = vadd.f32 0.0, %v1393
        %v1395 = vpop.f32.mrb[0].mxu0
        %v1396 = vadd.f32 0.0, %v1395
        %1397 = vmatprep.mubr.bf16.mxu0 0
        %1398 = vmatmul.mubr.bf16.gmra.mrb[0].mxu0 %v406
        %v1399 = vpop.f32.mrb[0].mxu0
        %v1400 = vadd.f32 0.0, %v1399
        %v1401 = vpop.f32.mrb[0].mxu0
        %v1402 = vadd.f32 0.0, %v1401
        %v1403 = vpop.f32.mrb[0].mxu0
        %v1404 = vadd.f32 0.0, %v1403
        %v1405 = vpop.f32.mrb[0].mxu0
        %v1406 = vadd.f32 0.0, %v1405
        %1407 = vmatprep.mubr.bf16.mxu0 0
        %1408 = vmatmul.mubr.bf16.gmra.mrb[0].mxu0 %v409
        %v1409 = vpop.f32.mrb[0].mxu0
        %v1410 = vadd.f32 0.0, %v1409
        %v1411 = vpop.f32.mrb[0].mxu0
        %v1412 = vadd.f32 0.0, %v1411
        %v1413 = vpop.f32.mrb[0].mxu0
        %v1414 = vadd.f32 0.0, %v1413
        %v1415 = vpop.f32.mrb[0].mxu0
        %v1416 = vadd.f32 0.0, %v1415
        %1417 = vmatprep.mubr.bf16.mxu0 0
        %1418 = vmatmul.mubr.bf16.gmra.mrb[0].mxu0 %v412
        %v1419 = vpop.f32.mrb[0].mxu0
        %v1420 = vadd.f32 0.0, %v1419
        %v1421 = vpop.f32.mrb[0].mxu0
        %v1422 = vadd.f32 0.0, %v1421
        %v1423 = vpop.f32.mrb[0].mxu0
        %v1424 = vadd.f32 0.0, %v1423
        %v1425 = vpop.f32.mrb[0].mxu0
        %v1426 = vadd.f32 0.0, %v1425
        %1427 = vdwg.mxu0
        %1428 = vmatprep.subr.bf16.mxu0 %v449
        %1429 = vmatpush1.bf16.msra.mxu0 %v446
        %1430 = vmatprep.subr.bf16.mxu0 0
        %1431 = vmatpush1.bf16.msra.mxu0 0
        %1432 = vmatprep.subr.bf16.mxu0 0
        %1433 = vmatpush1.bf16.msra.mxu0 0
        %1434 = vmatprep.subr.bf16.mxu0 0
        %1435 = vmatpush1.bf16.msra.mxu0 0
        %1436 = vmatprep.subr.bf16.mxu0 0
        %1437 = vmatpush1.bf16.msra.mxu0 0
        %1438 = vmatprep.subr.bf16.mxu0 0
        %1439 = vmatpush1.bf16.msra.mxu0 0
        %1440 = vmatprep.subr.bf16.mxu0 0
        %1441 = vmatpush1.bf16.msra.mxu0 0
        %1442 = vmatprep.subr.bf16.mxu0 0
        %1443 = vmatpush1.bf16.msra.mxu0 0
        %1444 = vmatprep.subr.bf16.mxu0 0
        %1445 = vmatpush1.bf16.msra.mxu0 0
        %1446 = vmatprep.subr.bf16.mxu0 0
        %1447 = vmatpush1.bf16.msra.mxu0 0
        %1448 = vmatprep.subr.bf16.mxu0 0
        %1449 = vmatpush1.bf16.msra.mxu0 0
        %1450 = vmatprep.subr.bf16.mxu0 0
        %1451 = vmatpush1.bf16.msra.mxu0 0
        %1452 = vmatprep.subr.bf16.mxu0 0
        %1453 = vmatpush1.bf16.msra.mxu0 0
        %1454 = vmatprep.subr.bf16.mxu0 0
        %1455 = vmatpush1.bf16.msra.mxu0 0
        %1456 = vmatprep.subr.bf16.mxu0 0
        %1457 = vmatpush1.bf16.msra.mxu0 0
        %1458 = vmatprep.subr.bf16.mxu0 0
        %1459 = vmatpush1.bf16.msra.mxu0 0
        %1460 = vmatprep.mubr.bf16.mxu0 0
        %1461 = vmatmul.mubr.bf16.gmra.mrb[0].mxu0 %v367
        %v1462 = vpop.f32.mrb[0].mxu0
        %v1463 = vadd.f32 0.0, %v1462
        %v1464 = vpop.f32.mrb[0].mxu0
        %v1465 = vadd.f32 0.0, %v1464
        %v1466 = vpop.f32.mrb[0].mxu0
        %v1467 = vadd.f32 0.0, %v1466
        %v1468 = vpop.f32.mrb[0].mxu0
        %v1469 = vadd.f32 0.0, %v1468
        %1470 = vmatprep.mubr.bf16.mxu0 0
        %1471 = vmatmul.mubr.bf16.gmra.mrb[0].mxu0 %v370
        %v1472 = vpop.f32.mrb[0].mxu0
        %v1473 = vadd.f32 0.0, %v1472
        %v1474 = vpop.f32.mrb[0].mxu0
        %v1475 = vadd.f32 0.0, %v1474
        %v1476 = vpop.f32.mrb[0].mxu0
        %v1477 = vadd.f32 0.0, %v1476
        %v1478 = vpop.f32.mrb[0].mxu0
        %v1479 = vadd.f32 0.0, %v1478
        %1480 = vmatprep.mubr.bf16.mxu0 0
        %1481 = vmatmul.mubr.bf16.gmra.mrb[0].mxu0 %v373
        %v1482 = vpop.f32.mrb[0].mxu0
        %v1483 = vadd.f32 0.0, %v1482
        %v1484 = vpop.f32.mrb[0].mxu0
        %v1485 = vadd.f32 0.0, %v1484
        %v1486 = vpop.f32.mrb[0].mxu0
        %v1487 = vadd.f32 0.0, %v1486
        %v1488 = vpop.f32.mrb[0].mxu0
        %v1489 = vadd.f32 0.0, %v1488
        %1490 = vmatprep.mubr.bf16.mxu0 0
        %1491 = vmatmul.mubr.bf16.gmra.mrb[0].mxu0 %v376
        %v1492 = vpop.f32.mrb[0].mxu0
        %v1493 = vadd.f32 0.0, %v1492
        %v1494 = vpop.f32.mrb[0].mxu0
        %v1495 = vadd.f32 0.0, %v1494
        %v1496 = vpop.f32.mrb[0].mxu0
        %v1497 = vadd.f32 0.0, %v1496
        %v1498 = vpop.f32.mrb[0].mxu0
        %v1499 = vadd.f32 0.0, %v1498
        %1500 = vmatprep.mubr.bf16.mxu0 0
        %1501 = vmatmul.mubr.bf16.gmra.mrb[0].mxu0 %v379
        %v1502 = vpop.f32.mrb[0].mxu0
        %v1503 = vadd.f32 0.0, %v1502
        %v1504 = vpop.f32.mrb[0].mxu0
        %v1505 = vadd.f32 0.0, %v1504
        %v1506 = vpop.f32.mrb[0].mxu0
        %v1507 = vadd.f32 0.0, %v1506
        %v1508 = vpop.f32.mrb[0].mxu0
        %v1509 = vadd.f32 0.0, %v1508
        %1510 = vmatprep.mubr.bf16.mxu0 0
        %1511 = vmatmul.mubr.bf16.gmra.mrb[0].mxu0 %v382
        %v1512 = vpop.f32.mrb[0].mxu0
        %v1513 = vadd.f32 0.0, %v1512
        %v1514 = vpop.f32.mrb[0].mxu0
        %v1515 = vadd.f32 0.0, %v1514
        %v1516 = vpop.f32.mrb[0].mxu0
        %v1517 = vadd.f32 0.0, %v1516
        %v1518 = vpop.f32.mrb[0].mxu0
        %v1519 = vadd.f32 0.0, %v1518
        %1520 = vmatprep.mubr.bf16.mxu0 0
        %1521 = vmatmul.mubr.bf16.gmra.mrb[0].mxu0 %v385
        %v1522 = vpop.f32.mrb[0].mxu0
        %v1523 = vadd.f32 0.0, %v1522
        %v1524 = vpop.f32.mrb[0].mxu0
        %v1525 = vadd.f32 0.0, %v1524
        %v1526 = vpop.f32.mrb[0].mxu0
        %v1527 = vadd.f32 0.0, %v1526
        %v1528 = vpop.f32.mrb[0].mxu0
        %v1529 = vadd.f32 0.0, %v1528
        %1530 = vmatprep.mubr.bf16.mxu0 0
        %1531 = vmatmul.mubr.bf16.gmra.mrb[0].mxu0 %v388
        %v1532 = vpop.f32.mrb[0].mxu0
        %v1533 = vadd.f32 0.0, %v1532
        %v1534 = vpop.f32.mrb[0].mxu0
        %v1535 = vadd.f32 0.0, %v1534
        %v1536 = vpop.f32.mrb[0].mxu0
        %v1537 = vadd.f32 0.0, %v1536
        %v1538 = vpop.f32.mrb[0].mxu0
        %v1539 = vadd.f32 0.0, %v1538
        %1540 = vmatprep.mubr.bf16.mxu0 0
        %1541 = vmatmul.mubr.bf16.gmra.mrb[0].mxu0 %v391
        %v1542 = vpop.f32.mrb[0].mxu0
        %v1543 = vadd.f32 0.0, %v1542
        %v1544 = vpop.f32.mrb[0].mxu0
        %v1545 = vadd.f32 0.0, %v1544
        %v1546 = vpop.f32.mrb[0].mxu0
        %v1547 = vadd.f32 0.0, %v1546
        %v1548 = vpop.f32.mrb[0].mxu0
        %v1549 = vadd.f32 0.0, %v1548
        %1550 = vmatprep.mubr.bf16.mxu0 0
        %1551 = vmatmul.mubr.bf16.gmra.mrb[0].mxu0 %v394
        %v1552 = vpop.f32.mrb[0].mxu0
        %v1553 = vadd.f32 0.0, %v1552
        %v1554 = vpop.f32.mrb[0].mxu0
        %v1555 = vadd.f32 0.0, %v1554
        %v1556 = vpop.f32.mrb[0].mxu0
        %v1557 = vadd.f32 0.0, %v1556
        %v1558 = vpop.f32.mrb[0].mxu0
        %v1559 = vadd.f32 0.0, %v1558
        %1560 = vmatprep.mubr.bf16.mxu0 0
        %1561 = vmatmul.mubr.bf16.gmra.mrb[0].mxu0 %v397
        %v1562 = vpop.f32.mrb[0].mxu0
        %v1563 = vadd.f32 0.0, %v1562
        %v1564 = vpop.f32.mrb[0].mxu0
        %v1565 = vadd.f32 0.0, %v1564
        %v1566 = vpop.f32.mrb[0].mxu0
        %v1567 = vadd.f32 0.0, %v1566
        %v1568 = vpop.f32.mrb[0].mxu0
        %v1569 = vadd.f32 0.0, %v1568
        %1570 = vmatprep.mubr.bf16.mxu0 0
        %1571 = vmatmul.mubr.bf16.gmra.mrb[0].mxu0 %v400
        %v1572 = vpop.f32.mrb[0].mxu0
        %v1573 = vadd.f32 0.0, %v1572
        %v1574 = vpop.f32.mrb[0].mxu0
        %v1575 = vadd.f32 0.0, %v1574
        %v1576 = vpop.f32.mrb[0].mxu0
        %v1577 = vadd.f32 0.0, %v1576
        %v1578 = vpop.f32.mrb[0].mxu0
        %v1579 = vadd.f32 0.0, %v1578
        %1580 = vmatprep.mubr.bf16.mxu0 0
        %1581 = vmatmul.mubr.bf16.gmra.mrb[0].mxu0 %v403
        %v1582 = vpop.f32.mrb[0].mxu0
        %v1583 = vadd.f32 0.0, %v1582
        %v1584 = vpop.f32.mrb[0].mxu0
        %v1585 = vadd.f32 0.0, %v1584
        %v1586 = vpop.f32.mrb[0].mxu0
        %v1587 = vadd.f32 0.0, %v1586
        %v1588 = vpop.f32.mrb[0].mxu0
        %v1589 = vadd.f32 0.0, %v1588
        %1590 = vmatprep.mubr.bf16.mxu0 0
        %1591 = vmatmul.mubr.bf16.gmra.mrb[0].mxu0 %v406
        %v1592 = vpop.f32.mrb[0].mxu0
        %v1593 = vadd.f32 0.0, %v1592
        %v1594 = vpop.f32.mrb[0].mxu0
        %v1595 = vadd.f32 0.0, %v1594
        %v1596 = vpop.f32.mrb[0].mxu0
        %v1597 = vadd.f32 0.0, %v1596
        %v1598 = vpop.f32.mrb[0].mxu0
        %v1599 = vadd.f32 0.0, %v1598
        %1600 = vmatprep.mubr.bf16.mxu0 0
        %1601 = vmatmul.mubr.bf16.gmra.mrb[0].mxu0 %v409
        %v1602 = vpop.f32.mrb[0].mxu0
        %v1603 = vadd.f32 0.0, %v1602
        %v1604 = vpop.f32.mrb[0].mxu0
        %v1605 = vadd.f32 0.0, %v1604
        %v1606 = vpop.f32.mrb[0].mxu0
        %v1607 = vadd.f32 0.0, %v1606
        %v1608 = vpop.f32.mrb[0].mxu0
        %v1609 = vadd.f32 0.0, %v1608
        %1610 = vmatprep.mubr.bf16.mxu0 0
        %1611 = vmatmul.mubr.bf16.gmra.mrb[0].mxu0 %v412
        %v1612 = vpop.f32.mrb[0].mxu0
        %v1613 = vadd.f32 0.0, %v1612
        %v1614 = vpop.f32.mrb[0].mxu0
        %v1615 = vadd.f32 0.0, %v1614
        %v1616 = vpop.f32.mrb[0].mxu0
        %v1617 = vadd.f32 0.0, %v1616
        %v1618 = vpop.f32.mrb[0].mxu0
        %v1619 = vadd.f32 0.0, %v1618
        %1620 = vdwg.mxu0
        %1621 = vmatprep.subr.bf16.mxu0 %v455
        %1622 = vmatpush1.bf16.msra.mxu0 %v452
        %1623 = vmatprep.subr.bf16.mxu0 0
        %1624 = vmatpush1.bf16.msra.mxu0 0
        %1625 = vmatprep.subr.bf16.mxu0 0
        %1626 = vmatpush1.bf16.msra.mxu0 0
        %1627 = vmatprep.subr.bf16.mxu0 0
        %1628 = vmatpush1.bf16.msra.mxu0 0
        %1629 = vmatprep.subr.bf16.mxu0 0
        %1630 = vmatpush1.bf16.msra.mxu0 0
        %1631 = vmatprep.subr.bf16.mxu0 0
        %1632 = vmatpush1.bf16.msra.mxu0 0
        %1633 = vmatprep.subr.bf16.mxu0 0
        %1634 = vmatpush1.bf16.msra.mxu0 0
        %1635 = vmatprep.subr.bf16.mxu0 0
        %1636 = vmatpush1.bf16.msra.mxu0 0
        %1637 = vmatprep.subr.bf16.mxu0 0
        %1638 = vmatpush1.bf16.msra.mxu0 0
        %1639 = vmatprep.subr.bf16.mxu0 0
        %1640 = vmatpush1.bf16.msra.mxu0 0
        %1641 = vmatprep.subr.bf16.mxu0 0
        %1642 = vmatpush1.bf16.msra.mxu0 0
        %1643 = vmatprep.subr.bf16.mxu0 0
        %1644 = vmatpush1.bf16.msra.mxu0 0
        %1645 = vmatprep.subr.bf16.mxu0 0
        %1646 = vmatpush1.bf16.msra.mxu0 0
        %1647 = vmatprep.subr.bf16.mxu0 0
        %1648 = vmatpush1.bf16.msra.mxu0 0
        %1649 = vmatprep.subr.bf16.mxu0 0
        %1650 = vmatpush1.bf16.msra.mxu0 0
        %1651 = vmatprep.subr.bf16.mxu0 0
        %1652 = vmatpush1.bf16.msra.mxu0 0
        %1653 = vmatprep.mubr.bf16.mxu0 0
        %1654 = vmatmul.mubr.bf16.gmra.mrb[0].mxu0 %v367
        %v1655 = vpop.f32.mrb[0].mxu0
        %v1656 = vadd.f32 0.0, %v1655
        %v1657 = vpop.f32.mrb[0].mxu0
        %v1658 = vadd.f32 0.0, %v1657
        %v1659 = vpop.f32.mrb[0].mxu0
        %v1660 = vadd.f32 0.0, %v1659
        %v1661 = vpop.f32.mrb[0].mxu0
        %v1662 = vadd.f32 0.0, %v1661
        %1663 = vmatprep.mubr.bf16.mxu0 0
        %1664 = vmatmul.mubr.bf16.gmra.mrb[0].mxu0 %v370
        %v1665 = vpop.f32.mrb[0].mxu0
        %v1666 = vadd.f32 0.0, %v1665
        %v1667 = vpop.f32.mrb[0].mxu0
        %v1668 = vadd.f32 0.0, %v1667
        %v1669 = vpop.f32.mrb[0].mxu0
        %v1670 = vadd.f32 0.0, %v1669
        %v1671 = vpop.f32.mrb[0].mxu0
        %v1672 = vadd.f32 0.0, %v1671
        %1673 = vmatprep.mubr.bf16.mxu0 0
        %1674 = vmatmul.mubr.bf16.gmra.mrb[0].mxu0 %v373
        %v1675 = vpop.f32.mrb[0].mxu0
        %v1676 = vadd.f32 0.0, %v1675
        %v1677 = vpop.f32.mrb[0].mxu0
        %v1678 = vadd.f32 0.0, %v1677
        %v1679 = vpop.f32.mrb[0].mxu0
        %v1680 = vadd.f32 0.0, %v1679
        %v1681 = vpop.f32.mrb[0].mxu0
        %v1682 = vadd.f32 0.0, %v1681
        %1683 = vmatprep.mubr.bf16.mxu0 0
        %1684 = vmatmul.mubr.bf16.gmra.mrb[0].mxu0 %v376
        %v1685 = vpop.f32.mrb[0].mxu0
        %v1686 = vadd.f32 0.0, %v1685
        %v1687 = vpop.f32.mrb[0].mxu0
        %v1688 = vadd.f32 0.0, %v1687
        %v1689 = vpop.f32.mrb[0].mxu0
        %v1690 = vadd.f32 0.0, %v1689
        %v1691 = vpop.f32.mrb[0].mxu0
        %v1692 = vadd.f32 0.0, %v1691
        %1693 = vmatprep.mubr.bf16.mxu0 0
        %1694 = vmatmul.mubr.bf16.gmra.mrb[0].mxu0 %v379
        %v1695 = vpop.f32.mrb[0].mxu0
        %v1696 = vadd.f32 0.0, %v1695
        %v1697 = vpop.f32.mrb[0].mxu0
        %v1698 = vadd.f32 0.0, %v1697
        %v1699 = vpop.f32.mrb[0].mxu0
        %v1700 = vadd.f32 0.0, %v1699
        %v1701 = vpop.f32.mrb[0].mxu0
        %v1702 = vadd.f32 0.0, %v1701
        %1703 = vmatprep.mubr.bf16.mxu0 0
        %1704 = vmatmul.mubr.bf16.gmra.mrb[0].mxu0 %v382
        %v1705 = vpop.f32.mrb[0].mxu0
        %v1706 = vadd.f32 0.0, %v1705
        %v1707 = vpop.f32.mrb[0].mxu0
        %v1708 = vadd.f32 0.0, %v1707
        %v1709 = vpop.f32.mrb[0].mxu0
        %v1710 = vadd.f32 0.0, %v1709
        %v1711 = vpop.f32.mrb[0].mxu0
        %v1712 = vadd.f32 0.0, %v1711
        %1713 = vmatprep.mubr.bf16.mxu0 0
        %1714 = vmatmul.mubr.bf16.gmra.mrb[0].mxu0 %v385
        %v1715 = vpop.f32.mrb[0].mxu0
        %v1716 = vadd.f32 0.0, %v1715
        %v1717 = vpop.f32.mrb[0].mxu0
        %v1718 = vadd.f32 0.0, %v1717
        %v1719 = vpop.f32.mrb[0].mxu0
        %v1720 = vadd.f32 0.0, %v1719
        %v1721 = vpop.f32.mrb[0].mxu0
        %v1722 = vadd.f32 0.0, %v1721
        %1723 = vmatprep.mubr.bf16.mxu0 0
        %1724 = vmatmul.mubr.bf16.gmra.mrb[0].mxu0 %v388
        %v1725 = vpop.f32.mrb[0].mxu0
        %v1726 = vadd.f32 0.0, %v1725
        %v1727 = vpop.f32.mrb[0].mxu0
        %v1728 = vadd.f32 0.0, %v1727
        %v1729 = vpop.f32.mrb[0].mxu0
        %v1730 = vadd.f32 0.0, %v1729
        %v1731 = vpop.f32.mrb[0].mxu0
        %v1732 = vadd.f32 0.0, %v1731
        %1733 = vmatprep.mubr.bf16.mxu0 0
        %1734 = vmatmul.mubr.bf16.gmra.mrb[0].mxu0 %v391
        %v1735 = vpop.f32.mrb[0].mxu0
        %v1736 = vadd.f32 0.0, %v1735
        %v1737 = vpop.f32.mrb[0].mxu0
        %v1738 = vadd.f32 0.0, %v1737
        %v1739 = vpop.f32.mrb[0].mxu0
        %v1740 = vadd.f32 0.0, %v1739
        %v1741 = vpop.f32.mrb[0].mxu0
        %v1742 = vadd.f32 0.0, %v1741
        %1743 = vmatprep.mubr.bf16.mxu0 0
        %1744 = vmatmul.mubr.bf16.gmra.mrb[0].mxu0 %v394
        %v1745 = vpop.f32.mrb[0].mxu0
        %v1746 = vadd.f32 0.0, %v1745
        %v1747 = vpop.f32.mrb[0].mxu0
        %v1748 = vadd.f32 0.0, %v1747
        %v1749 = vpop.f32.mrb[0].mxu0
        %v1750 = vadd.f32 0.0, %v1749
        %v1751 = vpop.f32.mrb[0].mxu0
        %v1752 = vadd.f32 0.0, %v1751
        %1753 = vmatprep.mubr.bf16.mxu0 0
        %1754 = vmatmul.mubr.bf16.gmra.mrb[0].mxu0 %v397
        %v1755 = vpop.f32.mrb[0].mxu0
        %v1756 = vadd.f32 0.0, %v1755
        %v1757 = vpop.f32.mrb[0].mxu0
        %v1758 = vadd.f32 0.0, %v1757
        %v1759 = vpop.f32.mrb[0].mxu0
        %v1760 = vadd.f32 0.0, %v1759
        %v1761 = vpop.f32.mrb[0].mxu0
        %v1762 = vadd.f32 0.0, %v1761
        %1763 = vmatprep.mubr.bf16.mxu0 0
        %1764 = vmatmul.mubr.bf16.gmra.mrb[0].mxu0 %v400
        %v1765 = vpop.f32.mrb[0].mxu0
        %v1766 = vadd.f32 0.0, %v1765
        %v1767 = vpop.f32.mrb[0].mxu0
        %v1768 = vadd.f32 0.0, %v1767
        %v1769 = vpop.f32.mrb[0].mxu0
        %v1770 = vadd.f32 0.0, %v1769
        %v1771 = vpop.f32.mrb[0].mxu0
        %v1772 = vadd.f32 0.0, %v1771
        %1773 = vmatprep.mubr.bf16.mxu0 0
        %1774 = vmatmul.mubr.bf16.gmra.mrb[0].mxu0 %v403
        %v1775 = vpop.f32.mrb[0].mxu0
        %v1776 = vadd.f32 0.0, %v1775
        %v1777 = vpop.f32.mrb[0].mxu0
        %v1778 = vadd.f32 0.0, %v1777
        %v1779 = vpop.f32.mrb[0].mxu0
        %v1780 = vadd.f32 0.0, %v1779
        %v1781 = vpop.f32.mrb[0].mxu0
        %v1782 = vadd.f32 0.0, %v1781
        %1783 = vmatprep.mubr.bf16.mxu0 0
        %1784 = vmatmul.mubr.bf16.gmra.mrb[0].mxu0 %v406
        %v1785 = vpop.f32.mrb[0].mxu0
        %v1786 = vadd.f32 0.0, %v1785
        %v1787 = vpop.f32.mrb[0].mxu0
        %v1788 = vadd.f32 0.0, %v1787
        %v1789 = vpop.f32.mrb[0].mxu0
        %v1790 = vadd.f32 0.0, %v1789
        %v1791 = vpop.f32.mrb[0].mxu0
        %v1792 = vadd.f32 0.0, %v1791
        %1793 = vmatprep.mubr.bf16.mxu0 0
        %1794 = vmatmul.mubr.bf16.gmra.mrb[0].mxu0 %v409
        %v1795 = vpop.f32.mrb[0].mxu0
        %v1796 = vadd.f32 0.0, %v1795
        %v1797 = vpop.f32.mrb[0].mxu0
        %v1798 = vadd.f32 0.0, %v1797
        %v1799 = vpop.f32.mrb[0].mxu0
        %v1800 = vadd.f32 0.0, %v1799
        %v1801 = vpop.f32.mrb[0].mxu0
        %v1802 = vadd.f32 0.0, %v1801
        %1803 = vmatprep.mubr.bf16.mxu0 0
        %1804 = vmatmul.mubr.bf16.gmra.mrb[0].mxu0 %v412
        %v1805 = vpop.f32.mrb[0].mxu0
        %v1806 = vadd.f32 0.0, %v1805
        %v1807 = vpop.f32.mrb[0].mxu0
        %v1808 = vadd.f32 0.0, %v1807
        %v1809 = vpop.f32.mrb[0].mxu0
        %v1810 = vadd.f32 0.0, %v1809
        %v1811 = vpop.f32.mrb[0].mxu0
        %v1812 = vadd.f32 0.0, %v1811
        %1813 = vdwg.mxu0
        %1814 = vmatprep.subr.bf16.mxu0 %v461
        %1815 = vmatpush1.bf16.msra.mxu0 %v458
        %1816 = vmatprep.subr.bf16.mxu0 0
        %1817 = vmatpush1.bf16.msra.mxu0 0
        %1818 = vmatprep.subr.bf16.mxu0 0
        %1819 = vmatpush1.bf16.msra.mxu0 0
        %1820 = vmatprep.subr.bf16.mxu0 0
        %1821 = vmatpush1.bf16.msra.mxu0 0
        %1822 = vmatprep.subr.bf16.mxu0 0
        %1823 = vmatpush1.bf16.msra.mxu0 0
        %1824 = vmatprep.subr.bf16.mxu0 0
        %1825 = vmatpush1.bf16.msra.mxu0 0
        %1826 = vmatprep.subr.bf16.mxu0 0
        %1827 = vmatpush1.bf16.msra.mxu0 0
        %1828 = vmatprep.subr.bf16.mxu0 0
        %1829 = vmatpush1.bf16.msra.mxu0 0
        %1830 = vmatprep.subr.bf16.mxu0 0
        %1831 = vmatpush1.bf16.msra.mxu0 0
        %1832 = vmatprep.subr.bf16.mxu0 0
        %1833 = vmatpush1.bf16.msra.mxu0 0
        %1834 = vmatprep.subr.bf16.mxu0 0
        %1835 = vmatpush1.bf16.msra.mxu0 0
        %1836 = vmatprep.subr.bf16.mxu0 0
        %1837 = vmatpush1.bf16.msra.mxu0 0
        %1838 = vmatprep.subr.bf16.mxu0 0
        %1839 = vmatpush1.bf16.msra.mxu0 0
        %1840 = vmatprep.subr.bf16.mxu0 0
        %1841 = vmatpush1.bf16.msra.mxu0 0
        %1842 = vmatprep.subr.bf16.mxu0 0
        %1843 = vmatpush1.bf16.msra.mxu0 0
        %1844 = vmatprep.subr.bf16.mxu0 0
        %1845 = vmatpush1.bf16.msra.mxu0 0
        %1846 = vmatprep.mubr.bf16.mxu0 0
        %1847 = vmatmul.mubr.bf16.gmra.mrb[0].mxu0 %v367
        %v1848 = vpop.f32.mrb[0].mxu0
        %v1849 = vadd.f32 0.0, %v1848
        %v1850 = vpop.f32.mrb[0].mxu0
        %v1851 = vadd.f32 0.0, %v1850
        %v1852 = vpop.f32.mrb[0].mxu0
        %v1853 = vadd.f32 0.0, %v1852
        %v1854 = vpop.f32.mrb[0].mxu0
        %v1855 = vadd.f32 0.0, %v1854
        %1856 = vmatprep.mubr.bf16.mxu0 0
        %1857 = vmatmul.mubr.bf16.gmra.mrb[0].mxu0 %v370
        %v1858 = vpop.f32.mrb[0].mxu0
        %v1859 = vadd.f32 0.0, %v1858
        %v1860 = vpop.f32.mrb[0].mxu0
        %v1861 = vadd.f32 0.0, %v1860
        %v1862 = vpop.f32.mrb[0].mxu0
        %v1863 = vadd.f32 0.0, %v1862
        %v1864 = vpop.f32.mrb[0].mxu0
        %v1865 = vadd.f32 0.0, %v1864
        %1866 = vmatprep.mubr.bf16.mxu0 0
        %1867 = vmatmul.mubr.bf16.gmra.mrb[0].mxu0 %v373
        %v1868 = vpop.f32.mrb[0].mxu0
        %v1869 = vadd.f32 0.0, %v1868
        %v1870 = vpop.f32.mrb[0].mxu0
        %v1871 = vadd.f32 0.0, %v1870
        %v1872 = vpop.f32.mrb[0].mxu0
        %v1873 = vadd.f32 0.0, %v1872
        %v1874 = vpop.f32.mrb[0].mxu0
        %v1875 = vadd.f32 0.0, %v1874
        %1876 = vmatprep.mubr.bf16.mxu0 0
        %1877 = vmatmul.mubr.bf16.gmra.mrb[0].mxu0 %v376
        %v1878 = vpop.f32.mrb[0].mxu0
        %v1879 = vadd.f32 0.0, %v1878
        %v1880 = vpop.f32.mrb[0].mxu0
        %v1881 = vadd.f32 0.0, %v1880
        %v1882 = vpop.f32.mrb[0].mxu0
        %v1883 = vadd.f32 0.0, %v1882
        %v1884 = vpop.f32.mrb[0].mxu0
        %v1885 = vadd.f32 0.0, %v1884
        %1886 = vmatprep.mubr.bf16.mxu0 0
        %1887 = vmatmul.mubr.bf16.gmra.mrb[0].mxu0 %v379
        %v1888 = vpop.f32.mrb[0].mxu0
        %v1889 = vadd.f32 0.0, %v1888
        %v1890 = vpop.f32.mrb[0].mxu0
        %v1891 = vadd.f32 0.0, %v1890
        %v1892 = vpop.f32.mrb[0].mxu0
        %v1893 = vadd.f32 0.0, %v1892
        %v1894 = vpop.f32.mrb[0].mxu0
        %v1895 = vadd.f32 0.0, %v1894
        %1896 = vmatprep.mubr.bf16.mxu0 0
        %1897 = vmatmul.mubr.bf16.gmra.mrb[0].mxu0 %v382
        %v1898 = vpop.f32.mrb[0].mxu0
        %v1899 = vadd.f32 0.0, %v1898
        %v1900 = vpop.f32.mrb[0].mxu0
        %v1901 = vadd.f32 0.0, %v1900
        %v1902 = vpop.f32.mrb[0].mxu0
        %v1903 = vadd.f32 0.0, %v1902
        %v1904 = vpop.f32.mrb[0].mxu0
        %v1905 = vadd.f32 0.0, %v1904
        %1906 = vmatprep.mubr.bf16.mxu0 0
        %1907 = vmatmul.mubr.bf16.gmra.mrb[0].mxu0 %v385
        %v1908 = vpop.f32.mrb[0].mxu0
        %v1909 = vadd.f32 0.0, %v1908
        %v1910 = vpop.f32.mrb[0].mxu0
        %v1911 = vadd.f32 0.0, %v1910
        %v1912 = vpop.f32.mrb[0].mxu0
        %v1913 = vadd.f32 0.0, %v1912
        %v1914 = vpop.f32.mrb[0].mxu0
        %v1915 = vadd.f32 0.0, %v1914
        %1916 = vmatprep.mubr.bf16.mxu0 0
        %1917 = vmatmul.mubr.bf16.gmra.mrb[0].mxu0 %v388
        %v1918 = vpop.f32.mrb[0].mxu0
        %v1919 = vadd.f32 0.0, %v1918
        %v1920 = vpop.f32.mrb[0].mxu0
        %v1921 = vadd.f32 0.0, %v1920
        %v1922 = vpop.f32.mrb[0].mxu0
        %v1923 = vadd.f32 0.0, %v1922
        %v1924 = vpop.f32.mrb[0].mxu0
        %v1925 = vadd.f32 0.0, %v1924
        %1926 = vmatprep.mubr.bf16.mxu0 0
        %1927 = vmatmul.mubr.bf16.gmra.mrb[0].mxu0 %v391
        %v1928 = vpop.f32.mrb[0].mxu0
        %v1929 = vadd.f32 0.0, %v1928
        %v1930 = vpop.f32.mrb[0].mxu0
        %v1931 = vadd.f32 0.0, %v1930
        %v1932 = vpop.f32.mrb[0].mxu0
        %v1933 = vadd.f32 0.0, %v1932
        %v1934 = vpop.f32.mrb[0].mxu0
        %v1935 = vadd.f32 0.0, %v1934
        %1936 = vmatprep.mubr.bf16.mxu0 0
        %1937 = vmatmul.mubr.bf16.gmra.mrb[0].mxu0 %v394
        %v1938 = vpop.f32.mrb[0].mxu0
        %v1939 = vadd.f32 0.0, %v1938
        %v1940 = vpop.f32.mrb[0].mxu0
        %v1941 = vadd.f32 0.0, %v1940
        %v1942 = vpop.f32.mrb[0].mxu0
        %v1943 = vadd.f32 0.0, %v1942
        %v1944 = vpop.f32.mrb[0].mxu0
        %v1945 = vadd.f32 0.0, %v1944
        %1946 = vmatprep.mubr.bf16.mxu0 0
        %1947 = vmatmul.mubr.bf16.gmra.mrb[0].mxu0 %v397
        %v1948 = vpop.f32.mrb[0].mxu0
        %v1949 = vadd.f32 0.0, %v1948
        %v1950 = vpop.f32.mrb[0].mxu0
        %v1951 = vadd.f32 0.0, %v1950
        %v1952 = vpop.f32.mrb[0].mxu0
        %v1953 = vadd.f32 0.0, %v1952
        %v1954 = vpop.f32.mrb[0].mxu0
        %v1955 = vadd.f32 0.0, %v1954
        %1956 = vmatprep.mubr.bf16.mxu0 0
        %1957 = vmatmul.mubr.bf16.gmra.mrb[0].mxu0 %v400
        %v1958 = vpop.f32.mrb[0].mxu0
        %v1959 = vadd.f32 0.0, %v1958
        %v1960 = vpop.f32.mrb[0].mxu0
        %v1961 = vadd.f32 0.0, %v1960
        %v1962 = vpop.f32.mrb[0].mxu0
        %v1963 = vadd.f32 0.0, %v1962
        %v1964 = vpop.f32.mrb[0].mxu0
        %v1965 = vadd.f32 0.0, %v1964
        %1966 = vmatprep.mubr.bf16.mxu0 0
        %1967 = vmatmul.mubr.bf16.gmra.mrb[0].mxu0 %v403
        %v1968 = vpop.f32.mrb[0].mxu0
        %v1969 = vadd.f32 0.0, %v1968
        %v1970 = vpop.f32.mrb[0].mxu0
        %v1971 = vadd.f32 0.0, %v1970
        %v1972 = vpop.f32.mrb[0].mxu0
        %v1973 = vadd.f32 0.0, %v1972
        %v1974 = vpop.f32.mrb[0].mxu0
        %v1975 = vadd.f32 0.0, %v1974
        %1976 = vmatprep.mubr.bf16.mxu0 0
        %1977 = vmatmul.mubr.bf16.gmra.mrb[0].mxu0 %v406
        %v1978 = vpop.f32.mrb[0].mxu0
        %v1979 = vadd.f32 0.0, %v1978
        %v1980 = vpop.f32.mrb[0].mxu0
        %v1981 = vadd.f32 0.0, %v1980
        %v1982 = vpop.f32.mrb[0].mxu0
        %v1983 = vadd.f32 0.0, %v1982
        %v1984 = vpop.f32.mrb[0].mxu0
        %v1985 = vadd.f32 0.0, %v1984
        %1986 = vmatprep.mubr.bf16.mxu0 0
        %1987 = vmatmul.mubr.bf16.gmra.mrb[0].mxu0 %v409
        %v1988 = vpop.f32.mrb[0].mxu0
        %v1989 = vadd.f32 0.0, %v1988
        %v1990 = vpop.f32.mrb[0].mxu0
        %v1991 = vadd.f32 0.0, %v1990
        %v1992 = vpop.f32.mrb[0].mxu0
        %v1993 = vadd.f32 0.0, %v1992
        %v1994 = vpop.f32.mrb[0].mxu0
        %v1995 = vadd.f32 0.0, %v1994
        %1996 = vmatprep.mubr.bf16.mxu0 0
        %1997 = vmatmul.mubr.bf16.gmra.mrb[0].mxu0 %v412
        %v1998 = vpop.f32.mrb[0].mxu0
        %v1999 = vadd.f32 0.0, %v1998
        %v2000 = vpop.f32.mrb[0].mxu0
        %v2001 = vadd.f32 0.0, %v2000
        %v2002 = vpop.f32.mrb[0].mxu0
        %v2003 = vadd.f32 0.0, %v2002
        %v2004 = vpop.f32.mrb[0].mxu0
        %v2005 = vadd.f32 0.0, %v2004
        %2006 = vdwg.mxu0
        %v2007 = vmax.f32 %v498, 0.0
        %v2008 = vmax.f32 %v500, 0.0
        %v2009 = vmax.f32 %v691, 0.0
        %v2010 = vmax.f32 %v693, 0.0
        %v2011 = vmax.f32 %v884, 0.0
        %v2012 = vmax.f32 %v886, 0.0
        %v2013 = vmax.f32 %v1077, 0.0
        %v2014 = vmax.f32 %v1079, 0.0
        %v2015 = vmax.f32 %v1270, 0.0
        %v2016 = vmax.f32 %v1272, 0.0
        %v2017 = vmax.f32 %v1463, 0.0
        %v2018 = vmax.f32 %v1465, 0.0
        %v2019 = vmax.f32 %v1656, 0.0
        %v2020 = vmax.f32 %v1658, 0.0
        %v2021 = vmax.f32 %v1849, 0.0
        %v2022 = vmax.f32 %v1851, 0.0
        %v2023 = vmax.f32 %v502, 0.0
        %v2024 = vmax.f32 %v504, 0.0
        %v2025 = vmax.f32 %v695, 0.0
        %v2026 = vmax.f32 %v697, 0.0
        %v2027 = vmax.f32 %v888, 0.0
        %v2028 = vmax.f32 %v890, 0.0
        %v2029 = vmax.f32 %v1081, 0.0
        %v2030 = vmax.f32 %v1083, 0.0
        %v2031 = vmax.f32 %v1274, 0.0
        %v2032 = vmax.f32 %v1276, 0.0
        %v2033 = vmax.f32 %v1467, 0.0
        %v2034 = vmax.f32 %v1469, 0.0
        %v2035 = vmax.f32 %v1660, 0.0
        %v2036 = vmax.f32 %v1662, 0.0
        %v2037 = vmax.f32 %v1853, 0.0
        %v2038 = vmax.f32 %v1855, 0.0
        %v2039 = vmax.f32 %v508, 0.0
        %v2040 = vmax.f32 %v510, 0.0
        %v2041 = vmax.f32 %v701, 0.0
        %v2042 = vmax.f32 %v703, 0.0
        %v2043 = vmax.f32 %v894, 0.0
        %v2044 = vmax.f32 %v896, 0.0
        %v2045 = vmax.f32 %v1087, 0.0
        %v2046 = vmax.f32 %v1089, 0.0
        %v2047 = vmax.f32 %v1280, 0.0
        %v2048 = vmax.f32 %v1282, 0.0
        %v2049 = vmax.f32 %v1473, 0.0
        %v2050 = vmax.f32 %v1475, 0.0
        %v2051 = vmax.f32 %v1666, 0.0
        %v2052 = vmax.f32 %v1668, 0.0
        %v2053 = vmax.f32 %v1859, 0.0
        %v2054 = vmax.f32 %v1861, 0.0
        %v2055 = vmax.f32 %v512, 0.0
        %v2056 = vmax.f32 %v514, 0.0
        %v2057 = vmax.f32 %v705, 0.0
        %v2058 = vmax.f32 %v707, 0.0
        %v2059 = vmax.f32 %v898, 0.0
        %v2060 = vmax.f32 %v900, 0.0
        %v2061 = vmax.f32 %v1091, 0.0
        %v2062 = vmax.f32 %v1093, 0.0
        %v2063 = vmax.f32 %v1284, 0.0
        %v2064 = vmax.f32 %v1286, 0.0
        %v2065 = vmax.f32 %v1477, 0.0
        %v2066 = vmax.f32 %v1479, 0.0
        %v2067 = vmax.f32 %v1670, 0.0
        %v2068 = vmax.f32 %v1672, 0.0
        %v2069 = vmax.f32 %v1863, 0.0
        %v2070 = vmax.f32 %v1865, 0.0
        %v2071 = vmax.f32 %v518, 0.0
        %v2072 = vmax.f32 %v520, 0.0
        %v2073 = vmax.f32 %v711, 0.0
        %v2074 = vmax.f32 %v713, 0.0
        %v2075 = vmax.f32 %v904, 0.0
        %v2076 = vmax.f32 %v906, 0.0
        %v2077 = vmax.f32 %v1097, 0.0
        %v2078 = vmax.f32 %v1099, 0.0
        %v2079 = vmax.f32 %v1290, 0.0
        %v2080 = vmax.f32 %v1292, 0.0
        %v2081 = vmax.f32 %v1483, 0.0
        %v2082 = vmax.f32 %v1485, 0.0
        %v2083 = vmax.f32 %v1676, 0.0
        %v2084 = vmax.f32 %v1678, 0.0
        %v2085 = vmax.f32 %v1869, 0.0
        %v2086 = vmax.f32 %v1871, 0.0
        %v2087 = vmax.f32 %v522, 0.0
        %v2088 = vmax.f32 %v524, 0.0
        %v2089 = vmax.f32 %v715, 0.0
        %v2090 = vmax.f32 %v717, 0.0
        %v2091 = vmax.f32 %v908, 0.0
        %v2092 = vmax.f32 %v910, 0.0
        %v2093 = vmax.f32 %v1101, 0.0
        %v2094 = vmax.f32 %v1103, 0.0
        %v2095 = vmax.f32 %v1294, 0.0
        %v2096 = vmax.f32 %v1296, 0.0
        %v2097 = vmax.f32 %v1487, 0.0
        %v2098 = vmax.f32 %v1489, 0.0
        %v2099 = vmax.f32 %v1680, 0.0
        %v2100 = vmax.f32 %v1682, 0.0
        %v2101 = vmax.f32 %v1873, 0.0
        %v2102 = vmax.f32 %v1875, 0.0
        %v2103 = vmax.f32 %v528, 0.0
        %v2104 = vmax.f32 %v530, 0.0
        %v2105 = vmax.f32 %v721, 0.0
        %v2106 = vmax.f32 %v723, 0.0
        %v2107 = vmax.f32 %v914, 0.0
        %v2108 = vmax.f32 %v916, 0.0
        %v2109 = vmax.f32 %v1107, 0.0
        %v2110 = vmax.f32 %v1109, 0.0
        %v2111 = vmax.f32 %v1300, 0.0
        %v2112 = vmax.f32 %v1302, 0.0
        %v2113 = vmax.f32 %v1493, 0.0
        %v2114 = vmax.f32 %v1495, 0.0
        %v2115 = vmax.f32 %v1686, 0.0
        %v2116 = vmax.f32 %v1688, 0.0
        %v2117 = vmax.f32 %v1879, 0.0
        %v2118 = vmax.f32 %v1881, 0.0
        %v2119 = vmax.f32 %v532, 0.0
        %v2120 = vmax.f32 %v534, 0.0
        %v2121 = vmax.f32 %v725, 0.0
        %v2122 = vmax.f32 %v727, 0.0
        %v2123 = vmax.f32 %v918, 0.0
        %v2124 = vmax.f32 %v920, 0.0
        %v2125 = vmax.f32 %v1111, 0.0
        %v2126 = vmax.f32 %v1113, 0.0
        %v2127 = vmax.f32 %v1304, 0.0
        %v2128 = vmax.f32 %v1306, 0.0
        %v2129 = vmax.f32 %v1497, 0.0
        %v2130 = vmax.f32 %v1499, 0.0
        %v2131 = vmax.f32 %v1690, 0.0
        %v2132 = vmax.f32 %v1692, 0.0
        %v2133 = vmax.f32 %v1883, 0.0
        %v2134 = vmax.f32 %v1885, 0.0
        %v2135 = vmax.f32 %v538, 0.0
        %v2136 = vmax.f32 %v540, 0.0
        %v2137 = vmax.f32 %v731, 0.0
        %v2138 = vmax.f32 %v733, 0.0
        %v2139 = vmax.f32 %v924, 0.0
        %v2140 = vmax.f32 %v926, 0.0
        %v2141 = vmax.f32 %v1117, 0.0
        %v2142 = vmax.f32 %v1119, 0.0
        %v2143 = vmax.f32 %v1310, 0.0
        %v2144 = vmax.f32 %v1312, 0.0
        %v2145 = vmax.f32 %v1503, 0.0
        %v2146 = vmax.f32 %v1505, 0.0
        %v2147 = vmax.f32 %v1696, 0.0
        %v2148 = vmax.f32 %v1698, 0.0
        %v2149 = vmax.f32 %v1889, 0.0
        %v2150 = vmax.f32 %v1891, 0.0
        %v2151 = vmax.f32 %v542, 0.0
        %v2152 = vmax.f32 %v544, 0.0
        %v2153 = vmax.f32 %v735, 0.0
        %v2154 = vmax.f32 %v737, 0.0
        %v2155 = vmax.f32 %v928, 0.0
        %v2156 = vmax.f32 %v930, 0.0
        %v2157 = vmax.f32 %v1121, 0.0
        %v2158 = vmax.f32 %v1123, 0.0
        %v2159 = vmax.f32 %v1314, 0.0
        %v2160 = vmax.f32 %v1316, 0.0
        %v2161 = vmax.f32 %v1507, 0.0
        %v2162 = vmax.f32 %v1509, 0.0
        %v2163 = vmax.f32 %v1700, 0.0
        %v2164 = vmax.f32 %v1702, 0.0
        %v2165 = vmax.f32 %v1893, 0.0
        %v2166 = vmax.f32 %v1895, 0.0
        %v2167 = vmax.f32 %v548, 0.0
        %v2168 = vmax.f32 %v550, 0.0
        %v2169 = vmax.f32 %v741, 0.0
        %v2170 = vmax.f32 %v743, 0.0
        %v2171 = vmax.f32 %v934, 0.0
        %v2172 = vmax.f32 %v936, 0.0
        %v2173 = vmax.f32 %v1127, 0.0
        %v2174 = vmax.f32 %v1129, 0.0
        %v2175 = vmax.f32 %v1320, 0.0
        %v2176 = vmax.f32 %v1322, 0.0
        %v2177 = vmax.f32 %v1513, 0.0
        %v2178 = vmax.f32 %v1515, 0.0
        %v2179 = vmax.f32 %v1706, 0.0
        %v2180 = vmax.f32 %v1708, 0.0
        %v2181 = vmax.f32 %v1899, 0.0
        %v2182 = vmax.f32 %v1901, 0.0
        %v2183 = vmax.f32 %v552, 0.0
        %v2184 = vmax.f32 %v554, 0.0
        %v2185 = vmax.f32 %v745, 0.0
        %v2186 = vmax.f32 %v747, 0.0
        %v2187 = vmax.f32 %v938, 0.0
        %v2188 = vmax.f32 %v940, 0.0
        %v2189 = vmax.f32 %v1131, 0.0
        %v2190 = vmax.f32 %v1133, 0.0
        %v2191 = vmax.f32 %v1324, 0.0
        %v2192 = vmax.f32 %v1326, 0.0
        %v2193 = vmax.f32 %v1517, 0.0
        %v2194 = vmax.f32 %v1519, 0.0
        %v2195 = vmax.f32 %v1710, 0.0
        %v2196 = vmax.f32 %v1712, 0.0
        %v2197 = vmax.f32 %v1903, 0.0
        %v2198 = vmax.f32 %v1905, 0.0
        %v2199 = vmax.f32 %v558, 0.0
        %v2200 = vmax.f32 %v560, 0.0
        %v2201 = vmax.f32 %v751, 0.0
        %v2202 = vmax.f32 %v753, 0.0
        %v2203 = vmax.f32 %v944, 0.0
        %v2204 = vmax.f32 %v946, 0.0
        %v2205 = vmax.f32 %v1137, 0.0
        %v2206 = vmax.f32 %v1139, 0.0
        %v2207 = vmax.f32 %v1330, 0.0
        %v2208 = vmax.f32 %v1332, 0.0
        %v2209 = vmax.f32 %v1523, 0.0
        %v2210 = vmax.f32 %v1525, 0.0
        %v2211 = vmax.f32 %v1716, 0.0
        %v2212 = vmax.f32 %v1718, 0.0
        %v2213 = vmax.f32 %v1909, 0.0
        %v2214 = vmax.f32 %v1911, 0.0
        %v2215 = vmax.f32 %v562, 0.0
        %v2216 = vmax.f32 %v564, 0.0
        %v2217 = vmax.f32 %v755, 0.0
        %v2218 = vmax.f32 %v757, 0.0
        %v2219 = vmax.f32 %v948, 0.0
        %v2220 = vmax.f32 %v950, 0.0
        %v2221 = vmax.f32 %v1141, 0.0
        %v2222 = vmax.f32 %v1143, 0.0
        %v2223 = vmax.f32 %v1334, 0.0
        %v2224 = vmax.f32 %v1336, 0.0
        %v2225 = vmax.f32 %v1527, 0.0
        %v2226 = vmax.f32 %v1529, 0.0
        %v2227 = vmax.f32 %v1720, 0.0
        %v2228 = vmax.f32 %v1722, 0.0
        %v2229 = vmax.f32 %v1913, 0.0
        %v2230 = vmax.f32 %v1915, 0.0
        %v2231 = vmax.f32 %v568, 0.0
        %v2232 = vmax.f32 %v570, 0.0
        %v2233 = vmax.f32 %v761, 0.0
        %v2234 = vmax.f32 %v763, 0.0
        %v2235 = vmax.f32 %v954, 0.0
        %v2236 = vmax.f32 %v956, 0.0
        %v2237 = vmax.f32 %v1147, 0.0
        %v2238 = vmax.f32 %v1149, 0.0
        %v2239 = vmax.f32 %v1340, 0.0
        %v2240 = vmax.f32 %v1342, 0.0
        %v2241 = vmax.f32 %v1533, 0.0
        %v2242 = vmax.f32 %v1535, 0.0
        %v2243 = vmax.f32 %v1726, 0.0
        %v2244 = vmax.f32 %v1728, 0.0
        %v2245 = vmax.f32 %v1919, 0.0
        %v2246 = vmax.f32 %v1921, 0.0
        %v2247 = vmax.f32 %v572, 0.0
        %v2248 = vmax.f32 %v574, 0.0
        %v2249 = vmax.f32 %v765, 0.0
        %v2250 = vmax.f32 %v767, 0.0
        %v2251 = vmax.f32 %v958, 0.0
        %v2252 = vmax.f32 %v960, 0.0
        %v2253 = vmax.f32 %v1151, 0.0
        %v2254 = vmax.f32 %v1153, 0.0
        %v2255 = vmax.f32 %v1344, 0.0
        %v2256 = vmax.f32 %v1346, 0.0
        %v2257 = vmax.f32 %v1537, 0.0
        %v2258 = vmax.f32 %v1539, 0.0
        %v2259 = vmax.f32 %v1730, 0.0
        %v2260 = vmax.f32 %v1732, 0.0
        %v2261 = vmax.f32 %v1923, 0.0
        %v2262 = vmax.f32 %v1925, 0.0
        %v2263 = vmax.f32 %v578, 0.0
        %v2264 = vmax.f32 %v580, 0.0
        %v2265 = vmax.f32 %v771, 0.0
        %v2266 = vmax.f32 %v773, 0.0
        %v2267 = vmax.f32 %v964, 0.0
        %v2268 = vmax.f32 %v966, 0.0
        %v2269 = vmax.f32 %v1157, 0.0
        %v2270 = vmax.f32 %v1159, 0.0
        %v2271 = vmax.f32 %v1350, 0.0
        %v2272 = vmax.f32 %v1352, 0.0
        %v2273 = vmax.f32 %v1543, 0.0
        %v2274 = vmax.f32 %v1545, 0.0
        %v2275 = vmax.f32 %v1736, 0.0
        %v2276 = vmax.f32 %v1738, 0.0
        %v2277 = vmax.f32 %v1929, 0.0
        %v2278 = vmax.f32 %v1931, 0.0
        %v2279 = vmax.f32 %v582, 0.0
        %v2280 = vmax.f32 %v584, 0.0
        %v2281 = vmax.f32 %v775, 0.0
        %v2282 = vmax.f32 %v777, 0.0
        %v2283 = vmax.f32 %v968, 0.0
        %v2284 = vmax.f32 %v970, 0.0
        %v2285 = vmax.f32 %v1161, 0.0
        %v2286 = vmax.f32 %v1163, 0.0
        %v2287 = vmax.f32 %v1354, 0.0
        %v2288 = vmax.f32 %v1356, 0.0
        %v2289 = vmax.f32 %v1547, 0.0
        %v2290 = vmax.f32 %v1549, 0.0
        %v2291 = vmax.f32 %v1740, 0.0
        %v2292 = vmax.f32 %v1742, 0.0
        %v2293 = vmax.f32 %v1933, 0.0
        %v2294 = vmax.f32 %v1935, 0.0
        %v2295 = vmax.f32 %v588, 0.0
        %v2296 = vmax.f32 %v590, 0.0
        %v2297 = vmax.f32 %v781, 0.0
        %v2298 = vmax.f32 %v783, 0.0
        %v2299 = vmax.f32 %v974, 0.0
        %v2300 = vmax.f32 %v976, 0.0
        %v2301 = vmax.f32 %v1167, 0.0
        %v2302 = vmax.f32 %v1169, 0.0
        %v2303 = vmax.f32 %v1360, 0.0
        %v2304 = vmax.f32 %v1362, 0.0
        %v2305 = vmax.f32 %v1553, 0.0
        %v2306 = vmax.f32 %v1555, 0.0
        %v2307 = vmax.f32 %v1746, 0.0
        %v2308 = vmax.f32 %v1748, 0.0
        %v2309 = vmax.f32 %v1939, 0.0
        %v2310 = vmax.f32 %v1941, 0.0
        %v2311 = vmax.f32 %v592, 0.0
        %v2312 = vmax.f32 %v594, 0.0
        %v2313 = vmax.f32 %v785, 0.0
        %v2314 = vmax.f32 %v787, 0.0
        %v2315 = vmax.f32 %v978, 0.0
        %v2316 = vmax.f32 %v980, 0.0
        %v2317 = vmax.f32 %v1171, 0.0
        %v2318 = vmax.f32 %v1173, 0.0
        %v2319 = vmax.f32 %v1364, 0.0
        %v2320 = vmax.f32 %v1366, 0.0
        %v2321 = vmax.f32 %v1557, 0.0
        %v2322 = vmax.f32 %v1559, 0.0
        %v2323 = vmax.f32 %v1750, 0.0
        %v2324 = vmax.f32 %v1752, 0.0
        %v2325 = vmax.f32 %v1943, 0.0
        %v2326 = vmax.f32 %v1945, 0.0
        %v2327 = vmax.f32 %v598, 0.0
        %v2328 = vmax.f32 %v600, 0.0
        %v2329 = vmax.f32 %v791, 0.0
        %v2330 = vmax.f32 %v793, 0.0
        %v2331 = vmax.f32 %v984, 0.0
        %v2332 = vmax.f32 %v986, 0.0
        %v2333 = vmax.f32 %v1177, 0.0
        %v2334 = vmax.f32 %v1179, 0.0
        %v2335 = vmax.f32 %v1370, 0.0
        %v2336 = vmax.f32 %v1372, 0.0
        %v2337 = vmax.f32 %v1563, 0.0
        %v2338 = vmax.f32 %v1565, 0.0
        %v2339 = vmax.f32 %v1756, 0.0
        %v2340 = vmax.f32 %v1758, 0.0
        %v2341 = vmax.f32 %v1949, 0.0
        %v2342 = vmax.f32 %v1951, 0.0
        %v2343 = vmax.f32 %v602, 0.0
        %v2344 = vmax.f32 %v604, 0.0
        %v2345 = vmax.f32 %v795, 0.0
        %v2346 = vmax.f32 %v797, 0.0
        %v2347 = vmax.f32 %v988, 0.0
        %v2348 = vmax.f32 %v990, 0.0
        %v2349 = vmax.f32 %v1181, 0.0
        %v2350 = vmax.f32 %v1183, 0.0
        %v2351 = vmax.f32 %v1374, 0.0
        %v2352 = vmax.f32 %v1376, 0.0
        %v2353 = vmax.f32 %v1567, 0.0
        %v2354 = vmax.f32 %v1569, 0.0
        %v2355 = vmax.f32 %v1760, 0.0
        %v2356 = vmax.f32 %v1762, 0.0
        %v2357 = vmax.f32 %v1953, 0.0
        %v2358 = vmax.f32 %v1955, 0.0
        %v2359 = vmax.f32 %v608, 0.0
        %v2360 = vmax.f32 %v610, 0.0
        %v2361 = vmax.f32 %v801, 0.0
        %v2362 = vmax.f32 %v803, 0.0
        %v2363 = vmax.f32 %v994, 0.0
        %v2364 = vmax.f32 %v996, 0.0
        %v2365 = vmax.f32 %v1187, 0.0
        %v2366 = vmax.f32 %v1189, 0.0
        %v2367 = vmax.f32 %v1380, 0.0
        %v2368 = vmax.f32 %v1382, 0.0
        %v2369 = vmax.f32 %v1573, 0.0
        %v2370 = vmax.f32 %v1575, 0.0
        %v2371 = vmax.f32 %v1766, 0.0
        %v2372 = vmax.f32 %v1768, 0.0
        %v2373 = vmax.f32 %v1959, 0.0
        %v2374 = vmax.f32 %v1961, 0.0
        %v2375 = vmax.f32 %v612, 0.0
        %v2376 = vmax.f32 %v614, 0.0
        %v2377 = vmax.f32 %v805, 0.0
        %v2378 = vmax.f32 %v807, 0.0
        %v2379 = vmax.f32 %v998, 0.0
        %v2380 = vmax.f32 %v1000, 0.0
        %v2381 = vmax.f32 %v1191, 0.0
        %v2382 = vmax.f32 %v1193, 0.0
        %v2383 = vmax.f32 %v1384, 0.0
        %v2384 = vmax.f32 %v1386, 0.0
        %v2385 = vmax.f32 %v1577, 0.0
        %v2386 = vmax.f32 %v1579, 0.0
        %v2387 = vmax.f32 %v1770, 0.0
        %v2388 = vmax.f32 %v1772, 0.0
        %v2389 = vmax.f32 %v1963, 0.0
        %v2390 = vmax.f32 %v1965, 0.0
        %v2391 = vmax.f32 %v618, 0.0
        %v2392 = vmax.f32 %v620, 0.0
        %v2393 = vmax.f32 %v811, 0.0
        %v2394 = vmax.f32 %v813, 0.0
        %v2395 = vmax.f32 %v1004, 0.0
        %v2396 = vmax.f32 %v1006, 0.0
        %v2397 = vmax.f32 %v1197, 0.0
        %v2398 = vmax.f32 %v1199, 0.0
        %v2399 = vmax.f32 %v1390, 0.0
        %v2400 = vmax.f32 %v1392, 0.0
        %v2401 = vmax.f32 %v1583, 0.0
        %v2402 = vmax.f32 %v1585, 0.0
        %v2403 = vmax.f32 %v1776, 0.0
        %v2404 = vmax.f32 %v1778, 0.0
        %v2405 = vmax.f32 %v1969, 0.0
        %v2406 = vmax.f32 %v1971, 0.0
        %v2407 = vmax.f32 %v622, 0.0
        %v2408 = vmax.f32 %v624, 0.0
        %v2409 = vmax.f32 %v815, 0.0
        %v2410 = vmax.f32 %v817, 0.0
        %v2411 = vmax.f32 %v1008, 0.0
        %v2412 = vmax.f32 %v1010, 0.0
        %v2413 = vmax.f32 %v1201, 0.0
        %v2414 = vmax.f32 %v1203, 0.0
        %v2415 = vmax.f32 %v1394, 0.0
        %v2416 = vmax.f32 %v1396, 0.0
        %v2417 = vmax.f32 %v1587, 0.0
        %v2418 = vmax.f32 %v1589, 0.0
        %v2419 = vmax.f32 %v1780, 0.0
        %v2420 = vmax.f32 %v1782, 0.0
        %v2421 = vmax.f32 %v1973, 0.0
        %v2422 = vmax.f32 %v1975, 0.0
        %v2423 = vmax.f32 %v628, 0.0
        %v2424 = vmax.f32 %v630, 0.0
        %v2425 = vmax.f32 %v821, 0.0
        %v2426 = vmax.f32 %v823, 0.0
        %v2427 = vmax.f32 %v1014, 0.0
        %v2428 = vmax.f32 %v1016, 0.0
        %v2429 = vmax.f32 %v1207, 0.0
        %v2430 = vmax.f32 %v1209, 0.0
        %v2431 = vmax.f32 %v1400, 0.0
        %v2432 = vmax.f32 %v1402, 0.0
        %v2433 = vmax.f32 %v1593, 0.0
        %v2434 = vmax.f32 %v1595, 0.0
        %v2435 = vmax.f32 %v1786, 0.0
        %v2436 = vmax.f32 %v1788, 0.0
        %v2437 = vmax.f32 %v1979, 0.0
        %v2438 = vmax.f32 %v1981, 0.0
        %v2439 = vmax.f32 %v632, 0.0
        %v2440 = vmax.f32 %v634, 0.0
        %v2441 = vmax.f32 %v825, 0.0
        %v2442 = vmax.f32 %v827, 0.0
        %v2443 = vmax.f32 %v1018, 0.0
        %v2444 = vmax.f32 %v1020, 0.0
        %v2445 = vmax.f32 %v1211, 0.0
        %v2446 = vmax.f32 %v1213, 0.0
        %v2447 = vmax.f32 %v1404, 0.0
        %v2448 = vmax.f32 %v1406, 0.0
        %v2449 = vmax.f32 %v1597, 0.0
        %v2450 = vmax.f32 %v1599, 0.0
        %v2451 = vmax.f32 %v1790, 0.0
        %v2452 = vmax.f32 %v1792, 0.0
        %v2453 = vmax.f32 %v1983, 0.0
        %v2454 = vmax.f32 %v1985, 0.0
        %v2455 = vmax.f32 %v638, 0.0
        %v2456 = vmax.f32 %v640, 0.0
        %v2457 = vmax.f32 %v831, 0.0
        %v2458 = vmax.f32 %v833, 0.0
        %v2459 = vmax.f32 %v1024, 0.0
        %v2460 = vmax.f32 %v1026, 0.0
        %v2461 = vmax.f32 %v1217, 0.0
        %v2462 = vmax.f32 %v1219, 0.0
        %v2463 = vmax.f32 %v1410, 0.0
        %v2464 = vmax.f32 %v1412, 0.0
        %v2465 = vmax.f32 %v1603, 0.0
        %v2466 = vmax.f32 %v1605, 0.0
        %v2467 = vmax.f32 %v1796, 0.0
        %v2468 = vmax.f32 %v1798, 0.0
        %v2469 = vmax.f32 %v1989, 0.0
        %v2470 = vmax.f32 %v1991, 0.0
        %v2471 = vmax.f32 %v642, 0.0
        %v2472 = vmax.f32 %v644, 0.0
        %v2473 = vmax.f32 %v835, 0.0
        %v2474 = vmax.f32 %v837, 0.0
        %v2475 = vmax.f32 %v1028, 0.0
        %v2476 = vmax.f32 %v1030, 0.0
        %v2477 = vmax.f32 %v1221, 0.0
        %v2478 = vmax.f32 %v1223, 0.0
        %v2479 = vmax.f32 %v1414, 0.0
        %v2480 = vmax.f32 %v1416, 0.0
        %v2481 = vmax.f32 %v1607, 0.0
        %v2482 = vmax.f32 %v1609, 0.0
        %v2483 = vmax.f32 %v1800, 0.0
        %v2484 = vmax.f32 %v1802, 0.0
        %v2485 = vmax.f32 %v1993, 0.0
        %v2486 = vmax.f32 %v1995, 0.0
        %v2487 = vmax.f32 %v648, 0.0
        %v2488 = vmax.f32 %v650, 0.0
        %v2489 = vmax.f32 %v841, 0.0
        %v2490 = vmax.f32 %v843, 0.0
        %v2491 = vmax.f32 %v1034, 0.0
        %v2492 = vmax.f32 %v1036, 0.0
        %v2493 = vmax.f32 %v1227, 0.0
        %v2494 = vmax.f32 %v1229, 0.0
        %v2495 = vmax.f32 %v1420, 0.0
        %v2496 = vmax.f32 %v1422, 0.0
        %v2497 = vmax.f32 %v1613, 0.0
        %v2498 = vmax.f32 %v1615, 0.0
        %v2499 = vmax.f32 %v1806, 0.0
        %v2500 = vmax.f32 %v1808, 0.0
        %v2501 = vmax.f32 %v1999, 0.0
        %v2502 = vmax.f32 %v2001, 0.0
        %v2503 = vmax.f32 %v652, 0.0
        %v2504 = vmax.f32 %v654, 0.0
        %v2505 = vmax.f32 %v845, 0.0
        %v2506 = vmax.f32 %v847, 0.0
        %v2507 = vmax.f32 %v1038, 0.0
        %v2508 = vmax.f32 %v1040, 0.0
        %v2509 = vmax.f32 %v1231, 0.0
        %v2510 = vmax.f32 %v1233, 0.0
        %v2511 = vmax.f32 %v1424, 0.0
        %v2512 = vmax.f32 %v1426, 0.0
        %v2513 = vmax.f32 %v1617, 0.0
        %v2514 = vmax.f32 %v1619, 0.0
        %v2515 = vmax.f32 %v1810, 0.0
        %v2516 = vmax.f32 %v1812, 0.0
        %v2517 = vmax.f32 %v2003, 0.0
        %v2518 = vmax.f32 %v2005, 0.0
        %v2519 = vld [vmem:[#allocation2] sm:$0xff]
        %v2520 = vld [vmem:[#allocation2 + $0x8] sm:$0xff]
        %v2521 = vadd.f32 %v2007, %v2023
        %v2522 = vadd.f32 %v2521, %v2039
        %v2523 = vadd.f32 %v2522, %v2055
        %v2524 = vadd.f32 %v2523, %v2071
        %v2525 = vadd.f32 %v2524, %v2087
        %v2526 = vadd.f32 %v2525, %v2103
        %v2527 = vadd.f32 %v2526, %v2119
        %v2528 = vadd.f32 %v2527, %v2135
        %v2529 = vadd.f32 %v2528, %v2151
        %v2530 = vadd.f32 %v2529, %v2167
        %v2531 = vadd.f32 %v2530, %v2183
        %v2532 = vadd.f32 %v2531, %v2199
        %v2533 = vadd.f32 %v2532, %v2215
        %v2534 = vadd.f32 %v2533, %v2231
        %v2535 = vadd.f32 %v2534, %v2247
        %v2536 = vadd.f32 %v2535, %v2263
        %v2537 = vadd.f32 %v2536, %v2279
        %v2538 = vadd.f32 %v2537, %v2295
        %v2539 = vadd.f32 %v2538, %v2311
        %v2540 = vadd.f32 %v2539, %v2327
        %v2541 = vadd.f32 %v2540, %v2343
        %v2542 = vadd.f32 %v2541, %v2359
        %v2543 = vadd.f32 %v2542, %v2375
        %v2544 = vadd.f32 %v2543, %v2391
        %v2545 = vadd.f32 %v2544, %v2407
        %v2546 = vadd.f32 %v2545, %v2423
        %v2547 = vadd.f32 %v2546, %v2439
        %v2548 = vadd.f32 %v2547, %v2455
        %v2549 = vadd.f32 %v2548, %v2471
        %v2550 = vadd.f32 %v2549, %v2487
        %v2551 = vadd.f32 %v2550, %v2503
        %v2552 = vrot.slane %v2551, 4
        %v2553 = vadd.f32 %v2551, %v2552
        %v2554 = vrot.slane %v2553, 2
        %v2555 = vadd.f32 %v2553, %v2554
        %v2556 = vrot.slane %v2555, 1
        %v2557 = vadd.f32 %v2555, %v2556
        %v2558 = vadd.f32 %v2008, %v2024
        %v2559 = vadd.f32 %v2558, %v2040
        %v2560 = vadd.f32 %v2559, %v2056
        %v2561 = vadd.f32 %v2560, %v2072
        %v2562 = vadd.f32 %v2561, %v2088
        %v2563 = vadd.f32 %v2562, %v2104
        %v2564 = vadd.f32 %v2563, %v2120
        %v2565 = vadd.f32 %v2564, %v2136
        %v2566 = vadd.f32 %v2565, %v2152
        %v2567 = vadd.f32 %v2566, %v2168
        %v2568 = vadd.f32 %v2567, %v2184
        %v2569 = vadd.f32 %v2568, %v2200
        %v2570 = vadd.f32 %v2569, %v2216
        %v2571 = vadd.f32 %v2570, %v2232
        %v2572 = vadd.f32 %v2571, %v2248
        %v2573 = vadd.f32 %v2572, %v2264
        %v2574 = vadd.f32 %v2573, %v2280
        %v2575 = vadd.f32 %v2574, %v2296
        %v2576 = vadd.f32 %v2575, %v2312
        %v2577 = vadd.f32 %v2576, %v2328
        %v2578 = vadd.f32 %v2577, %v2344
        %v2579 = vadd.f32 %v2578, %v2360
        %v2580 = vadd.f32 %v2579, %v2376
        %v2581 = vadd.f32 %v2580, %v2392
        %v2582 = vadd.f32 %v2581, %v2408
        %v2583 = vadd.f32 %v2582, %v2424
        %v2584 = vadd.f32 %v2583, %v2440
        %v2585 = vadd.f32 %v2584, %v2456
        %v2586 = vadd.f32 %v2585, %v2472
        %v2587 = vadd.f32 %v2586, %v2488
        %v2588 = vadd.f32 %v2587, %v2504
        %v2589 = vrot.slane %v2588, 4
        %v2590 = vadd.f32 %v2588, %v2589
        %v2591 = vrot.slane %v2590, 2
        %v2592 = vadd.f32 %v2590, %v2591
        %v2593 = vrot.slane %v2592, 1
        %v2594 = vadd.f32 %v2592, %v2593
        %v2595 = vadd.f32 %v2009, %v2025
        %v2596 = vadd.f32 %v2595, %v2041
        %v2597 = vadd.f32 %v2596, %v2057
        %v2598 = vadd.f32 %v2597, %v2073
        %v2599 = vadd.f32 %v2598, %v2089
        %v2600 = vadd.f32 %v2599, %v2105
        %v2601 = vadd.f32 %v2600, %v2121
        %v2602 = vadd.f32 %v2601, %v2137
        %v2603 = vadd.f32 %v2602, %v2153
        %v2604 = vadd.f32 %v2603, %v2169
        %v2605 = vadd.f32 %v2604, %v2185
        %v2606 = vadd.f32 %v2605, %v2201
        %v2607 = vadd.f32 %v2606, %v2217
        %v2608 = vadd.f32 %v2607, %v2233
        %v2609 = vadd.f32 %v2608, %v2249
        %v2610 = vadd.f32 %v2609, %v2265
        %v2611 = vadd.f32 %v2610, %v2281
        %v2612 = vadd.f32 %v2611, %v2297
        %v2613 = vadd.f32 %v2612, %v2313
        %v2614 = vadd.f32 %v2613, %v2329
        %v2615 = vadd.f32 %v2614, %v2345
        %v2616 = vadd.f32 %v2615, %v2361
        %v2617 = vadd.f32 %v2616, %v2377
        %v2618 = vadd.f32 %v2617, %v2393
        %v2619 = vadd.f32 %v2618, %v2409
        %v2620 = vadd.f32 %v2619, %v2425
        %v2621 = vadd.f32 %v2620, %v2441
        %v2622 = vadd.f32 %v2621, %v2457
        %v2623 = vadd.f32 %v2622, %v2473
        %v2624 = vadd.f32 %v2623, %v2489
        %v2625 = vadd.f32 %v2624, %v2505
        %v2626 = vrot.slane %v2625, 4
        %v2627 = vadd.f32 %v2625, %v2626
        %v2628 = vrot.slane %v2627, 2
        %v2629 = vadd.f32 %v2627, %v2628
        %v2630 = vrot.slane %v2629, 1
        %v2631 = vadd.f32 %v2629, %v2630
        %v2632 = vadd.f32 %v2010, %v2026
        %v2633 = vadd.f32 %v2632, %v2042
        %v2634 = vadd.f32 %v2633, %v2058
        %v2635 = vadd.f32 %v2634, %v2074
        %v2636 = vadd.f32 %v2635, %v2090
        %v2637 = vadd.f32 %v2636, %v2106
        %v2638 = vadd.f32 %v2637, %v2122
        %v2639 = vadd.f32 %v2638, %v2138
        %v2640 = vadd.f32 %v2639, %v2154
        %v2641 = vadd.f32 %v2640, %v2170
        %v2642 = vadd.f32 %v2641, %v2186
        %v2643 = vadd.f32 %v2642, %v2202
        %v2644 = vadd.f32 %v2643, %v2218
        %v2645 = vadd.f32 %v2644, %v2234
        %v2646 = vadd.f32 %v2645, %v2250
        %v2647 = vadd.f32 %v2646, %v2266
        %v2648 = vadd.f32 %v2647, %v2282
        %v2649 = vadd.f32 %v2648, %v2298
        %v2650 = vadd.f32 %v2649, %v2314
        %v2651 = vadd.f32 %v2650, %v2330
        %v2652 = vadd.f32 %v2651, %v2346
        %v2653 = vadd.f32 %v2652, %v2362
        %v2654 = vadd.f32 %v2653, %v2378
        %v2655 = vadd.f32 %v2654, %v2394
        %v2656 = vadd.f32 %v2655, %v2410
        %v2657 = vadd.f32 %v2656, %v2426
        %v2658 = vadd.f32 %v2657, %v2442
        %v2659 = vadd.f32 %v2658, %v2458
        %v2660 = vadd.f32 %v2659, %v2474
        %v2661 = vadd.f32 %v2660, %v2490
        %v2662 = vadd.f32 %v2661, %v2506
        %v2663 = vrot.slane %v2662, 4
        %v2664 = vadd.f32 %v2662, %v2663
        %v2665 = vrot.slane %v2664, 2
        %v2666 = vadd.f32 %v2664, %v2665
        %v2667 = vrot.slane %v2666, 1
        %v2668 = vadd.f32 %v2666, %v2667
        %v2669 = vadd.f32 %v2011, %v2027
        %v2670 = vadd.f32 %v2669, %v2043
        %v2671 = vadd.f32 %v2670, %v2059
        %v2672 = vadd.f32 %v2671, %v2075
        %v2673 = vadd.f32 %v2672, %v2091
        %v2674 = vadd.f32 %v2673, %v2107
        %v2675 = vadd.f32 %v2674, %v2123
        %v2676 = vadd.f32 %v2675, %v2139
        %v2677 = vadd.f32 %v2676, %v2155
        %v2678 = vadd.f32 %v2677, %v2171
        %v2679 = vadd.f32 %v2678, %v2187
        %v2680 = vadd.f32 %v2679, %v2203
        %v2681 = vadd.f32 %v2680, %v2219
        %v2682 = vadd.f32 %v2681, %v2235
        %v2683 = vadd.f32 %v2682, %v2251
        %v2684 = vadd.f32 %v2683, %v2267
        %v2685 = vadd.f32 %v2684, %v2283
        %v2686 = vadd.f32 %v2685, %v2299
        %v2687 = vadd.f32 %v2686, %v2315
        %v2688 = vadd.f32 %v2687, %v2331
        %v2689 = vadd.f32 %v2688, %v2347
        %v2690 = vadd.f32 %v2689, %v2363
        %v2691 = vadd.f32 %v2690, %v2379
        %v2692 = vadd.f32 %v2691, %v2395
        %v2693 = vadd.f32 %v2692, %v2411
        %v2694 = vadd.f32 %v2693, %v2427
        %v2695 = vadd.f32 %v2694, %v2443
        %v2696 = vadd.f32 %v2695, %v2459
        %v2697 = vadd.f32 %v2696, %v2475
        %v2698 = vadd.f32 %v2697, %v2491
        %v2699 = vadd.f32 %v2698, %v2507
        %v2700 = vrot.slane %v2699, 4
        %v2701 = vadd.f32 %v2699, %v2700
        %v2702 = vrot.slane %v2701, 2
        %v2703 = vadd.f32 %v2701, %v2702
        %v2704 = vrot.slane %v2703, 1
        %v2705 = vadd.f32 %v2703, %v2704
        %v2706 = vadd.f32 %v2012, %v2028
        %v2707 = vadd.f32 %v2706, %v2044
        %v2708 = vadd.f32 %v2707, %v2060
        %v2709 = vadd.f32 %v2708, %v2076
        %v2710 = vadd.f32 %v2709, %v2092
        %v2711 = vadd.f32 %v2710, %v2108
        %v2712 = vadd.f32 %v2711, %v2124
        %v2713 = vadd.f32 %v2712, %v2140
        %v2714 = vadd.f32 %v2713, %v2156
        %v2715 = vadd.f32 %v2714, %v2172
        %v2716 = vadd.f32 %v2715, %v2188
        %v2717 = vadd.f32 %v2716, %v2204
        %v2718 = vadd.f32 %v2717, %v2220
        %v2719 = vadd.f32 %v2718, %v2236
        %v2720 = vadd.f32 %v2719, %v2252
        %v2721 = vadd.f32 %v2720, %v2268
        %v2722 = vadd.f32 %v2721, %v2284
        %v2723 = vadd.f32 %v2722, %v2300
        %v2724 = vadd.f32 %v2723, %v2316
        %v2725 = vadd.f32 %v2724, %v2332
        %v2726 = vadd.f32 %v2725, %v2348
        %v2727 = vadd.f32 %v2726, %v2364
        %v2728 = vadd.f32 %v2727, %v2380
        %v2729 = vadd.f32 %v2728, %v2396
        %v2730 = vadd.f32 %v2729, %v2412
        %v2731 = vadd.f32 %v2730, %v2428
        %v2732 = vadd.f32 %v2731, %v2444
        %v2733 = vadd.f32 %v2732, %v2460
        %v2734 = vadd.f32 %v2733, %v2476
        %v2735 = vadd.f32 %v2734, %v2492
        %v2736 = vadd.f32 %v2735, %v2508
        %v2737 = vrot.slane %v2736, 4
        %v2738 = vadd.f32 %v2736, %v2737
        %v2739 = vrot.slane %v2738, 2
        %v2740 = vadd.f32 %v2738, %v2739
        %v2741 = vrot.slane %v2740, 1
        %v2742 = vadd.f32 %v2740, %v2741
        %v2743 = vadd.f32 %v2013, %v2029
        %v2744 = vadd.f32 %v2743, %v2045
        %v2745 = vadd.f32 %v2744, %v2061
        %v2746 = vadd.f32 %v2745, %v2077
        %v2747 = vadd.f32 %v2746, %v2093
        %v2748 = vadd.f32 %v2747, %v2109
        %v2749 = vadd.f32 %v2748, %v2125
        %v2750 = vadd.f32 %v2749, %v2141
        %v2751 = vadd.f32 %v2750, %v2157
        %v2752 = vadd.f32 %v2751, %v2173
        %v2753 = vadd.f32 %v2752, %v2189
        %v2754 = vadd.f32 %v2753, %v2205
        %v2755 = vadd.f32 %v2754, %v2221
        %v2756 = vadd.f32 %v2755, %v2237
        %v2757 = vadd.f32 %v2756, %v2253
        %v2758 = vadd.f32 %v2757, %v2269
        %v2759 = vadd.f32 %v2758, %v2285
        %v2760 = vadd.f32 %v2759, %v2301
        %v2761 = vadd.f32 %v2760, %v2317
        %v2762 = vadd.f32 %v2761, %v2333
        %v2763 = vadd.f32 %v2762, %v2349
        %v2764 = vadd.f32 %v2763, %v2365
        %v2765 = vadd.f32 %v2764, %v2381
        %v2766 = vadd.f32 %v2765, %v2397
        %v2767 = vadd.f32 %v2766, %v2413
        %v2768 = vadd.f32 %v2767, %v2429
        %v2769 = vadd.f32 %v2768, %v2445
        %v2770 = vadd.f32 %v2769, %v2461
        %v2771 = vadd.f32 %v2770, %v2477
        %v2772 = vadd.f32 %v2771, %v2493
        %v2773 = vadd.f32 %v2772, %v2509
        %v2774 = vrot.slane %v2773, 4
        %v2775 = vadd.f32 %v2773, %v2774
        %v2776 = vrot.slane %v2775, 2
        %v2777 = vadd.f32 %v2775, %v2776
        %v2778 = vrot.slane %v2777, 1
        %v2779 = vadd.f32 %v2777, %v2778
        %v2780 = vadd.f32 %v2014, %v2030
        %v2781 = vadd.f32 %v2780, %v2046
        %v2782 = vadd.f32 %v2781, %v2062
        %v2783 = vadd.f32 %v2782, %v2078
        %v2784 = vadd.f32 %v2783, %v2094
        %v2785 = vadd.f32 %v2784, %v2110
        %v2786 = vadd.f32 %v2785, %v2126
        %v2787 = vadd.f32 %v2786, %v2142
        %v2788 = vadd.f32 %v2787, %v2158
        %v2789 = vadd.f32 %v2788, %v2174
        %v2790 = vadd.f32 %v2789, %v2190
        %v2791 = vadd.f32 %v2790, %v2206
        %v2792 = vadd.f32 %v2791, %v2222
        %v2793 = vadd.f32 %v2792, %v2238
        %v2794 = vadd.f32 %v2793, %v2254
        %v2795 = vadd.f32 %v2794, %v2270
        %v2796 = vadd.f32 %v2795, %v2286
        %v2797 = vadd.f32 %v2796, %v2302
        %v2798 = vadd.f32 %v2797, %v2318
        %v2799 = vadd.f32 %v2798, %v2334
        %v2800 = vadd.f32 %v2799, %v2350
        %v2801 = vadd.f32 %v2800, %v2366
        %v2802 = vadd.f32 %v2801, %v2382
        %v2803 = vadd.f32 %v2802, %v2398
        %v2804 = vadd.f32 %v2803, %v2414
        %v2805 = vadd.f32 %v2804, %v2430
        %v2806 = vadd.f32 %v2805, %v2446
        %v2807 = vadd.f32 %v2806, %v2462
        %v2808 = vadd.f32 %v2807, %v2478
        %v2809 = vadd.f32 %v2808, %v2494
        %v2810 = vadd.f32 %v2809, %v2510
        %v2811 = vrot.slane %v2810, 4
        %v2812 = vadd.f32 %v2810, %v2811
        %v2813 = vrot.slane %v2812, 2
        %v2814 = vadd.f32 %v2812, %v2813
        %v2815 = vrot.slane %v2814, 1
        %v2816 = vadd.f32 %v2814, %v2815
        %v2817 = vadd.f32 %v2015, %v2031
        %v2818 = vadd.f32 %v2817, %v2047
        %v2819 = vadd.f32 %v2818, %v2063
        %v2820 = vadd.f32 %v2819, %v2079
        %v2821 = vadd.f32 %v2820, %v2095
        %v2822 = vadd.f32 %v2821, %v2111
        %v2823 = vadd.f32 %v2822, %v2127
        %v2824 = vadd.f32 %v2823, %v2143
        %v2825 = vadd.f32 %v2824, %v2159
        %v2826 = vadd.f32 %v2825, %v2175
        %v2827 = vadd.f32 %v2826, %v2191
        %v2828 = vadd.f32 %v2827, %v2207
        %v2829 = vadd.f32 %v2828, %v2223
        %v2830 = vadd.f32 %v2829, %v2239
        %v2831 = vadd.f32 %v2830, %v2255
        %v2832 = vadd.f32 %v2831, %v2271
        %v2833 = vadd.f32 %v2832, %v2287
        %v2834 = vadd.f32 %v2833, %v2303
        %v2835 = vadd.f32 %v2834, %v2319
        %v2836 = vadd.f32 %v2835, %v2335
        %v2837 = vadd.f32 %v2836, %v2351
        %v2838 = vadd.f32 %v2837, %v2367
        %v2839 = vadd.f32 %v2838, %v2383
        %v2840 = vadd.f32 %v2839, %v2399
        %v2841 = vadd.f32 %v2840, %v2415
        %v2842 = vadd.f32 %v2841, %v2431
        %v2843 = vadd.f32 %v2842, %v2447
        %v2844 = vadd.f32 %v2843, %v2463
        %v2845 = vadd.f32 %v2844, %v2479
        %v2846 = vadd.f32 %v2845, %v2495
        %v2847 = vadd.f32 %v2846, %v2511
        %v2848 = vrot.slane %v2847, 4
        %v2849 = vadd.f32 %v2847, %v2848
        %v2850 = vrot.slane %v2849, 2
        %v2851 = vadd.f32 %v2849, %v2850
        %v2852 = vrot.slane %v2851, 1
        %v2853 = vadd.f32 %v2851, %v2852
        %v2854 = vadd.f32 %v2016, %v2032
        %v2855 = vadd.f32 %v2854, %v2048
        %v2856 = vadd.f32 %v2855, %v2064
        %v2857 = vadd.f32 %v2856, %v2080
        %v2858 = vadd.f32 %v2857, %v2096
        %v2859 = vadd.f32 %v2858, %v2112
        %v2860 = vadd.f32 %v2859, %v2128
        %v2861 = vadd.f32 %v2860, %v2144
        %v2862 = vadd.f32 %v2861, %v2160
        %v2863 = vadd.f32 %v2862, %v2176
        %v2864 = vadd.f32 %v2863, %v2192
        %v2865 = vadd.f32 %v2864, %v2208
        %v2866 = vadd.f32 %v2865, %v2224
        %v2867 = vadd.f32 %v2866, %v2240
        %v2868 = vadd.f32 %v2867, %v2256
        %v2869 = vadd.f32 %v2868, %v2272
        %v2870 = vadd.f32 %v2869, %v2288
        %v2871 = vadd.f32 %v2870, %v2304
        %v2872 = vadd.f32 %v2871, %v2320
        %v2873 = vadd.f32 %v2872, %v2336
        %v2874 = vadd.f32 %v2873, %v2352
        %v2875 = vadd.f32 %v2874, %v2368
        %v2876 = vadd.f32 %v2875, %v2384
        %v2877 = vadd.f32 %v2876, %v2400
        %v2878 = vadd.f32 %v2877, %v2416
        %v2879 = vadd.f32 %v2878, %v2432
        %v2880 = vadd.f32 %v2879, %v2448
        %v2881 = vadd.f32 %v2880, %v2464
        %v2882 = vadd.f32 %v2881, %v2480
        %v2883 = vadd.f32 %v2882, %v2496
        %v2884 = vadd.f32 %v2883, %v2512
        %v2885 = vrot.slane %v2884, 4
        %v2886 = vadd.f32 %v2884, %v2885
        %v2887 = vrot.slane %v2886, 2
        %v2888 = vadd.f32 %v2886, %v2887
        %v2889 = vrot.slane %v2888, 1
        %v2890 = vadd.f32 %v2888, %v2889
        %v2891 = vadd.f32 %v2017, %v2033
        %v2892 = vadd.f32 %v2891, %v2049
        %v2893 = vadd.f32 %v2892, %v2065
        %v2894 = vadd.f32 %v2893, %v2081
        %v2895 = vadd.f32 %v2894, %v2097
        %v2896 = vadd.f32 %v2895, %v2113
        %v2897 = vadd.f32 %v2896, %v2129
        %v2898 = vadd.f32 %v2897, %v2145
        %v2899 = vadd.f32 %v2898, %v2161
        %v2900 = vadd.f32 %v2899, %v2177
        %v2901 = vadd.f32 %v2900, %v2193
        %v2902 = vadd.f32 %v2901, %v2209
        %v2903 = vadd.f32 %v2902, %v2225
        %v2904 = vadd.f32 %v2903, %v2241
        %v2905 = vadd.f32 %v2904, %v2257
        %v2906 = vadd.f32 %v2905, %v2273
        %v2907 = vadd.f32 %v2906, %v2289
        %v2908 = vadd.f32 %v2907, %v2305
        %v2909 = vadd.f32 %v2908, %v2321
        %v2910 = vadd.f32 %v2909, %v2337
        %v2911 = vadd.f32 %v2910, %v2353
        %v2912 = vadd.f32 %v2911, %v2369
        %v2913 = vadd.f32 %v2912, %v2385
        %v2914 = vadd.f32 %v2913, %v2401
        %v2915 = vadd.f32 %v2914, %v2417
        %v2916 = vadd.f32 %v2915, %v2433
        %v2917 = vadd.f32 %v2916, %v2449
        %v2918 = vadd.f32 %v2917, %v2465
        %v2919 = vadd.f32 %v2918, %v2481
        %v2920 = vadd.f32 %v2919, %v2497
        %v2921 = vadd.f32 %v2920, %v2513
        %v2922 = vrot.slane %v2921, 4
        %v2923 = vadd.f32 %v2921, %v2922
        %v2924 = vrot.slane %v2923, 2
        %v2925 = vadd.f32 %v2923, %v2924
        %v2926 = vrot.slane %v2925, 1
        %v2927 = vadd.f32 %v2925, %v2926
        %v2928 = vadd.f32 %v2018, %v2034
        %v2929 = vadd.f32 %v2928, %v2050
        %v2930 = vadd.f32 %v2929, %v2066
        %v2931 = vadd.f32 %v2930, %v2082
        %v2932 = vadd.f32 %v2931, %v2098
        %v2933 = vadd.f32 %v2932, %v2114
        %v2934 = vadd.f32 %v2933, %v2130
        %v2935 = vadd.f32 %v2934, %v2146
        %v2936 = vadd.f32 %v2935, %v2162
        %v2937 = vadd.f32 %v2936, %v2178
        %v2938 = vadd.f32 %v2937, %v2194
        %v2939 = vadd.f32 %v2938, %v2210
        %v2940 = vadd.f32 %v2939, %v2226
        %v2941 = vadd.f32 %v2940, %v2242
        %v2942 = vadd.f32 %v2941, %v2258
        %v2943 = vadd.f32 %v2942, %v2274
        %v2944 = vadd.f32 %v2943, %v2290
        %v2945 = vadd.f32 %v2944, %v2306
        %v2946 = vadd.f32 %v2945, %v2322
        %v2947 = vadd.f32 %v2946, %v2338
        %v2948 = vadd.f32 %v2947, %v2354
        %v2949 = vadd.f32 %v2948, %v2370
        %v2950 = vadd.f32 %v2949, %v2386
        %v2951 = vadd.f32 %v2950, %v2402
        %v2952 = vadd.f32 %v2951, %v2418
        %v2953 = vadd.f32 %v2952, %v2434
        %v2954 = vadd.f32 %v2953, %v2450
        %v2955 = vadd.f32 %v2954, %v2466
        %v2956 = vadd.f32 %v2955, %v2482
        %v2957 = vadd.f32 %v2956, %v2498
        %v2958 = vadd.f32 %v2957, %v2514
        %v2959 = vrot.slane %v2958, 4
        %v2960 = vadd.f32 %v2958, %v2959
        %v2961 = vrot.slane %v2960, 2
        %v2962 = vadd.f32 %v2960, %v2961
        %v2963 = vrot.slane %v2962, 1
        %v2964 = vadd.f32 %v2962, %v2963
        %v2965 = vadd.f32 %v2019, %v2035
        %v2966 = vadd.f32 %v2965, %v2051
        %v2967 = vadd.f32 %v2966, %v2067
        %v2968 = vadd.f32 %v2967, %v2083
        %v2969 = vadd.f32 %v2968, %v2099
        %v2970 = vadd.f32 %v2969, %v2115
        %v2971 = vadd.f32 %v2970, %v2131
        %v2972 = vadd.f32 %v2971, %v2147
        %v2973 = vadd.f32 %v2972, %v2163
        %v2974 = vadd.f32 %v2973, %v2179
        %v2975 = vadd.f32 %v2974, %v2195
        %v2976 = vadd.f32 %v2975, %v2211
        %v2977 = vadd.f32 %v2976, %v2227
        %v2978 = vadd.f32 %v2977, %v2243
        %v2979 = vadd.f32 %v2978, %v2259
        %v2980 = vadd.f32 %v2979, %v2275
        %v2981 = vadd.f32 %v2980, %v2291
        %v2982 = vadd.f32 %v2981, %v2307
        %v2983 = vadd.f32 %v2982, %v2323
        %v2984 = vadd.f32 %v2983, %v2339
        %v2985 = vadd.f32 %v2984, %v2355
        %v2986 = vadd.f32 %v2985, %v2371
        %v2987 = vadd.f32 %v2986, %v2387
        %v2988 = vadd.f32 %v2987, %v2403
        %v2989 = vadd.f32 %v2988, %v2419
        %v2990 = vadd.f32 %v2989, %v2435
        %v2991 = vadd.f32 %v2990, %v2451
        %v2992 = vadd.f32 %v2991, %v2467
        %v2993 = vadd.f32 %v2992, %v2483
        %v2994 = vadd.f32 %v2993, %v2499
        %v2995 = vadd.f32 %v2994, %v2515
        %v2996 = vrot.slane %v2995, 4
        %v2997 = vadd.f32 %v2995, %v2996
        %v2998 = vrot.slane %v2997, 2
        %v2999 = vadd.f32 %v2997, %v2998
        %v3000 = vrot.slane %v2999, 1
        %v3001 = vadd.f32 %v2999, %v3000
        %v3002 = vadd.f32 %v2020, %v2036
        %v3003 = vadd.f32 %v3002, %v2052
        %v3004 = vadd.f32 %v3003, %v2068
        %v3005 = vadd.f32 %v3004, %v2084
        %v3006 = vadd.f32 %v3005, %v2100
        %v3007 = vadd.f32 %v3006, %v2116
        %v3008 = vadd.f32 %v3007, %v2132
        %v3009 = vadd.f32 %v3008, %v2148
        %v3010 = vadd.f32 %v3009, %v2164
        %v3011 = vadd.f32 %v3010, %v2180
        %v3012 = vadd.f32 %v3011, %v2196
        %v3013 = vadd.f32 %v3012, %v2212
        %v3014 = vadd.f32 %v3013, %v2228
        %v3015 = vadd.f32 %v3014, %v2244
        %v3016 = vadd.f32 %v3015, %v2260
        %v3017 = vadd.f32 %v3016, %v2276
        %v3018 = vadd.f32 %v3017, %v2292
        %v3019 = vadd.f32 %v3018, %v2308
        %v3020 = vadd.f32 %v3019, %v2324
        %v3021 = vadd.f32 %v3020, %v2340
        %v3022 = vadd.f32 %v3021, %v2356
        %v3023 = vadd.f32 %v3022, %v2372
        %v3024 = vadd.f32 %v3023, %v2388
        %v3025 = vadd.f32 %v3024, %v2404
        %v3026 = vadd.f32 %v3025, %v2420
        %v3027 = vadd.f32 %v3026, %v2436
        %v3028 = vadd.f32 %v3027, %v2452
        %v3029 = vadd.f32 %v3028, %v2468
        %v3030 = vadd.f32 %v3029, %v2484
        %v3031 = vadd.f32 %v3030, %v2500
        %v3032 = vadd.f32 %v3031, %v2516
        %v3033 = vrot.slane %v3032, 4
        %v3034 = vadd.f32 %v3032, %v3033
        %v3035 = vrot.slane %v3034, 2
        %v3036 = vadd.f32 %v3034, %v3035
        %v3037 = vrot.slane %v3036, 1
        %v3038 = vadd.f32 %v3036, %v3037
        %v3039 = vadd.f32 %v2021, %v2037
        %v3040 = vadd.f32 %v3039, %v2053
        %v3041 = vadd.f32 %v3040, %v2069
        %v3042 = vadd.f32 %v3041, %v2085
        %v3043 = vadd.f32 %v3042, %v2101
        %v3044 = vadd.f32 %v3043, %v2117
        %v3045 = vadd.f32 %v3044, %v2133
        %v3046 = vadd.f32 %v3045, %v2149
        %v3047 = vadd.f32 %v3046, %v2165
        %v3048 = vadd.f32 %v3047, %v2181
        %v3049 = vadd.f32 %v3048, %v2197
        %v3050 = vadd.f32 %v3049, %v2213
        %v3051 = vadd.f32 %v3050, %v2229
        %v3052 = vadd.f32 %v3051, %v2245
        %v3053 = vadd.f32 %v3052, %v2261
        %v3054 = vadd.f32 %v3053, %v2277
        %v3055 = vadd.f32 %v3054, %v2293
        %v3056 = vadd.f32 %v3055, %v2309
        %v3057 = vadd.f32 %v3056, %v2325
        %v3058 = vadd.f32 %v3057, %v2341
        %v3059 = vadd.f32 %v3058, %v2357
        %v3060 = vadd.f32 %v3059, %v2373
        %v3061 = vadd.f32 %v3060, %v2389
        %v3062 = vadd.f32 %v3061, %v2405
        %v3063 = vadd.f32 %v3062, %v2421
        %v3064 = vadd.f32 %v3063, %v2437
        %v3065 = vadd.f32 %v3064, %v2453
        %v3066 = vadd.f32 %v3065, %v2469
        %v3067 = vadd.f32 %v3066, %v2485
        %v3068 = vadd.f32 %v3067, %v2501
        %v3069 = vadd.f32 %v3068, %v2517
        %v3070 = vrot.slane %v3069, 4
        %v3071 = vadd.f32 %v3069, %v3070
        %v3072 = vrot.slane %v3071, 2
        %v3073 = vadd.f32 %v3071, %v3072
        %v3074 = vrot.slane %v3073, 1
        %v3075 = vadd.f32 %v3073, %v3074
        %v3076 = vadd.f32 %v2022, %v2038
        %v3077 = vadd.f32 %v3076, %v2054
        %v3078 = vadd.f32 %v3077, %v2070
        %v3079 = vadd.f32 %v3078, %v2086
        %v3080 = vadd.f32 %v3079, %v2102
        %v3081 = vadd.f32 %v3080, %v2118
        %v3082 = vadd.f32 %v3081, %v2134
        %v3083 = vadd.f32 %v3082, %v2150
        %v3084 = vadd.f32 %v3083, %v2166
        %v3085 = vadd.f32 %v3084, %v2182
        %v3086 = vadd.f32 %v3085, %v2198
        %v3087 = vadd.f32 %v3086, %v2214
        %v3088 = vadd.f32 %v3087, %v2230
        %v3089 = vadd.f32 %v3088, %v2246
        %v3090 = vadd.f32 %v3089, %v2262
        %v3091 = vadd.f32 %v3090, %v2278
        %v3092 = vadd.f32 %v3091, %v2294
        %v3093 = vadd.f32 %v3092, %v2310
        %v3094 = vadd.f32 %v3093, %v2326
        %v3095 = vadd.f32 %v3094, %v2342
        %v3096 = vadd.f32 %v3095, %v2358
        %v3097 = vadd.f32 %v3096, %v2374
        %v3098 = vadd.f32 %v3097, %v2390
        %v3099 = vadd.f32 %v3098, %v2406
        %v3100 = vadd.f32 %v3099, %v2422
        %v3101 = vadd.f32 %v3100, %v2438
        %v3102 = vadd.f32 %v3101, %v2454
        %v3103 = vadd.f32 %v3102, %v2470
        %v3104 = vadd.f32 %v3103, %v2486
        %v3105 = vadd.f32 %v3104, %v2502
        %v3106 = vadd.f32 %v3105, %v2518
        %v3107 = vrot.slane %v3106, 4
        %v3108 = vadd.f32 %v3106, %v3107
        %v3109 = vrot.slane %v3108, 2
        %v3110 = vadd.f32 %v3108, %v3109
        %v3111 = vrot.slane %v3110, 1
        %v3112 = vadd.f32 %v3110, %v3111
        %v3129 = vcombine.low %v2557, %v2594
        %v3130 = vcombine.low %v2631, %v2668
        %v3131 = vcombine.low %v2705, %v2742
        %v3132 = vcombine.low %v2779, %v2816
        %v3134 = vunpack.c.l.s4 1966171168
        %v3135 = vunpack.c.0.s8 %v3134
        %v3136 = vlaneseq
        %v3137 = vshrl.u32 %v3136, 7
        %v3138 = vsub.s32 %v3135, %v3137
        %v3139 = vrot.slane %v3129, %v3138
        %v3141 = vunpack.c.l.s4 1966171168
        %v3142 = vunpack.c.0.s8 %v3141
        %v3143 = vlaneseq
        %v3144 = vshrl.u32 %v3143, 7
        %v3145 = vsub.s32 %v3142, %v3144
        %v3146 = vrot.slane %v3130, %v3145
        %v3148 = vunpack.c.l.s4 1966171168
        %v3149 = vunpack.c.0.s8 %v3148
        %v3150 = vlaneseq
        %v3151 = vshrl.u32 %v3150, 7
        %v3152 = vsub.s32 %v3149, %v3151
        %v3153 = vrot.slane %v3131, %v3152
        %v3155 = vunpack.c.l.s4 1966171168
        %v3156 = vunpack.c.0.s8 %v3155
        %v3157 = vlaneseq
        %v3158 = vshrl.u32 %v3157, 7
        %v3159 = vsub.s32 %v3156, %v3158
        %v3160 = vrot.slane %v3132, %v3159
        %v3161 = vcombine.low %v3139, %v3146
        %v3162 = vcombine.low %v3153, %v3160
        %v3164 = vunpack.c.l.s4 1966171168
        %v3165 = vunpack.c.0.s8 %v3164
        %v3166 = vlaneseq
        %v3167 = vshrl.u32 %v3166, 7
        %v3168 = vsub.s32 %v3165, %v3167
        %v3169 = vrot.slane %v3161, %v3168
        %v3171 = vunpack.c.l.s4 1966171168
        %v3172 = vunpack.c.0.s8 %v3171
        %v3173 = vlaneseq
        %v3174 = vshrl.u32 %v3173, 7
        %v3175 = vsub.s32 %v3172, %v3174
        %v3176 = vrot.slane %v3162, %v3175
        %v3177 = vcombine.low %v3169, %v3176
        %v3178 = vcombine.low %v2853, %v2890
        %v3179 = vcombine.low %v2927, %v2964
        %v3180 = vcombine.low %v3001, %v3038
        %v3181 = vcombine.low %v3075, %v3112
        %v3183 = vunpack.c.l.s4 1966171168
        %v3184 = vunpack.c.0.s8 %v3183
        %v3185 = vlaneseq
        %v3186 = vshrl.u32 %v3185, 7
        %v3187 = vsub.s32 %v3184, %v3186
        %v3188 = vrot.slane %v3178, %v3187
        %v3190 = vunpack.c.l.s4 1966171168
        %v3191 = vunpack.c.0.s8 %v3190
        %v3192 = vlaneseq
        %v3193 = vshrl.u32 %v3192, 7
        %v3194 = vsub.s32 %v3191, %v3193
        %v3195 = vrot.slane %v3179, %v3194
        %v3197 = vunpack.c.l.s4 1966171168
        %v3198 = vunpack.c.0.s8 %v3197
        %v3199 = vlaneseq
        %v3200 = vshrl.u32 %v3199, 7
        %v3201 = vsub.s32 %v3198, %v3200
        %v3202 = vrot.slane %v3180, %v3201
        %v3204 = vunpack.c.l.s4 1966171168
        %v3205 = vunpack.c.0.s8 %v3204
        %v3206 = vlaneseq
        %v3207 = vshrl.u32 %v3206, 7
        %v3208 = vsub.s32 %v3205, %v3207
        %v3209 = vrot.slane %v3181, %v3208
        %v3210 = vcombine.low %v3188, %v3195
        %v3211 = vcombine.low %v3202, %v3209
        %v3213 = vunpack.c.l.s4 1966171168
        %v3214 = vunpack.c.0.s8 %v3213
        %v3215 = vlaneseq
        %v3216 = vshrl.u32 %v3215, 7
        %v3217 = vsub.s32 %v3214, %v3216
        %v3218 = vrot.slane %v3210, %v3217
        %v3220 = vunpack.c.l.s4 1966171168
        %v3221 = vunpack.c.0.s8 %v3220
        %v3222 = vlaneseq
        %v3223 = vshrl.u32 %v3222, 7
        %v3224 = vsub.s32 %v3221, %v3223
        %v3225 = vrot.slane %v3211, %v3224
        %v3226 = vcombine.low %v3218, %v3225
        %v3229 = vadd.f32 %v2519, %v3177
        %v3230 = vadd.f32 %v2520, %v3226
        %3231 = vst [vmem:[#allocation2] sm:$0xff] %v3229
        %3232 = vst [vmem:[#allocation2 + $0x8] sm:$0xff] %v3230
        // Predicated region
        $region33: #{tpu_custom_call.1} parent=27 // pred_check
          %p3233 = pneg %p171
        $region34: #{tpu_custom_call.1} parent=27 // pred_check_branch
          %3235 = sbr.rel (%p3233) target = $region36
        $region35: #{tpu_custom_call.1} parent=27 // pred_region
          %v3236 = vld [vmem:[#allocation2] sm:$0xff]
          %v3237 = vld [vmem:[#allocation2 + $0x8] sm:$0xff]
          %v3238 = vmul.f32 %v3236, 0.00390625
          %v3239 = vmul.f32 %v3237, 0.00390625
          %3240 = vst [vmem:[%s159] sm:$0xff] %v3238
          %3241 = vst [vmem:[%s159 + $0x8] sm:$0xff] %v3239
        $region36: #{tpu_custom_call.1} parent=27 // pred_fallthru
          _
        %s3242 = sand.u32 %s85, 1
        %s3243 = scalar_lea.sflag [#allocation4], %s3242
        %s3244 = sand.u32 %s85, 1
        %s3245 = smul.addr %s3244, 16
        %s3246 = scalar_lea.vmem [#allocation3], %s3245
        // Predicated region
        $region37: #{tpu_custom_call.1} parent=27 // pred_check
          %p3247 = pneg %p95
        $region38: #{tpu_custom_call.1} parent=27 // pred_check_branch
          %3249 = sbr.rel (%p3247) target = $region40
        $region39: #{tpu_custom_call.1} parent=27 // pred_region
          %s3251 = ssub.s32 256, 256
          %3252 = vsyncadd %s3243, %s3251
          %s3253 = smul.addr %s20, 16
          %s3254 = smul.addr %s3253, 16
          %s3255 = scalar_lea.hbm %s2, %s3254
          %s3257 = sshll.u32 %s3246, 4
          %s3258 = int_to_ptr.vmem [resolvable:$true] %s3257
          %3260 = dma.vmem_to_hbm [thread:$0]  %s3258, 256, %s3255, %s3243
        $region40: #{tpu_custom_call.1} parent=27 // pred_fallthru
          _
      $region28: #{tpu_custom_call.1} parent=5 // pred_fallthru
        _
      %p3261 = scmp.le.s32.totalorder 2, %s11
      // Predicated region
      $region41: #{tpu_custom_call.1} parent=5 // pred_check
        %p3262 = pneg %p3261
      $region42: #{tpu_custom_call.1} parent=5 // pred_check_branch
        %3264 = sbr.rel (%p3262) target = $region44
      $region43: #{tpu_custom_call.1} parent=5 // pred_region
        %s3265 = ssub.s32 %s11, 2
        // Predicated region
        $region45: #{tpu_custom_call.1} parent=43 // pred_check
          %p3266 = pneg %p101
        $region46: #{tpu_custom_call.1} parent=43 // pred_check_branch
          %3268 = sbr.rel (%p3266) target = $region48
        $region47: #{tpu_custom_call.1} parent=43 // pred_region
          %s3269 = sand.u32 %s86, 1
          %s3270 = scalar_lea.sflag [#allocation4], %s3269
          %s3271 = sand.u32 %s86, 1
          %s3272 = smul.addr %s3271, 16
          %s3273 = scalar_lea.vmem [#allocation3], %s3272
          %3274 = dma.done %s3270, 256
        $region48: #{tpu_custom_call.1} parent=43 // pred_fallthru
          _
      $region44: #{tpu_custom_call.1} parent=5 // pred_fallthru
        _
    $region6: #{tpu_custom_call.1} parent=1 // loop_footer
      %s15 = sadd.s32 1, %s11
    $region7: #{tpu_custom_call.1} parent=1 // loop_footer_branch
      %10 = sbr.rel target = $region3
    $region8: #{tpu_custom_call.1} parent=1 // loop_exit
      _
    %3275 = vsyncpa [#allocation4], 1
    %s3276 = scalar_lea.sflag [#allocation4], 1
    %3277 = vsyncpa %s3276, 1

</llo_original>
